<compile_context>
chip_gen: v7x
topology: tpu7x:2x2x1
jax: 0.10.0
libtpu: 0.0.40
codegen_flags: <defaults>
</compile_context>

<pallas_src>
import functools
import math

import jax
import jax.numpy as jnp
from jax import lax
from jax.experimental import pallas as pl
from jax.experimental.pallas import tpu as pltpu

DP = 128      # padded feature lane width (real d_model lives in lanes [0:d_model))
CKKP = 64     # padded im2col patch width (C*3*3 = 36 -> 64)

# bf16 weight-slab row offsets (all multiples of 16 for bf16 sublane packing)
ROW_WCONV = 0            # 64 rows : conv  [CKKP -> DP]
ROW_WQKV = 64            # 128 rows: fused q|k|v at lane offsets 0/32/64
ROW_WO = 192             # 32 rows : attn out proj  [d_model -> DP]
ROW_W1 = 224             # 128 rows: FFN in   [DP -> d_ffn lanes 0:64]
ROW_W2 = 352             # 128 rows: FFN out  [DP -> d_model]
ROW_WQ2 = 480            # 128 rows: decoder query proj
ROW_WKV2 = 608           # 128 rows: decoder fused k|v at lane offsets 0/32
ROW_WO2 = 736            # 32 rows : decoder attn out proj
ROW_WH = 768             # 128 rows: fused class+box head (logits 0:NC, boxes NC:NC+4)
SLAB_ROWS = 896


def _make_kernel(scale, num_classes, num_frames, tokens, num_queries, d_model):
    F, T, Q, DM = num_frames, tokens, num_queries, d_model
    f32, bf16 = jnp.float32, jnp.bfloat16

    def kernel(patches_ref, w_ref, aux_ref, head_ref, trk_ref):
        # ---- weight slab segments (bf16, static ref slices) ----
        wconv = w_ref[ROW_WCONV:ROW_WCONV + CKKP, :]
        wqkv = w_ref[ROW_WQKV:ROW_WQKV + DP, :]
        wo = w_ref[ROW_WO:ROW_WO + DM, :]
        w1 = w_ref[ROW_W1:ROW_W1 + DP, :]
        w2 = w_ref[ROW_W2:ROW_W2 + DP, :]
        wq2 = w_ref[ROW_WQ2:ROW_WQ2 + DP, :]
        wkv2 = w_ref[ROW_WKV2:ROW_WKV2 + DP, :]
        wo2 = w_ref[ROW_WO2:ROW_WO2 + DM, :]
        wh = w_ref[ROW_WH:ROW_WH + DP, :]

        bconv = aux_ref[0:1, :]                 # f32 [1, DP]   (zero)
        bh = aux_ref[1:2, :]                    # f32 [1, DP]   (zero)
        qembed = aux_ref[8:8 + Q, :]            # f32 [Q, DP]   object query embeddings

        # ---- backbone: conv (im2col matmul) + ReLU, all frames at once ----
        p = patches_ref[0]                                              # [F*T, CKKP] bf16
        feat = jnp.dot(p, wconv, preferred_element_type=f32) + bconv
        feat = jnp.maximum(feat, 0.0)                                   # [F*T, DP] f32

        # ---- encoder: packed QKV projection (one 128-lane column group) ----
        qkv = jnp.dot(feat.astype(bf16), wqkv, preferred_element_type=f32)
        q = qkv[:, 0:DM]                                                # [F*T, DM]
        k = qkv[:, DM:2 * DM]
        v = qkv[:, 2 * DM:3 * DM]

        # per-frame self-attention (frames are independent in the encoder)
        ctx_rows = []
        for fi in range(F):
            sl = slice(fi * T, (fi + 1) * T)
            s = lax.dot_general(q[sl].astype(bf16), k[sl].astype(bf16),
                                (((1,), (1,)), ((), ())),
                                preferred_element_type=f32) * scale      # [T, T]
            s = s - jnp.max(s, axis=-1, keepdims=True)
            e = jnp.exp(s)
            a = e / jnp.sum(e, axis=-1, keepdims=True)
            ctx_rows.append(jnp.dot(a.astype(bf16), v[sl].astype(bf16),
                                    preferred_element_type=f32))          # [T, DM]
        ctx = jnp.concatenate(ctx_rows, axis=0)                           # [F*T, DM]
        enc = feat + jnp.dot(ctx.astype(bf16), wo, preferred_element_type=f32)

        # ---- encoder FFN + residual (all frames batched) ----
        h = jnp.maximum(jnp.dot(enc.astype(bf16), w1, preferred_element_type=f32), 0.0)
        enc = enc + jnp.dot(h.astype(bf16), w2, preferred_element_type=f32)  # [F*T, DP]

        # ---- decoder memory projection (packed K|V), all frames at once ----
        kv = jnp.dot(enc.astype(bf16), wkv2, preferred_element_type=f32)     # [F*T, DP]

        # ---- decoder: sequential frame loop (track-query carry as a value) ----
        track = jnp.zeros((Q, DP), f32)
        for fi in range(F):
            sl = slice(fi * T, (fi + 1) * T)
            qin = qembed + track                                              # [Q, DP]
            qd = jnp.dot(qin.astype(bf16), wq2, preferred_element_type=f32)
            kd = kv[sl, 0:DM]                                                 # [T, DM]
            vd = kv[sl, DM:2 * DM]
            s2 = lax.dot_general(qd[:, 0:DM].astype(bf16), kd.astype(bf16),
                                 (((1,), (1,)), ((), ())),
                                 preferred_element_type=f32) * scale          # [Q, T]
            s2 = s2 - jnp.max(s2, axis=-1, keepdims=True)
            e2 = jnp.exp(s2)
            a2 = e2 / jnp.sum(e2, axis=-1, keepdims=True)
            ctx2 = jnp.dot(a2.astype(bf16), vd.astype(bf16),
                           preferred_element_type=f32)                        # [Q, DM]
            dec = qin + jnp.dot(ctx2.astype(bf16), wo2, preferred_element_type=f32)

            # fused heads: lanes [0:NC) logits, [NC:NC+4) sigmoid boxes (exact sigmoid)
            head = jnp.dot(dec.astype(bf16), wh, preferred_element_type=f32) + bh
            lane = lax.broadcasted_iota(jnp.int32, head.shape, 1)
            box_mask = jnp.logical_and(lane >= num_classes, lane < num_classes + 4)
            head = jnp.where(box_mask, 1.0 / (1.0 + jnp.exp(-head)), head)

            # lane-dense, sublane-aligned stores (Q rows at row offset fi*Q)
            head_ref[0, fi * Q:(fi + 1) * Q, :] = head
            trk_ref[0, fi * Q:(fi + 1) * Q, :] = dec
            track = dec

    return kernel


# ----------------------------- JAX glue --------------------------------------
def _im2col(x, k=3, stride=2, pad=1):
    """x: [N, C, H, W] (NCHW) -> [N, Ho*Wo, C*k*k]."""
    N, C, H, W = x.shape
    xp = jnp.pad(x, ((0, 0), (0, 0), (pad, pad), (pad, pad)))
    Ho = (H + 2 * pad - k) // stride + 1
    Wo = (W + 2 * pad - k) // stride + 1
    taps = []
    for i in range(k):
        for j in range(k):
            taps.append(xp[:, :, i:i + stride * Ho:stride, j:j + stride * Wo:stride])
    p = jnp.stack(taps, axis=2)                      # [N, C, k*k, Ho, Wo]
    p = p.transpose(0, 3, 4, 1, 2)                   # [N, Ho, Wo, C, k*k]
    return p.reshape(N, Ho * Wo, C * k * k)


@functools.partial(jax.jit, static_argnums=(3, 4, 5))
def _forward_clip(w_slab, aux, x_stacked, num_classes, d_model, num_queries):
    """x_stacked: [F, B, C, H, W] -> (head [B, F*Q, DP], track [B, F*Q, DP])."""
    F, B, C, H, W = x_stacked.shape
    patches = _im2col(x_stacked.reshape(F * B, C, H, W))        # [F*B, T, C*9]
    T, ckk = patches.shape[1], patches.shape[2]
    patches = jnp.pad(patches, ((0, 0), (0, 0), (0, CKKP - ckk)))
    patches = (patches.reshape(F, B, T, CKKP)
               .transpose(1, 0, 2, 3)
               .reshape(B, F * T, CKKP)
               .astype(jnp.bfloat16))                           # [B, F*T, CKKP] bf16

    Q = num_queries
    kernel = _make_kernel(1.0 / math.sqrt(float(d_model)), num_classes,
                          F, T, Q, d_model)

    out_shape = (jax.ShapeDtypeStruct((B, F * Q, DP), jnp.float32),
                 jax.ShapeDtypeStruct((B, F * Q, DP), jnp.float32))

    head_out, trk_out = pl.pallas_call(
        kernel,
        out_shape=out_shape,
        grid=(B,),
        in_specs=[
            pl.BlockSpec((1, F * T, CKKP), lambda b: (b, 0, 0)),   # patches (per batch)
            pl.BlockSpec(w_slab.shape, lambda b: (0, 0)),          # bf16 weight slab
            pl.BlockSpec(aux.shape, lambda b: (0, 0)),             # f32 biases + queries
        ],
        out_specs=(
            pl.BlockSpec((1, F * Q, DP), lambda b: (b, 0, 0)),
            pl.BlockSpec((1, F * Q, DP), lambda b: (b, 0, 0)),
        ),
        compiler_params=pltpu.CompilerParams(
            dimension_semantics=("parallel",)),                    # B across TCs on v7x
    )(patches, w_slab, aux)
    return head_out, trk_out


class RTDETR_MOT_Pallas:
    """Eval-mode forward of RTDETR_MOT: per-frame backbone/encoder/decoder with
    track-query state carried between frames (carried inside the kernel)."""

    def __init__(self, in_ch=4, d_model=32, num_queries=8, num_classes=5,
                 d_ffn=64, seed=0):
        assert 3 * d_model <= DP and 2 * d_model <= DP
        assert d_ffn <= DP and num_classes + 4 <= DP
        assert in_ch * 9 <= CKKP
        self.num_queries = num_queries
        self.d_model = d_model
        self.num_classes = num_classes
        k = 3
        key = jax.random.PRNGKey(seed)
        ks = jax.random.split(key, 16)
        n = lambda kk, shape, s=0.05: (s * jax.random.normal(kk, shape)).astype(jnp.float32)

        # deterministic synthesized submodule weights
        wconv = n(ks[0], (in_ch * k * k, d_model))
        wq = n(ks[1], (d_model, d_model))
        wk = n(ks[2], (d_model, d_model))
        wv = n(ks[3], (d_model, d_model))
        wo = n(ks[4], (d_model, d_model))
        w1 = n(ks[5], (d_model, d_ffn))
        w2 = n(ks[6], (d_ffn, d_model))
        wq2 = n(ks[7], (d_model, d_model))
        wk2 = n(ks[8], (d_model, d_model))
        wv2 = n(ks[9], (d_model, d_model))
        wo2 = n(ks[10], (d_model, d_model))
        wc = n(ks[11], (d_model, num_classes))
        wb = n(ks[12], (d_model, 4))
        query_embed = jax.random.uniform(ks[13], (num_queries, d_model),
                                         dtype=jnp.float32)

        # single bf16 weight slab; padded regions are exactly zero (required so
        # the zero-padded activation lanes never leak into real outputs).
        dm, df, nc = d_model, d_ffn, num_classes
        slab = jnp.zeros((SLAB_ROWS, DP), jnp.float32)
        slab = slab.at[ROW_WCONV:ROW_WCONV + in_ch * k * k, 0:dm].set(wconv)
        slab = slab.at[ROW_WQKV:ROW_WQKV + dm, 0:dm].set(wq)
        slab = slab.at[ROW_WQKV:ROW_WQKV + dm, dm:2 * dm].set(wk)
        slab = slab.at[ROW_WQKV:ROW_WQKV + dm, 2 * dm:3 * dm].set(wv)
        slab = slab.at[ROW_WO:ROW_WO + dm, 0:dm].set(wo)
        slab = slab.at[ROW_W1:ROW_W1 + dm, 0:df].set(w1)
        slab = slab.at[ROW_W2:ROW_W2 + df, 0:dm].set(w2)
        slab = slab.at[ROW_WQ2:ROW_WQ2 + dm, 0:dm].set(wq2)
        slab = slab.at[ROW_WKV2:ROW_WKV2 + dm, 0:dm].set(wk2)
        slab = slab.at[ROW_WKV2:ROW_WKV2 + dm, dm:2 * dm].set(wv2)
        slab = slab.at[ROW_WO2:ROW_WO2 + dm, 0:dm].set(wo2)
        slab = slab.at[ROW_WH:ROW_WH + dm, 0:nc].set(wc)
        slab = slab.at[ROW_WH:ROW_WH + dm, nc:nc + 4].set(wb)
        self.w_slab = slab.astype(jnp.bfloat16)

        # f32 aux slab: row 0 conv bias (zero), row 1 head bias (zero),
        # rows 8.. object query embeddings (like nn.Embedding)
        aux_rows = 8 + ((num_queries + 7) // 8) * 8
        aux = jnp.zeros((aux_rows, DP), jnp.float32)
        aux = aux.at[8:8 + num_queries, 0:dm].set(query_embed)
        self.aux = aux

    def init_tracks(self):
        self.track_queries = None

    def __call__(self, x_frames):
        # eval-mode forward of RTDETR_MOT.forward (list of frames)
        # TODO(synk): training branch (criterion.match Hungarian loss) and
        # multi_scale random interpolation are training-only; not translated.
        self.init_tracks()
        x_stacked = jnp.stack(x_frames, axis=0)                 # [F, B, C, H, W]
        head_out, trk_out = _forward_clip(self.w_slab, self.aux, x_stacked,
                                          self.num_classes, self.d_model,
                                          self.num_queries)

        F = len(x_frames)
        B = x_frames[0].shape[0]
        Q, NC, DM = self.num_queries, self.num_classes, self.d_model
        head = head_out.reshape(B, F, Q, DP)
        trk = trk_out.reshape(B, F, Q, DP)

        outputs_2 = []
        for f in range(F):
            outputs_2.append({"pred_logits": head[:, f, :, 0:NC],
                              "pred_boxes": head[:, f, :, NC:NC + 4],
                              "track_queries": trk[:, f, :, 0:DM]})
        self.track_queries = {"track_queries": outputs_2[-1]["track_queries"]}
        return outputs_2


if __name__ == "__main__":
    key = jax.random.PRNGKey(0)
    num_frames, B, C, H, W = 3, 2, 4, 16, 16
    frame_keys = jax.random.split(key, num_frames)
    x_frames = [jax.random.normal(k, (B, C, H, W), dtype=jnp.float32)
                for k in frame_keys]

    model = RTDETR_MOT_Pallas(in_ch=C, d_model=32, num_queries=8, num_classes=5)
    outputs = model(x_frames)

    for o in outputs:
        jax.block_until_ready(o["pred_logits"])
        jax.block_until_ready(o["pred_boxes"])
        jax.block_until_ready(o["track_queries"])

    last = outputs[-1]
    assert last["pred_logits"].shape == (B, 8, 5)
    assert last["pred_boxes"].shape == (B, 8, 4)
    assert last["track_queries"].shape == (B, 8, 32)
    assert all(bool(jnp.all(jnp.isfinite(o["pred_boxes"]))) for o in outputs)
    print("KERNEL_OK")
</pallas_src>

<mosaic_0001>
module attributes {stable_mosaic.version = 11 : i64} {
  func.func @kernel(%arg0: i32, %arg1: memref<1x192x64xbf16, #tpu.memory_space<vmem>>, %arg2: memref<896x128xbf16, #tpu.memory_space<vmem>>, %arg3: memref<16x128xf32, #tpu.memory_space<vmem>>, %arg4: memref<1x24x128xf32, #tpu.memory_space<vmem>>, %arg5: memref<1x24x128xf32, #tpu.memory_space<vmem>>) attributes {dimension_semantics = [#tpu.dimension_semantics<parallel>], iteration_bounds = array<i64: 2>, scalar_prefetch = 0 : i64, scratch_operands = 0 : i64, tpu.core_type = #tpu.core_type<tc>, window_params = [{transform_indices = @transform_0, window_bounds = array<i64: 1, 192, 64>}, {pipeline_mode = #tpu.pipeline_mode<synchronous>, transform_indices = @transform_1, window_bounds = array<i64: 896, 128>}, {pipeline_mode = #tpu.pipeline_mode<synchronous>, transform_indices = @transform_2, window_bounds = array<i64: 16, 128>}, {transform_indices = @transform_3, window_bounds = array<i64: 1, 24, 128>}, {transform_indices = @transform_4, window_bounds = array<i64: 1, 24, 128>}]} {
    %c0 = arith.constant 0 : index
    %c0_0 = arith.constant 0 : index
    %0 = vector.load %arg2[%c0, %c0_0] : memref<896x128xbf16, #tpu.memory_space<vmem>>, vector<64x128xbf16>
    %c64 = arith.constant 64 : index
    %c0_1 = arith.constant 0 : index
    %1 = vector.load %arg2[%c64, %c0_1] : memref<896x128xbf16, #tpu.memory_space<vmem>>, vector<128x128xbf16>
    %c192 = arith.constant 192 : index
    %c0_2 = arith.constant 0 : index
    %2 = vector.load %arg2[%c192, %c0_2] : memref<896x128xbf16, #tpu.memory_space<vmem>>, vector<32x128xbf16>
    %c224 = arith.constant 224 : index
    %c0_3 = arith.constant 0 : index
    %3 = vector.load %arg2[%c224, %c0_3] : memref<896x128xbf16, #tpu.memory_space<vmem>>, vector<128x128xbf16>
    %c352 = arith.constant 352 : index
    %c0_4 = arith.constant 0 : index
    %4 = vector.load %arg2[%c352, %c0_4] : memref<896x128xbf16, #tpu.memory_space<vmem>>, vector<128x128xbf16>
    %c480 = arith.constant 480 : index
    %c0_5 = arith.constant 0 : index
    %5 = vector.load %arg2[%c480, %c0_5] : memref<896x128xbf16, #tpu.memory_space<vmem>>, vector<128x128xbf16>
    %c608 = arith.constant 608 : index
    %c0_6 = arith.constant 0 : index
    %6 = vector.load %arg2[%c608, %c0_6] : memref<896x128xbf16, #tpu.memory_space<vmem>>, vector<128x128xbf16>
    %c736 = arith.constant 736 : index
    %c0_7 = arith.constant 0 : index
    %7 = vector.load %arg2[%c736, %c0_7] : memref<896x128xbf16, #tpu.memory_space<vmem>>, vector<32x128xbf16>
    %c768 = arith.constant 768 : index
    %c0_8 = arith.constant 0 : index
    %8 = vector.load %arg2[%c768, %c0_8] : memref<896x128xbf16, #tpu.memory_space<vmem>>, vector<128x128xbf16>
    %c0_9 = arith.constant 0 : index
    %c0_10 = arith.constant 0 : index
    %9 = vector.load %arg3[%c0_9, %c0_10] : memref<16x128xf32, #tpu.memory_space<vmem>>, vector<1x128xf32>
    %c1 = arith.constant 1 : index
    %c0_11 = arith.constant 0 : index
    %10 = vector.load %arg3[%c1, %c0_11] : memref<16x128xf32, #tpu.memory_space<vmem>>, vector<1x128xf32>
    %c8 = arith.constant 8 : index
    %c0_12 = arith.constant 0 : index
    %11 = vector.load %arg3[%c8, %c0_12] : memref<16x128xf32, #tpu.memory_space<vmem>>, vector<8x128xf32>
    %c0_13 = arith.constant 0 : index
    %c0_14 = arith.constant 0 : index
    %c0_15 = arith.constant 0 : index
    %12 = vector.load %arg1[%c0_13, %c0_14, %c0_15] : memref<1x192x64xbf16, #tpu.memory_space<vmem>>, vector<1x192x64xbf16>
    %13 = vector.shape_cast %12 : vector<1x192x64xbf16> to vector<192x64xbf16>
    %cst = arith.constant dense<0.000000e+00> : vector<192x128xf32>
    %14 = tpu.matmul %13, %0, %cst {dimension_numbers = #tpu.dot_dimension_numbers<[1], [0], [0], [1], [0, 0, 1, 1], [], []>} : vector<192x64xbf16>, vector<64x128xbf16>, vector<192x128xf32> -> vector<192x128xf32>
    %15 = vector.broadcast %9 : vector<1x128xf32> to vector<192x128xf32>
    %16 = arith.addf %14, %15 : vector<192x128xf32>
    %cst_16 = arith.constant 0.000000e+00 : f32
    %17 = vector.broadcast %cst_16 : f32 to vector<192x128xf32>
    %18 = arith.maximumf %16, %17 : vector<192x128xf32>
    %19 = arith.truncf %18 : vector<192x128xf32> to vector<192x128xbf16>
    %cst_17 = arith.constant dense<0.000000e+00> : vector<192x128xf32>
    %20 = tpu.matmul %19, %1, %cst_17 {dimension_numbers = #tpu.dot_dimension_numbers<[1], [0], [0], [1], [0, 0, 1, 1], [], []>} : vector<192x128xbf16>, vector<128x128xbf16>, vector<192x128xf32> -> vector<192x128xf32>
    %21 = vector.extract_strided_slice %20 {offsets = [0, 0], sizes = [192, 32], strides = [1, 1]} : vector<192x128xf32> to vector<192x32xf32>
    %22 = vector.extract_strided_slice %20 {offsets = [0, 32], sizes = [192, 32], strides = [1, 1]} : vector<192x128xf32> to vector<192x32xf32>
    %23 = vector.extract_strided_slice %20 {offsets = [0, 64], sizes = [192, 32], strides = [1, 1]} : vector<192x128xf32> to vector<192x32xf32>
    %24 = vector.extract_strided_slice %21 {offsets = [0, 0], sizes = [64, 32], strides = [1, 1]} : vector<192x32xf32> to vector<64x32xf32>
    %25 = arith.truncf %24 : vector<64x32xf32> to vector<64x32xbf16>
    %26 = vector.extract_strided_slice %22 {offsets = [0, 0], sizes = [64, 32], strides = [1, 1]} : vector<192x32xf32> to vector<64x32xf32>
    %27 = arith.truncf %26 : vector<64x32xf32> to vector<64x32xbf16>
    %cst_18 = arith.constant dense<0.000000e+00> : vector<64x64xf32>
    %28 = tpu.matmul %25, %27, %cst_18 {dimension_numbers = #tpu.dot_dimension_numbers<[1], [1], [0], [0], [0, 0, 1, 0], [], []>} : vector<64x32xbf16>, vector<64x32xbf16>, vector<64x64xf32> -> vector<64x64xf32>
    %cst_19 = arith.constant 0.176776692 : f32
    %29 = vector.broadcast %cst_19 : f32 to vector<64x64xf32>
    %30 = arith.mulf %28, %29 : vector<64x64xf32>
    %cst_20 = arith.constant dense<0xFF800000> : vector<64xf32>
    %31 = vector.multi_reduction <maximumf>, %30, %cst_20 [1] : vector<64x64xf32> to vector<64xf32>
    %32 = vector.shape_cast %31 : vector<64xf32> to vector<64x1xf32>
    %33 = vector.broadcast %32 : vector<64x1xf32> to vector<64x64xf32>
    %34 = arith.subf %30, %33 : vector<64x64xf32>
    %35 = math.exp %34 : vector<64x64xf32>
    %cst_21 = arith.constant dense<0.000000e+00> : vector<64xf32>
    %36 = vector.multi_reduction <add>, %35, %cst_21 [1] : vector<64x64xf32> to vector<64xf32>
    %37 = vector.shape_cast %36 : vector<64xf32> to vector<64x1xf32>
    %38 = vector.broadcast %37 : vector<64x1xf32> to vector<64x64xf32>
    %39 = arith.divf %35, %38 : vector<64x64xf32>
    %40 = arith.truncf %39 : vector<64x64xf32> to vector<64x64xbf16>
    %41 = vector.extract_strided_slice %23 {offsets = [0, 0], sizes = [64, 32], strides = [1, 1]} : vector<192x32xf32> to vector<64x32xf32>
    %42 = arith.truncf %41 : vector<64x32xf32> to vector<64x32xbf16>
    %cst_22 = arith.constant dense<0.000000e+00> : vector<64x32xf32>
    %43 = tpu.matmul %40, %42, %cst_22 {dimension_numbers = #tpu.dot_dimension_numbers<[1], [0], [0], [1], [0, 0, 1, 1], [], []>} : vector<64x64xbf16>, vector<64x32xbf16>, vector<64x32xf32> -> vector<64x32xf32>
    %44 = vector.extract_strided_slice %21 {offsets = [64, 0], sizes = [64, 32], strides = [1, 1]} : vector<192x32xf32> to vector<64x32xf32>
    %45 = arith.truncf %44 : vector<64x32xf32> to vector<64x32xbf16>
    %46 = vector.extract_strided_slice %22 {offsets = [64, 0], sizes = [64, 32], strides = [1, 1]} : vector<192x32xf32> to vector<64x32xf32>
    %47 = arith.truncf %46 : vector<64x32xf32> to vector<64x32xbf16>
    %cst_23 = arith.constant dense<0.000000e+00> : vector<64x64xf32>
    %48 = tpu.matmul %45, %47, %cst_23 {dimension_numbers = #tpu.dot_dimension_numbers<[1], [1], [0], [0], [0, 0, 1, 0], [], []>} : vector<64x32xbf16>, vector<64x32xbf16>, vector<64x64xf32> -> vector<64x64xf32>
    %cst_24 = arith.constant 0.176776692 : f32
    %49 = vector.broadcast %cst_24 : f32 to vector<64x64xf32>
    %50 = arith.mulf %48, %49 : vector<64x64xf32>
    %cst_25 = arith.constant dense<0xFF800000> : vector<64xf32>
    %51 = vector.multi_reduction <maximumf>, %50, %cst_25 [1] : vector<64x64xf32> to vector<64xf32>
    %52 = vector.shape_cast %51 : vector<64xf32> to vector<64x1xf32>
    %53 = vector.broadcast %52 : vector<64x1xf32> to vector<64x64xf32>
    %54 = arith.subf %50, %53 : vector<64x64xf32>
    %55 = math.exp %54 : vector<64x64xf32>
    %cst_26 = arith.constant dense<0.000000e+00> : vector<64xf32>
    %56 = vector.multi_reduction <add>, %55, %cst_26 [1] : vector<64x64xf32> to vector<64xf32>
    %57 = vector.shape_cast %56 : vector<64xf32> to vector<64x1xf32>
    %58 = vector.broadcast %57 : vector<64x1xf32> to vector<64x64xf32>
    %59 = arith.divf %55, %58 : vector<64x64xf32>
    %60 = arith.truncf %59 : vector<64x64xf32> to vector<64x64xbf16>
    %61 = vector.extract_strided_slice %23 {offsets = [64, 0], sizes = [64, 32], strides = [1, 1]} : vector<192x32xf32> to vector<64x32xf32>
    %62 = arith.truncf %61 : vector<64x32xf32> to vector<64x32xbf16>
    %cst_27 = arith.constant dense<0.000000e+00> : vector<64x32xf32>
    %63 = tpu.matmul %60, %62, %cst_27 {dimension_numbers = #tpu.dot_dimension_numbers<[1], [0], [0], [1], [0, 0, 1, 1], [], []>} : vector<64x64xbf16>, vector<64x32xbf16>, vector<64x32xf32> -> vector<64x32xf32>
    %64 = vector.extract_strided_slice %21 {offsets = [128, 0], sizes = [64, 32], strides = [1, 1]} : vector<192x32xf32> to vector<64x32xf32>
    %65 = arith.truncf %64 : vector<64x32xf32> to vector<64x32xbf16>
    %66 = vector.extract_strided_slice %22 {offsets = [128, 0], sizes = [64, 32], strides = [1, 1]} : vector<192x32xf32> to vector<64x32xf32>
    %67 = arith.truncf %66 : vector<64x32xf32> to vector<64x32xbf16>
    %cst_28 = arith.constant dense<0.000000e+00> : vector<64x64xf32>
    %68 = tpu.matmul %65, %67, %cst_28 {dimension_numbers = #tpu.dot_dimension_numbers<[1], [1], [0], [0], [0, 0, 1, 0], [], []>} : vector<64x32xbf16>, vector<64x32xbf16>, vector<64x64xf32> -> vector<64x64xf32>
    %cst_29 = arith.constant 0.176776692 : f32
    %69 = vector.broadcast %cst_29 : f32 to vector<64x64xf32>
    %70 = arith.mulf %68, %69 : vector<64x64xf32>
    %cst_30 = arith.constant dense<0xFF800000> : vector<64xf32>
    %71 = vector.multi_reduction <maximumf>, %70, %cst_30 [1] : vector<64x64xf32> to vector<64xf32>
    %72 = vector.shape_cast %71 : vector<64xf32> to vector<64x1xf32>
    %73 = vector.broadcast %72 : vector<64x1xf32> to vector<64x64xf32>
    %74 = arith.subf %70, %73 : vector<64x64xf32>
    %75 = math.exp %74 : vector<64x64xf32>
    %cst_31 = arith.constant dense<0.000000e+00> : vector<64xf32>
    %76 = vector.multi_reduction <add>, %75, %cst_31 [1] : vector<64x64xf32> to vector<64xf32>
    %77 = vector.shape_cast %76 : vector<64xf32> to vector<64x1xf32>
    %78 = vector.broadcast %77 : vector<64x1xf32> to vector<64x64xf32>
    %79 = arith.divf %75, %78 : vector<64x64xf32>
    %80 = arith.truncf %79 : vector<64x64xf32> to vector<64x64xbf16>
    %81 = vector.extract_strided_slice %23 {offsets = [128, 0], sizes = [64, 32], strides = [1, 1]} : vector<192x32xf32> to vector<64x32xf32>
    %82 = arith.truncf %81 : vector<64x32xf32> to vector<64x32xbf16>
    %cst_32 = arith.constant dense<0.000000e+00> : vector<64x32xf32>
    %83 = tpu.matmul %80, %82, %cst_32 {dimension_numbers = #tpu.dot_dimension_numbers<[1], [0], [0], [1], [0, 0, 1, 1], [], []>} : vector<64x64xbf16>, vector<64x32xbf16>, vector<64x32xf32> -> vector<64x32xf32>
    %84 = tpu.concatenate %43, %63, %83 in 0 : vector<64x32xf32>, vector<64x32xf32>, vector<64x32xf32> -> vector<192x32xf32>
    %85 = arith.truncf %84 : vector<192x32xf32> to vector<192x32xbf16>
    %cst_33 = arith.constant dense<0.000000e+00> : vector<192x128xf32>
    %86 = tpu.matmul %85, %2, %cst_33 {dimension_numbers = #tpu.dot_dimension_numbers<[1], [0], [0], [1], [0, 0, 1, 1], [], []>} : vector<192x32xbf16>, vector<32x128xbf16>, vector<192x128xf32> -> vector<192x128xf32>
    %87 = arith.addf %18, %86 : vector<192x128xf32>
    %88 = arith.truncf %87 : vector<192x128xf32> to vector<192x128xbf16>
    %cst_34 = arith.constant dense<0.000000e+00> : vector<192x128xf32>
    %89 = tpu.matmul %88, %3, %cst_34 {dimension_numbers = #tpu.dot_dimension_numbers<[1], [0], [0], [1], [0, 0, 1, 1], [], []>} : vector<192x128xbf16>, vector<128x128xbf16>, vector<192x128xf32> -> vector<192x128xf32>
    %cst_35 = arith.constant 0.000000e+00 : f32
    %90 = vector.broadcast %cst_35 : f32 to vector<192x128xf32>
    %91 = arith.maximumf %89, %90 : vector<192x128xf32>
    %92 = arith.truncf %91 : vector<192x128xf32> to vector<192x128xbf16>
    %cst_36 = arith.constant dense<0.000000e+00> : vector<192x128xf32>
    %93 = tpu.matmul %92, %4, %cst_36 {dimension_numbers = #tpu.dot_dimension_numbers<[1], [0], [0], [1], [0, 0, 1, 1], [], []>} : vector<192x128xbf16>, vector<128x128xbf16>, vector<192x128xf32> -> vector<192x128xf32>
    %94 = arith.addf %87, %93 : vector<192x128xf32>
    %95 = arith.truncf %94 : vector<192x128xf32> to vector<192x128xbf16>
    %cst_37 = arith.constant dense<0.000000e+00> : vector<192x128xf32>
    %96 = tpu.matmul %95, %6, %cst_37 {dimension_numbers = #tpu.dot_dimension_numbers<[1], [0], [0], [1], [0, 0, 1, 1], [], []>} : vector<192x128xbf16>, vector<128x128xbf16>, vector<192x128xf32> -> vector<192x128xf32>
    %cst_38 = arith.constant 0.000000e+00 : f32
    %97 = vector.broadcast %cst_38 : f32 to vector<8x128xf32>
    %98 = arith.addf %11, %97 : vector<8x128xf32>
    %99 = arith.truncf %98 : vector<8x128xf32> to vector<8x128xbf16>
    %cst_39 = arith.constant dense<0.000000e+00> : vector<8x128xf32>
    %100 = tpu.matmul %99, %5, %cst_39 {dimension_numbers = #tpu.dot_dimension_numbers<[1], [0], [0], [1], [0, 0, 1, 1], [], []>} : vector<8x128xbf16>, vector<128x128xbf16>, vector<8x128xf32> -> vector<8x128xf32>
    %101 = vector.extract_strided_slice %96 {offsets = [0, 0], sizes = [64, 32], strides = [1, 1]} : vector<192x128xf32> to vector<64x32xf32>
    %102 = vector.extract_strided_slice %96 {offsets = [0, 32], sizes = [64, 32], strides = [1, 1]} : vector<192x128xf32> to vector<64x32xf32>
    %103 = vector.extract_strided_slice %100 {offsets = [0, 0], sizes = [8, 32], strides = [1, 1]} : vector<8x128xf32> to vector<8x32xf32>
    %104 = arith.truncf %103 : vector<8x32xf32> to vector<8x32xbf16>
    %105 = arith.truncf %101 : vector<64x32xf32> to vector<64x32xbf16>
    %cst_40 = arith.constant dense<0.000000e+00> : vector<8x64xf32>
    %106 = tpu.matmul %104, %105, %cst_40 {dimension_numbers = #tpu.dot_dimension_numbers<[1], [1], [0], [0], [0, 0, 1, 0], [], []>} : vector<8x32xbf16>, vector<64x32xbf16>, vector<8x64xf32> -> vector<8x64xf32>
    %cst_41 = arith.constant 0.176776692 : f32
    %107 = vector.broadcast %cst_41 : f32 to vector<8x64xf32>
    %108 = arith.mulf %106, %107 : vector<8x64xf32>
    %cst_42 = arith.constant dense<0xFF800000> : vector<8xf32>
    %109 = vector.multi_reduction <maximumf>, %108, %cst_42 [1] : vector<8x64xf32> to vector<8xf32>
    %110 = vector.shape_cast %109 : vector<8xf32> to vector<8x1xf32>
    %111 = vector.broadcast %110 : vector<8x1xf32> to vector<8x64xf32>
    %112 = arith.subf %108, %111 : vector<8x64xf32>
    %113 = math.exp %112 : vector<8x64xf32>
    %cst_43 = arith.constant dense<0.000000e+00> : vector<8xf32>
    %114 = vector.multi_reduction <add>, %113, %cst_43 [1] : vector<8x64xf32> to vector<8xf32>
    %115 = vector.shape_cast %114 : vector<8xf32> to vector<8x1xf32>
    %116 = vector.broadcast %115 : vector<8x1xf32> to vector<8x64xf32>
    %117 = arith.divf %113, %116 : vector<8x64xf32>
    %118 = arith.truncf %117 : vector<8x64xf32> to vector<8x64xbf16>
    %119 = arith.truncf %102 : vector<64x32xf32> to vector<64x32xbf16>
    %cst_44 = arith.constant dense<0.000000e+00> : vector<8x32xf32>
    %120 = tpu.matmul %118, %119, %cst_44 {dimension_numbers = #tpu.dot_dimension_numbers<[1], [0], [0], [1], [0, 0, 1, 1], [], []>} : vector<8x64xbf16>, vector<64x32xbf16>, vector<8x32xf32> -> vector<8x32xf32>
    %121 = arith.truncf %120 : vector<8x32xf32> to vector<8x32xbf16>
    %cst_45 = arith.constant dense<0.000000e+00> : vector<8x128xf32>
    %122 = tpu.matmul %121, %7, %cst_45 {dimension_numbers = #tpu.dot_dimension_numbers<[1], [0], [0], [1], [0, 0, 1, 1], [], []>} : vector<8x32xbf16>, vector<32x128xbf16>, vector<8x128xf32> -> vector<8x128xf32>
    %123 = arith.addf %98, %122 : vector<8x128xf32>
    %124 = arith.truncf %123 : vector<8x128xf32> to vector<8x128xbf16>
    %cst_46 = arith.constant dense<0.000000e+00> : vector<8x128xf32>
    %125 = tpu.matmul %124, %8, %cst_46 {dimension_numbers = #tpu.dot_dimension_numbers<[1], [0], [0], [1], [0, 0, 1, 1], [], []>} : vector<8x128xbf16>, vector<128x128xbf16>, vector<8x128xf32> -> vector<8x128xf32>
    %126 = vector.broadcast %10 : vector<1x128xf32> to vector<8x128xf32>
    %127 = arith.addf %125, %126 : vector<8x128xf32>
    %128 = tpu.iota {dimensions = array<i32: 1>} : vector<8x128xi32>
    %c5_i32 = arith.constant 5 : i32
    %129 = vector.broadcast %c5_i32 : i32 to vector<8x128xi32>
    %130 = arith.cmpi sge, %128, %129 : vector<8x128xi32>
    %c9_i32 = arith.constant 9 : i32
    %131 = vector.broadcast %c9_i32 : i32 to vector<8x128xi32>
    %132 = arith.cmpi slt, %128, %131 : vector<8x128xi32>
    %133 = arith.andi %130, %132 : vector<8x128xi1>
    %cst_47 = arith.constant 0.000000e+00 : f32
    %134 = vector.broadcast %cst_47 : f32 to vector<8x128xf32>
    %135 = arith.subf %134, %127 : vector<8x128xf32>
    %136 = math.exp %135 : vector<8x128xf32>
    %cst_48 = arith.constant 1.000000e+00 : f32
    %137 = vector.broadcast %cst_48 : f32 to vector<8x128xf32>
    %138 = arith.addf %137, %136 : vector<8x128xf32>
    %cst_49 = arith.constant 1.000000e+00 : f32
    %139 = vector.broadcast %cst_49 : f32 to vector<8x128xf32>
    %140 = arith.divf %139, %138 : vector<8x128xf32>
    %141 = arith.select %133, %140, %127 : vector<8x128xi1>, vector<8x128xf32>
    %c0_50 = arith.constant 0 : index
    %c0_51 = arith.constant 0 : index
    %c0_52 = arith.constant 0 : index
    %142 = vector.load %arg4[%c0_50, %c0_51, %c0_52] : memref<1x24x128xf32, #tpu.memory_space<vmem>>, vector<1x8x128xf32>
    %143 = vector.shape_cast %142 : vector<1x8x128xf32> to vector<8x128xf32>
    %144 = vector.shape_cast %141 : vector<8x128xf32> to vector<1x8x128xf32>
    tpu.vector_store %arg4[%c0_50, %c0_51, %c0_52], %144 {strides = array<i32>} : memref<1x24x128xf32, #tpu.memory_space<vmem>>, vector<1x8x128xf32>,
    %c0_53 = arith.constant 0 : index
    %c0_54 = arith.constant 0 : index
    %c0_55 = arith.constant 0 : index
    %145 = vector.load %arg5[%c0_53, %c0_54, %c0_55] : memref<1x24x128xf32, #tpu.memory_space<vmem>>, vector<1x8x128xf32>
    %146 = vector.shape_cast %145 : vector<1x8x128xf32> to vector<8x128xf32>
    %147 = vector.shape_cast %123 : vector<8x128xf32> to vector<1x8x128xf32>
    tpu.vector_store %arg5[%c0_53, %c0_54, %c0_55], %147 {strides = array<i32>} : memref<1x24x128xf32, #tpu.memory_space<vmem>>, vector<1x8x128xf32>,
    %148 = arith.addf %11, %123 : vector<8x128xf32>
    %149 = arith.truncf %148 : vector<8x128xf32> to vector<8x128xbf16>
    %cst_56 = arith.constant dense<0.000000e+00> : vector<8x128xf32>
    %150 = tpu.matmul %149, %5, %cst_56 {dimension_numbers = #tpu.dot_dimension_numbers<[1], [0], [0], [1], [0, 0, 1, 1], [], []>} : vector<8x128xbf16>, vector<128x128xbf16>, vector<8x128xf32> -> vector<8x128xf32>
    %151 = vector.extract_strided_slice %96 {offsets = [64, 0], sizes = [64, 32], strides = [1, 1]} : vector<192x128xf32> to vector<64x32xf32>
    %152 = vector.extract_strided_slice %96 {offsets = [64, 32], sizes = [64, 32], strides = [1, 1]} : vector<192x128xf32> to vector<64x32xf32>
    %153 = vector.extract_strided_slice %150 {offsets = [0, 0], sizes = [8, 32], strides = [1, 1]} : vector<8x128xf32> to vector<8x32xf32>
    %154 = arith.truncf %153 : vector<8x32xf32> to vector<8x32xbf16>
    %155 = arith.truncf %151 : vector<64x32xf32> to vector<64x32xbf16>
    %cst_57 = arith.constant dense<0.000000e+00> : vector<8x64xf32>
    %156 = tpu.matmul %154, %155, %cst_57 {dimension_numbers = #tpu.dot_dimension_numbers<[1], [1], [0], [0], [0, 0, 1, 0], [], []>} : vector<8x32xbf16>, vector<64x32xbf16>, vector<8x64xf32> -> vector<8x64xf32>
    %cst_58 = arith.constant 0.176776692 : f32
    %157 = vector.broadcast %cst_58 : f32 to vector<8x64xf32>
    %158 = arith.mulf %156, %157 : vector<8x64xf32>
    %cst_59 = arith.constant dense<0xFF800000> : vector<8xf32>
    %159 = vector.multi_reduction <maximumf>, %158, %cst_59 [1] : vector<8x64xf32> to vector<8xf32>
    %160 = vector.shape_cast %159 : vector<8xf32> to vector<8x1xf32>
    %161 = vector.broadcast %160 : vector<8x1xf32> to vector<8x64xf32>
    %162 = arith.subf %158, %161 : vector<8x64xf32>
    %163 = math.exp %162 : vector<8x64xf32>
    %cst_60 = arith.constant dense<0.000000e+00> : vector<8xf32>
    %164 = vector.multi_reduction <add>, %163, %cst_60 [1] : vector<8x64xf32> to vector<8xf32>
    %165 = vector.shape_cast %164 : vector<8xf32> to vector<8x1xf32>
    %166 = vector.broadcast %165 : vector<8x1xf32> to vector<8x64xf32>
    %167 = arith.divf %163, %166 : vector<8x64xf32>
    %168 = arith.truncf %167 : vector<8x64xf32> to vector<8x64xbf16>
    %169 = arith.truncf %152 : vector<64x32xf32> to vector<64x32xbf16>
    %cst_61 = arith.constant dense<0.000000e+00> : vector<8x32xf32>
    %170 = tpu.matmul %168, %169, %cst_61 {dimension_numbers = #tpu.dot_dimension_numbers<[1], [0], [0], [1], [0, 0, 1, 1], [], []>} : vector<8x64xbf16>, vector<64x32xbf16>, vector<8x32xf32> -> vector<8x32xf32>
    %171 = arith.truncf %170 : vector<8x32xf32> to vector<8x32xbf16>
    %cst_62 = arith.constant dense<0.000000e+00> : vector<8x128xf32>
    %172 = tpu.matmul %171, %7, %cst_62 {dimension_numbers = #tpu.dot_dimension_numbers<[1], [0], [0], [1], [0, 0, 1, 1], [], []>} : vector<8x32xbf16>, vector<32x128xbf16>, vector<8x128xf32> -> vector<8x128xf32>
    %173 = arith.addf %148, %172 : vector<8x128xf32>
    %174 = arith.truncf %173 : vector<8x128xf32> to vector<8x128xbf16>
    %cst_63 = arith.constant dense<0.000000e+00> : vector<8x128xf32>
    %175 = tpu.matmul %174, %8, %cst_63 {dimension_numbers = #tpu.dot_dimension_numbers<[1], [0], [0], [1], [0, 0, 1, 1], [], []>} : vector<8x128xbf16>, vector<128x128xbf16>, vector<8x128xf32> -> vector<8x128xf32>
    %176 = vector.broadcast %10 : vector<1x128xf32> to vector<8x128xf32>
    %177 = arith.addf %175, %176 : vector<8x128xf32>
    %178 = tpu.iota {dimensions = array<i32: 1>} : vector<8x128xi32>
    %c5_i32_64 = arith.constant 5 : i32
    %179 = vector.broadcast %c5_i32_64 : i32 to vector<8x128xi32>
    %180 = arith.cmpi sge, %178, %179 : vector<8x128xi32>
    %c9_i32_65 = arith.constant 9 : i32
    %181 = vector.broadcast %c9_i32_65 : i32 to vector<8x128xi32>
    %182 = arith.cmpi slt, %178, %181 : vector<8x128xi32>
    %183 = arith.andi %180, %182 : vector<8x128xi1>
    %cst_66 = arith.constant 0.000000e+00 : f32
    %184 = vector.broadcast %cst_66 : f32 to vector<8x128xf32>
    %185 = arith.subf %184, %177 : vector<8x128xf32>
    %186 = math.exp %185 : vector<8x128xf32>
    %cst_67 = arith.constant 1.000000e+00 : f32
    %187 = vector.broadcast %cst_67 : f32 to vector<8x128xf32>
    %188 = arith.addf %187, %186 : vector<8x128xf32>
    %cst_68 = arith.constant 1.000000e+00 : f32
    %189 = vector.broadcast %cst_68 : f32 to vector<8x128xf32>
    %190 = arith.divf %189, %188 : vector<8x128xf32>
    %191 = arith.select %183, %190, %177 : vector<8x128xi1>, vector<8x128xf32>
    %c0_69 = arith.constant 0 : index
    %c8_70 = arith.constant 8 : index
    %c0_71 = arith.constant 0 : index
    %192 = vector.load %arg4[%c0_69, %c8_70, %c0_71] : memref<1x24x128xf32, #tpu.memory_space<vmem>>, vector<1x8x128xf32>
    %193 = vector.shape_cast %192 : vector<1x8x128xf32> to vector<8x128xf32>
    %194 = vector.shape_cast %191 : vector<8x128xf32> to vector<1x8x128xf32>
    tpu.vector_store %arg4[%c0_69, %c8_70, %c0_71], %194 {strides = array<i32>} : memref<1x24x128xf32, #tpu.memory_space<vmem>>, vector<1x8x128xf32>,
    %c0_72 = arith.constant 0 : index
    %c8_73 = arith.constant 8 : index
    %c0_74 = arith.constant 0 : index
    %195 = vector.load %arg5[%c0_72, %c8_73, %c0_74] : memref<1x24x128xf32, #tpu.memory_space<vmem>>, vector<1x8x128xf32>
    %196 = vector.shape_cast %195 : vector<1x8x128xf32> to vector<8x128xf32>
    %197 = vector.shape_cast %173 : vector<8x128xf32> to vector<1x8x128xf32>
    tpu.vector_store %arg5[%c0_72, %c8_73, %c0_74], %197 {strides = array<i32>} : memref<1x24x128xf32, #tpu.memory_space<vmem>>, vector<1x8x128xf32>,
    %198 = arith.addf %11, %173 : vector<8x128xf32>
    %199 = arith.truncf %198 : vector<8x128xf32> to vector<8x128xbf16>
    %cst_75 = arith.constant dense<0.000000e+00> : vector<8x128xf32>
    %200 = tpu.matmul %199, %5, %cst_75 {dimension_numbers = #tpu.dot_dimension_numbers<[1], [0], [0], [1], [0, 0, 1, 1], [], []>} : vector<8x128xbf16>, vector<128x128xbf16>, vector<8x128xf32> -> vector<8x128xf32>
    %201 = vector.extract_strided_slice %96 {offsets = [128, 0], sizes = [64, 32], strides = [1, 1]} : vector<192x128xf32> to vector<64x32xf32>
    %202 = vector.extract_strided_slice %96 {offsets = [128, 32], sizes = [64, 32], strides = [1, 1]} : vector<192x128xf32> to vector<64x32xf32>
    %203 = vector.extract_strided_slice %200 {offsets = [0, 0], sizes = [8, 32], strides = [1, 1]} : vector<8x128xf32> to vector<8x32xf32>
    %204 = arith.truncf %203 : vector<8x32xf32> to vector<8x32xbf16>
    %205 = arith.truncf %201 : vector<64x32xf32> to vector<64x32xbf16>
    %cst_76 = arith.constant dense<0.000000e+00> : vector<8x64xf32>
    %206 = tpu.matmul %204, %205, %cst_76 {dimension_numbers = #tpu.dot_dimension_numbers<[1], [1], [0], [0], [0, 0, 1, 0], [], []>} : vector<8x32xbf16>, vector<64x32xbf16>, vector<8x64xf32> -> vector<8x64xf32>
    %cst_77 = arith.constant 0.176776692 : f32
    %207 = vector.broadcast %cst_77 : f32 to vector<8x64xf32>
    %208 = arith.mulf %206, %207 : vector<8x64xf32>
    %cst_78 = arith.constant dense<0xFF800000> : vector<8xf32>
    %209 = vector.multi_reduction <maximumf>, %208, %cst_78 [1] : vector<8x64xf32> to vector<8xf32>
    %210 = vector.shape_cast %209 : vector<8xf32> to vector<8x1xf32>
    %211 = vector.broadcast %210 : vector<8x1xf32> to vector<8x64xf32>
    %212 = arith.subf %208, %211 : vector<8x64xf32>
    %213 = math.exp %212 : vector<8x64xf32>
    %cst_79 = arith.constant dense<0.000000e+00> : vector<8xf32>
    %214 = vector.multi_reduction <add>, %213, %cst_79 [1] : vector<8x64xf32> to vector<8xf32>
    %215 = vector.shape_cast %214 : vector<8xf32> to vector<8x1xf32>
    %216 = vector.broadcast %215 : vector<8x1xf32> to vector<8x64xf32>
    %217 = arith.divf %213, %216 : vector<8x64xf32>
    %218 = arith.truncf %217 : vector<8x64xf32> to vector<8x64xbf16>
    %219 = arith.truncf %202 : vector<64x32xf32> to vector<64x32xbf16>
    %cst_80 = arith.constant dense<0.000000e+00> : vector<8x32xf32>
    %220 = tpu.matmul %218, %219, %cst_80 {dimension_numbers = #tpu.dot_dimension_numbers<[1], [0], [0], [1], [0, 0, 1, 1], [], []>} : vector<8x64xbf16>, vector<64x32xbf16>, vector<8x32xf32> -> vector<8x32xf32>
    %221 = arith.truncf %220 : vector<8x32xf32> to vector<8x32xbf16>
    %cst_81 = arith.constant dense<0.000000e+00> : vector<8x128xf32>
    %222 = tpu.matmul %221, %7, %cst_81 {dimension_numbers = #tpu.dot_dimension_numbers<[1], [0], [0], [1], [0, 0, 1, 1], [], []>} : vector<8x32xbf16>, vector<32x128xbf16>, vector<8x128xf32> -> vector<8x128xf32>
    %223 = arith.addf %198, %222 : vector<8x128xf32>
    %224 = arith.truncf %223 : vector<8x128xf32> to vector<8x128xbf16>
    %cst_82 = arith.constant dense<0.000000e+00> : vector<8x128xf32>
    %225 = tpu.matmul %224, %8, %cst_82 {dimension_numbers = #tpu.dot_dimension_numbers<[1], [0], [0], [1], [0, 0, 1, 1], [], []>} : vector<8x128xbf16>, vector<128x128xbf16>, vector<8x128xf32> -> vector<8x128xf32>
    %226 = vector.broadcast %10 : vector<1x128xf32> to vector<8x128xf32>
    %227 = arith.addf %225, %226 : vector<8x128xf32>
    %228 = tpu.iota {dimensions = array<i32: 1>} : vector<8x128xi32>
    %c5_i32_83 = arith.constant 5 : i32
    %229 = vector.broadcast %c5_i32_83 : i32 to vector<8x128xi32>
    %230 = arith.cmpi sge, %228, %229 : vector<8x128xi32>
    %c9_i32_84 = arith.constant 9 : i32
    %231 = vector.broadcast %c9_i32_84 : i32 to vector<8x128xi32>
    %232 = arith.cmpi slt, %228, %231 : vector<8x128xi32>
    %233 = arith.andi %230, %232 : vector<8x128xi1>
    %cst_85 = arith.constant 0.000000e+00 : f32
    %234 = vector.broadcast %cst_85 : f32 to vector<8x128xf32>
    %235 = arith.subf %234, %227 : vector<8x128xf32>
    %236 = math.exp %235 : vector<8x128xf32>
    %cst_86 = arith.constant 1.000000e+00 : f32
    %237 = vector.broadcast %cst_86 : f32 to vector<8x128xf32>
    %238 = arith.addf %237, %236 : vector<8x128xf32>
    %cst_87 = arith.constant 1.000000e+00 : f32
    %239 = vector.broadcast %cst_87 : f32 to vector<8x128xf32>
    %240 = arith.divf %239, %238 : vector<8x128xf32>
    %241 = arith.select %233, %240, %227 : vector<8x128xi1>, vector<8x128xf32>
    %c0_88 = arith.constant 0 : index
    %c16 = arith.constant 16 : index
    %c0_89 = arith.constant 0 : index
    %242 = vector.load %arg4[%c0_88, %c16, %c0_89] : memref<1x24x128xf32, #tpu.memory_space<vmem>>, vector<1x8x128xf32>
    %243 = vector.shape_cast %242 : vector<1x8x128xf32> to vector<8x128xf32>
    %244 = vector.shape_cast %241 : vector<8x128xf32> to vector<1x8x128xf32>
    tpu.vector_store %arg4[%c0_88, %c16, %c0_89], %244 {strides = array<i32>} : memref<1x24x128xf32, #tpu.memory_space<vmem>>, vector<1x8x128xf32>,
    %c0_90 = arith.constant 0 : index
    %c16_91 = arith.constant 16 : index
    %c0_92 = arith.constant 0 : index
    %245 = vector.load %arg5[%c0_90, %c16_91, %c0_92] : memref<1x24x128xf32, #tpu.memory_space<vmem>>, vector<1x8x128xf32>
    %246 = vector.shape_cast %245 : vector<1x8x128xf32> to vector<8x128xf32>
    %247 = vector.shape_cast %223 : vector<8x128xf32> to vector<1x8x128xf32>
    tpu.vector_store %arg5[%c0_90, %c16_91, %c0_92], %247 {strides = array<i32>} : memref<1x24x128xf32, #tpu.memory_space<vmem>>, vector<1x8x128xf32>,
    return
  }
  func.func @transform_0(%arg0: i32) -> (i32, i32, i32) {
    %c0_i32 = arith.constant 0 : i32
    %c0_i32_0 = arith.constant 0 : i32
    %c0_i32_1 = arith.constant 0 : i32
    return %arg0, %c0_i32, %c0_i32_0 : i32, i32, i32
  }
  func.func @transform_1(%arg0: i32) -> (i32, i32) {
    %c0_i32 = arith.constant 0 : i32
    %c0_i32_0 = arith.constant 0 : i32
    %c0_i32_1 = arith.constant 0 : i32
    return %c0_i32, %c0_i32_0 : i32, i32
  }
  func.func @transform_2(%arg0: i32) -> (i32, i32) {
    %c0_i32 = arith.constant 0 : i32
    %c0_i32_0 = arith.constant 0 : i32
    %c0_i32_1 = arith.constant 0 : i32
    return %c0_i32, %c0_i32_0 : i32, i32
  }
  func.func @transform_3(%arg0: i32) -> (i32, i32, i32) {
    %c0_i32 = arith.constant 0 : i32
    %c0_i32_0 = arith.constant 0 : i32
    %c0_i32_1 = arith.constant 0 : i32
    return %arg0, %c0_i32, %c0_i32_0 : i32, i32, i32
  }
  func.func @transform_4(%arg0: i32) -> (i32, i32, i32) {
    %c0_i32 = arith.constant 0 : i32
    %c0_i32_0 = arith.constant 0 : i32
    %c0_i32_1 = arith.constant 0 : i32
    return %arg0, %c0_i32, %c0_i32_0 : i32, i32, i32
  }
}

</mosaic_0001>

<llo_original>
// kernel: _forward_clip.1
$region0: #{_forward_clip.1}
  #allocation0 [shape = 'u32[]', space=smem, size = 0x4, offset = 0x4, fixed_abs, tag = 'smem constant byte address 0x4 - core index']
  #allocation1 [shape = 'u32[144,128]{1,0:T(1,128)}', space=vmem, size = 0x12000, scoped, tag = 'internal scratch']
  %s0 = inlined_call_operand.vmem [shape: bf16[2,192,64], index: 0, kind: input, shape index: {}]
  %s1 = inlined_call_operand.vmem [shape: bf16[896,128], index: 1, kind: input, shape index: {}]
  %s2 = inlined_call_operand.vmem [shape: f32[16,128], index: 2, kind: input, shape index: {}]
  %s3 = inlined_call_operand.hbm [shape: f32[2,24,128], index: 3, kind: output, shape index: {0}]
  %s4 = inlined_call_operand.hbm [shape: f32[2,24,128], index: 4, kind: output, shape index: {1}]
  %5 = xla_tuple %s3, %s4
  %s6 = sld [smem:[#allocation0]]
  $region53: #{_forward_clip.1} parent=0
    _
  %s8 = ssub.s32 1, %s6
  %s9 = scalar_select 0, %s8, %s6
  $region1: #{_forward_clip.1} parent=0
    #allocation2 [shape = 'u8[24576]{0}', space=vmem, size = 0x6000, scoped, tag = 'output window, operand 0']
    #allocation3 [shape = 's32[2]{0}', space=sflag, size = 0x8, scoped, tag = 'scoped memory for _forward_clip.1']
    #allocation4 [shape = 'u8[24576]{0}', space=vmem, size = 0x6000, scoped, tag = 'output window, operand 1']
    #allocation5 [shape = 's32[2]{0}', space=sflag, size = 0x8, scoped, tag = 'scoped memory for _forward_clip.1']
    %10 = vsyncpa [#allocation3], 0
    %s11 = scalar_lea.sflag [#allocation3], 1
    %12 = vsyncpa %s11, 0
    %13 = vsyncpa [#allocation5], 0
    %s14 = scalar_lea.sflag [#allocation5], 1
    %15 = vsyncpa %s14, 0
    loop: start=0, step=1, limit=4
    $region2: #{_forward_clip.1} parent=1 // loop_pre_header
      _
    $region3: #{_forward_clip.1} parent=1 // loop_header
      %s17 = sphi 0, %s21
      %p18 = scmp.ge.s32.totalorder %s17, 4
      %s27 = sphi 0, %s29
      %s30 = sphi 0, %s27
      %s31 = sphi 0, %s30
      %s47 = sphi 0, %s31
      %s51 = sphi 0, %s51
      %s53 = sphi 0, %s51
      %s54 = sphi 0, %s53
      %s68 = sphi 0, %s54
      %s72 = sphi 0, %s72
      %s74 = sphi 0, %s72
      %s75 = sphi 0, %s74
      %s89 = sphi 0, %s75
      %s95 = sphi 0, %s97
      %s98 = sphi 0, %s95
      %s99 = sphi 0, %s98
      %s115 = sphi 0, %s99
      %s121 = sphi 0, %s123
      %s124 = sphi 0, %s121
      %s125 = sphi 0, %s124
      %s141 = sphi 0, %s125
    $region4: #{_forward_clip.1} parent=1 // loop_header_branch
      %20 = sbr.rel (%p18) target = $region8
    $region5: #{_forward_clip.1} parent=1 // loop_body
      %s22 = ssub.s32 %s17, 1
      %s23 = ssub.s32 %s17, 2
      %s24 = sadd.s32 %s17, 1
      %s25 = ssub.s32 %s17, %s24
      %p26 = scmp.eq.s32.totalorder %s25, 0
      %s28 = sadd.s32 %s27, 1
      %s29 = scalar_select %p26, %s27, %s28
      %p32 = pneg %p26
      %p33 = scmp.eq.s32.totalorder %s17, 1
      %p34 = por %p32, %p33
      %p35 = scmp.ne.s32.totalorder %s27, %s30
      %p36 = scmp.eq.s32.totalorder %s17, 0
      %p37 = por %p35, %p36
      %p38 = scmp.ne.s32.totalorder %s27, %s30
      %p39 = scmp.eq.s32.totalorder %s22, 1
      %p40 = por %p38, %p39
      %p41 = scmp.ne.s32.totalorder %s30, %s31
      %p42 = scmp.eq.s32.totalorder %s22, 0
      %p43 = por %p41, %p42
      %p44 = scmp.ne.s32.totalorder %s30, %s31
      %p45 = scmp.eq.s32.totalorder %s23, 1
      %p46 = por %p44, %p45
      %p48 = scmp.ne.s32.totalorder %s31, %s47
      %p49 = scmp.eq.s32.totalorder %s23, 0
      %p50 = por %p48, %p49
      %s52 = sadd.s32 %s51, 1
      %p55 = scmp.eq.s32.totalorder %s17, 1
      %p56 = scmp.ne.s32.totalorder %s51, %s53
      %p57 = scmp.eq.s32.totalorder %s17, 0
      %p58 = por %p56, %p57
      %p59 = scmp.ne.s32.totalorder %s51, %s53
      %p60 = scmp.eq.s32.totalorder %s22, 1
      %p61 = por %p59, %p60
      %p62 = scmp.ne.s32.totalorder %s53, %s54
      %p63 = scmp.eq.s32.totalorder %s22, 0
      %p64 = por %p62, %p63
      %p65 = scmp.ne.s32.totalorder %s53, %s54
      %p66 = scmp.eq.s32.totalorder %s23, 1
      %p67 = por %p65, %p66
      %p69 = scmp.ne.s32.totalorder %s54, %s68
      %p70 = scmp.eq.s32.totalorder %s23, 0
      %p71 = por %p69, %p70
      %s73 = sadd.s32 %s72, 1
      %p76 = scmp.eq.s32.totalorder %s17, 1
      %p77 = scmp.ne.s32.totalorder %s72, %s74
      %p78 = scmp.eq.s32.totalorder %s17, 0
      %p79 = por %p77, %p78
      %p80 = scmp.ne.s32.totalorder %s72, %s74
      %p81 = scmp.eq.s32.totalorder %s22, 1
      %p82 = por %p80, %p81
      %p83 = scmp.ne.s32.totalorder %s74, %s75
      %p84 = scmp.eq.s32.totalorder %s22, 0
      %p85 = por %p83, %p84
      %p86 = scmp.ne.s32.totalorder %s74, %s75
      %p87 = scmp.eq.s32.totalorder %s23, 1
      %p88 = por %p86, %p87
      %p90 = scmp.ne.s32.totalorder %s75, %s89
      %p91 = scmp.eq.s32.totalorder %s23, 0
      %p92 = por %p90, %p91
      %s93 = ssub.s32 %s17, %s24
      %p94 = scmp.eq.s32.totalorder %s93, 0
      %s96 = sadd.s32 %s95, 1
      %s97 = scalar_select %p94, %s95, %s96
      %p100 = pneg %p94
      %p101 = scmp.eq.s32.totalorder %s17, 1
      %p102 = por %p100, %p101
      %p103 = scmp.ne.s32.totalorder %s95, %s98
      %p104 = scmp.eq.s32.totalorder %s17, 0
      %p105 = por %p103, %p104
      %p106 = scmp.ne.s32.totalorder %s95, %s98
      %p107 = scmp.eq.s32.totalorder %s22, 1
      %p108 = por %p106, %p107
      %p109 = scmp.ne.s32.totalorder %s98, %s99
      %p110 = scmp.eq.s32.totalorder %s22, 0
      %p111 = por %p109, %p110
      %p112 = scmp.ne.s32.totalorder %s98, %s99
      %p113 = scmp.eq.s32.totalorder %s23, 1
      %p114 = por %p112, %p113
      %p116 = scmp.ne.s32.totalorder %s99, %s115
      %p117 = scmp.eq.s32.totalorder %s23, 0
      %p118 = por %p116, %p117
      %s119 = ssub.s32 %s17, %s24
      %p120 = scmp.eq.s32.totalorder %s119, 0
      %s122 = sadd.s32 %s121, 1
      %s123 = scalar_select %p120, %s121, %s122
      %p126 = pneg %p120
      %p127 = scmp.eq.s32.totalorder %s17, 1
      %p128 = por %p126, %p127
      %p129 = scmp.ne.s32.totalorder %s121, %s124
      %p130 = scmp.eq.s32.totalorder %s17, 0
      %p131 = por %p129, %p130
      %p132 = scmp.ne.s32.totalorder %s121, %s124
      %p133 = scmp.eq.s32.totalorder %s22, 1
      %p134 = por %p132, %p133
      %p135 = scmp.ne.s32.totalorder %s124, %s125
      %p136 = scmp.eq.s32.totalorder %s22, 0
      %p137 = por %p135, %p136
      %p138 = scmp.ne.s32.totalorder %s124, %s125
      %p139 = scmp.eq.s32.totalorder %s23, 1
      %p140 = por %p138, %p139
      %p142 = scmp.ne.s32.totalorder %s125, %s141
      %p143 = scmp.eq.s32.totalorder %s23, 0
      %p144 = por %p142, %p143
      %p145 = scmp.le.s32.totalorder 1, %s17
      %p146 = scmp.lt.s32.totalorder %s17, 3
      %p147 = pnand %p145, %p146
      %p148 = pneg %p147
      // Predicated region
      $region9: #{_forward_clip.1} parent=5 // pred_check
        _
      $region10: #{_forward_clip.1} parent=5 // pred_check_branch
        %150 = sbr.rel (%p147) target = $region12
      $region11: #{_forward_clip.1} parent=5 // pred_region
        %s151 = ssub.s32 %s17, 1
        // Predicated region
        $region13: #{_forward_clip.1} parent=11 // pred_check
          %p152 = pneg %p64
        $region14: #{_forward_clip.1} parent=11 // pred_check_branch
          %154 = sbr.rel (%p152) target = $region16
        $region15: #{_forward_clip.1} parent=11 // pred_region
          _
        $region16: #{_forward_clip.1} parent=11 // pred_fallthru
          _
        // Predicated region
        $region17: #{_forward_clip.1} parent=11 // pred_check
          %p155 = pneg %p85
        $region18: #{_forward_clip.1} parent=11 // pred_check_branch
          %157 = sbr.rel (%p155) target = $region20
        $region19: #{_forward_clip.1} parent=11 // pred_region
          _
        $region20: #{_forward_clip.1} parent=11 // pred_fallthru
          _
      $region12: #{_forward_clip.1} parent=5 // pred_fallthru
        _
      %p158 = scmp.lt.s32.totalorder %s17, 2
      // Predicated region
      $region21: #{_forward_clip.1} parent=5 // pred_check
        %p159 = pneg %p158
      $region22: #{_forward_clip.1} parent=5 // pred_check_branch
        %161 = sbr.rel (%p159) target = $region24
      $region23: #{_forward_clip.1} parent=5 // pred_region
        // Predicated region
        $region25: #{_forward_clip.1} parent=23 // pred_check
          %p162 = pneg %p37
        $region26: #{_forward_clip.1} parent=23 // pred_check_branch
          %164 = sbr.rel (%p162) target = $region28
        $region27: #{_forward_clip.1} parent=23 // pred_region
          %p165 = scmp.lt.s32.totalorder %s17, 1
          %s166 = scalar_select %p165, %s17, 1
          %s167 = smul.addr %s166, 24
          %s168 = smul.addr %s167, 4
          %s169 = scalar_lea.vmem %s0, %s168
        $region28: #{_forward_clip.1} parent=23 // pred_fallthru
          _
      $region24: #{_forward_clip.1} parent=5 // pred_fallthru
        _
      %p170 = scmp.le.s32.totalorder 1, %s17
      %p171 = scmp.lt.s32.totalorder %s17, 3
      %p172 = pnand %p170, %p171
      %p173 = pneg %p172
      // Predicated region
      $region29: #{_forward_clip.1} parent=5 // pred_check
        _
      $region30: #{_forward_clip.1} parent=5 // pred_check_branch
        %175 = sbr.rel (%p172) target = $region32
      $region31: #{_forward_clip.1} parent=5 // pred_region
        %s176 = ssub.s32 %s17, 1
        %p177 = scmp.lt.s32.totalorder %s22, 1
        %s178 = scalar_select %p177, %s22, 1
        %s179 = smul.addr %s178, 24
        %s180 = smul.addr %s179, 4
        %s181 = scalar_lea.vmem %s0, %s180
        %p182 = pneg %p43
        %p183 = pneg %p40
        %p184 = pneg %p64
        %p185 = pneg %p61
        %p186 = pneg %p85
        %p187 = pneg %p82
        %p188 = pneg %p111
        %p189 = pneg %p108
        %s190 = sand.u32 %s98, 1
        %s191 = scalar_lea.sflag [#allocation3], %s190
        %s192 = sand.u32 %s98, 1
        %s193 = smul.addr %s192, 24
        %s194 = scalar_lea.vmem [#allocation2], %s193
        %p195 = pneg %p137
        %p196 = pneg %p134
        %s197 = sand.u32 %s124, 1
        %s198 = scalar_lea.sflag [#allocation5], %s197
        %s199 = sand.u32 %s124, 1
        %s200 = smul.addr %s199, 24
        %s201 = scalar_lea.vmem [#allocation4], %s200
        %p202 = scmp.lt.s32.totalorder %s22, 1
        %s203 = scalar_select %p202, %s22, 1
        %s204 = smul.addr %s203, 24
        %s205 = smul.addr %s204, 4
        %s206 = scalar_lea.vmem %s0, %s205
        %v208 = vld [vmem:[%s1] sm:$0xf]
        %v209 = vld [vmem:[%s1 + $0x4] sm:$0xf]
        %v210 = vld [vmem:[%s1 + $0x8] sm:$0xf]
        %v211 = vld [vmem:[%s1 + $0xc] sm:$0xf]
        %v212 = vld [vmem:[%s1 + $0x10] sm:$0xf]
        %v213 = vld [vmem:[%s1 + $0x14] sm:$0xf]
        %v214 = vld [vmem:[%s1 + $0x18] sm:$0xf]
        %v215 = vld [vmem:[%s1 + $0x1c] sm:$0xf]
        %v216 = vld [vmem:[%s1 + $0x20] sm:$0xf]
        %v217 = vld [vmem:[%s1 + $0x24] sm:$0xf]
        %v218 = vld [vmem:[%s1 + $0x28] sm:$0xf]
        %v219 = vld [vmem:[%s1 + $0x2c] sm:$0xf]
        %v220 = vld [vmem:[%s1 + $0x30] sm:$0xf]
        %v221 = vld [vmem:[%s1 + $0x34] sm:$0xf]
        %v222 = vld [vmem:[%s1 + $0x38] sm:$0xf]
        %v223 = vld [vmem:[%s1 + $0x3c] sm:$0xf]
        %v224 = vld [vmem:[%s1 + $0x40] sm:$0xf]
        %v225 = vld [vmem:[%s1 + $0x44] sm:$0xf]
        %v226 = vld [vmem:[%s1 + $0x48] sm:$0xf]
        %v227 = vld [vmem:[%s1 + $0x4c] sm:$0xf]
        %v228 = vld [vmem:[%s1 + $0x50] sm:$0xf]
        %v229 = vld [vmem:[%s1 + $0x54] sm:$0xf]
        %v230 = vld [vmem:[%s1 + $0x58] sm:$0xf]
        %v231 = vld [vmem:[%s1 + $0x5c] sm:$0xf]
        %v232 = vld [vmem:[%s1 + $0x60] sm:$0xf]
        %v233 = vld [vmem:[%s1 + $0x64] sm:$0xf]
        %v234 = vld [vmem:[%s1 + $0x68] sm:$0xf]
        %v235 = vld [vmem:[%s1 + $0x6c] sm:$0xf]
        %v236 = vld [vmem:[%s1 + $0x70] sm:$0xf]
        %v237 = vld [vmem:[%s1 + $0x74] sm:$0xf]
        %v238 = vld [vmem:[%s1 + $0x78] sm:$0xf]
        %v239 = vld [vmem:[%s1 + $0x7c] sm:$0xf]
        %v240 = vld [vmem:[%s1 + $0x80] sm:$0xf]
        %v241 = vld [vmem:[%s1 + $0x84] sm:$0xf]
        %v242 = vld [vmem:[%s1 + $0x88] sm:$0xf]
        %v243 = vld [vmem:[%s1 + $0x8c] sm:$0xf]
        %v244 = vld [vmem:[%s1 + $0x90] sm:$0xf]
        %v245 = vld [vmem:[%s1 + $0x94] sm:$0xf]
        %v246 = vld [vmem:[%s1 + $0x98] sm:$0xf]
        %v247 = vld [vmem:[%s1 + $0x9c] sm:$0xf]
        %v248 = vld [vmem:[%s1 + $0xa0] sm:$0xf]
        %v249 = vld [vmem:[%s1 + $0xa4] sm:$0xf]
        %v250 = vld [vmem:[%s1 + $0xa8] sm:$0xf]
        %v251 = vld [vmem:[%s1 + $0xac] sm:$0xf]
        %v252 = vld [vmem:[%s1 + $0xb0] sm:$0xf]
        %v253 = vld [vmem:[%s1 + $0xb4] sm:$0xf]
        %v254 = vld [vmem:[%s1 + $0xb8] sm:$0xf]
        %v255 = vld [vmem:[%s1 + $0xbc] sm:$0xf]
        %v256 = vld [vmem:[%s1 + $0xc0] sm:$0xf]
        %v257 = vld [vmem:[%s1 + $0xc4] sm:$0xf]
        %v258 = vld [vmem:[%s1 + $0xc8] sm:$0xf]
        %v259 = vld [vmem:[%s1 + $0xcc] sm:$0xf]
        %v260 = vld [vmem:[%s1 + $0xd0] sm:$0xf]
        %v261 = vld [vmem:[%s1 + $0xd4] sm:$0xf]
        %v262 = vld [vmem:[%s1 + $0xd8] sm:$0xf]
        %v263 = vld [vmem:[%s1 + $0xdc] sm:$0xf]
        %v264 = vld [vmem:[%s1 + $0xe0] sm:$0xf]
        %v265 = vld [vmem:[%s1 + $0xe4] sm:$0xf]
        %v266 = vld [vmem:[%s1 + $0xe8] sm:$0xf]
        %v267 = vld [vmem:[%s1 + $0xec] sm:$0xf]
        %v268 = vld [vmem:[%s1 + $0xf0] sm:$0xf]
        %v269 = vld [vmem:[%s1 + $0xf4] sm:$0xf]
        %v270 = vld [vmem:[%s1 + $0xf8] sm:$0xf]
        %v271 = vld [vmem:[%s1 + $0xfc] sm:$0xf]
        %v272 = vld [vmem:[%s1 + $0x100] sm:$0xf]
        %v273 = vld [vmem:[%s1 + $0x104] sm:$0xf]
        %v274 = vld [vmem:[%s1 + $0x108] sm:$0xf]
        %v275 = vld [vmem:[%s1 + $0x10c] sm:$0xf]
        %v276 = vld [vmem:[%s1 + $0x110] sm:$0xf]
        %v277 = vld [vmem:[%s1 + $0x114] sm:$0xf]
        %v278 = vld [vmem:[%s1 + $0x118] sm:$0xf]
        %v279 = vld [vmem:[%s1 + $0x11c] sm:$0xf]
        %v280 = vld [vmem:[%s1 + $0x120] sm:$0xf]
        %v281 = vld [vmem:[%s1 + $0x124] sm:$0xf]
        %v282 = vld [vmem:[%s1 + $0x128] sm:$0xf]
        %v283 = vld [vmem:[%s1 + $0x12c] sm:$0xf]
        %v284 = vld [vmem:[%s1 + $0x130] sm:$0xf]
        %v285 = vld [vmem:[%s1 + $0x134] sm:$0xf]
        %v286 = vld [vmem:[%s1 + $0x138] sm:$0xf]
        %v287 = vld [vmem:[%s1 + $0x13c] sm:$0xf]
        %v288 = vld [vmem:[%s1 + $0x140] sm:$0xf]
        %v289 = vld [vmem:[%s1 + $0x144] sm:$0xf]
        %v290 = vld [vmem:[%s1 + $0x148] sm:$0xf]
        %v291 = vld [vmem:[%s1 + $0x14c] sm:$0xf]
        %v292 = vld [vmem:[%s1 + $0x150] sm:$0xf]
        %v293 = vld [vmem:[%s1 + $0x154] sm:$0xf]
        %v294 = vld [vmem:[%s1 + $0x158] sm:$0xf]
        %v295 = vld [vmem:[%s1 + $0x15c] sm:$0xf]
        %v296 = vld [vmem:[%s1 + $0x160] sm:$0xf]
        %v297 = vld [vmem:[%s1 + $0x164] sm:$0xf]
        %v298 = vld [vmem:[%s1 + $0x168] sm:$0xf]
        %v299 = vld [vmem:[%s1 + $0x16c] sm:$0xf]
        %v300 = vld [vmem:[%s1 + $0x170] sm:$0xf]
        %v301 = vld [vmem:[%s1 + $0x174] sm:$0xf]
        %v302 = vld [vmem:[%s1 + $0x178] sm:$0xf]
        %v303 = vld [vmem:[%s1 + $0x17c] sm:$0xf]
        %v304 = vld [vmem:[%s1 + $0x180] sm:$0xf]
        %v305 = vld [vmem:[%s1 + $0x184] sm:$0xf]
        %v306 = vld [vmem:[%s1 + $0x188] sm:$0xf]
        %v307 = vld [vmem:[%s1 + $0x18c] sm:$0xf]
        %v308 = vld [vmem:[%s1 + $0x190] sm:$0xf]
        %v309 = vld [vmem:[%s1 + $0x194] sm:$0xf]
        %v310 = vld [vmem:[%s1 + $0x198] sm:$0xf]
        %v311 = vld [vmem:[%s1 + $0x19c] sm:$0xf]
        %v312 = vld [vmem:[%s1 + $0x1a0] sm:$0xf]
        %v313 = vld [vmem:[%s1 + $0x1a4] sm:$0xf]
        %v314 = vld [vmem:[%s1 + $0x1a8] sm:$0xf]
        %v315 = vld [vmem:[%s1 + $0x1ac] sm:$0xf]
        %v316 = vld [vmem:[%s1 + $0x1b0] sm:$0xf]
        %v317 = vld [vmem:[%s1 + $0x1b4] sm:$0xf]
        %v318 = vld [vmem:[%s1 + $0x1b8] sm:$0xf]
        %v319 = vld [vmem:[%s1 + $0x1bc] sm:$0xf]
        %v320 = vld [vmem:[%s2] sm:$0x1]
        %v321 = vld [vmem:[%s2 + $0x1] sm:$0x1]
        %v322 = vld [vmem:[%s2 + $0x8] sm:$0xff]
        %v323 = vld [vmem:[%s206] sm:$0xf]
        %v324 = vld [vmem:[%s206 + $0x4] sm:$0xf]
        %v325 = vld [vmem:[%s206 + $0x8] sm:$0xf]
        %v326 = vld [vmem:[%s206 + $0xc] sm:$0xf]
        %v327 = vld [vmem:[%s206 + $0x10] sm:$0xf]
        %v328 = vld [vmem:[%s206 + $0x14] sm:$0xf]
        %v329 = vld [vmem:[%s206 + $0x18] sm:$0xf]
        %v330 = vld [vmem:[%s206 + $0x1c] sm:$0xf]
        %v331 = vld [vmem:[%s206 + $0x20] sm:$0xf]
        %v332 = vld [vmem:[%s206 + $0x24] sm:$0xf]
        %v333 = vld [vmem:[%s206 + $0x28] sm:$0xf]
        %v334 = vld [vmem:[%s206 + $0x2c] sm:$0xf]
        %v335 = vld [vmem:[%s206 + $0x30] sm:$0xf]
        %v336 = vld [vmem:[%s206 + $0x34] sm:$0xf]
        %v337 = vld [vmem:[%s206 + $0x38] sm:$0xf]
        %v338 = vld [vmem:[%s206 + $0x3c] sm:$0xf]
        %v339 = vld [vmem:[%s206 + $0x40] sm:$0xf]
        %v340 = vld [vmem:[%s206 + $0x44] sm:$0xf]
        %v341 = vld [vmem:[%s206 + $0x48] sm:$0xf]
        %v342 = vld [vmem:[%s206 + $0x4c] sm:$0xf]
        %v343 = vld [vmem:[%s206 + $0x50] sm:$0xf]
        %v344 = vld [vmem:[%s206 + $0x54] sm:$0xf]
        %v345 = vld [vmem:[%s206 + $0x58] sm:$0xf]
        %v346 = vld [vmem:[%s206 + $0x5c] sm:$0xf]
        %v347 = vlaneseq
        %v348 = vshrl.u32 %v347, 7
        %v349 = vsub.s32 0, %v348
        %v350 = vrot.slane %v320, %v349
        %v375 = vunpack.c.l.b16 %v323
        %v376 = vunpack.c.l.b16 %v324
        %v377 = vunpack.c.l.b16 %v325
        %v378 = vunpack.c.l.b16 %v326
        %v379 = vunpack.c.l.b16 %v327
        %v380 = vunpack.c.l.b16 %v328
        %v381 = vunpack.c.l.b16 %v329
        %v382 = vunpack.c.l.b16 %v330
        %v383 = vunpack.c.l.b16 %v331
        %v384 = vunpack.c.l.b16 %v332
        %v385 = vunpack.c.l.b16 %v333
        %v386 = vunpack.c.l.b16 %v334
        %v387 = vunpack.c.l.b16 %v335
        %v388 = vunpack.c.l.b16 %v336
        %v389 = vunpack.c.l.b16 %v337
        %v390 = vunpack.c.l.b16 %v338
        %v391 = vunpack.c.l.b16 %v339
        %v392 = vunpack.c.l.b16 %v340
        %v393 = vunpack.c.l.b16 %v341
        %v394 = vunpack.c.l.b16 %v342
        %v395 = vunpack.c.l.b16 %v343
        %v396 = vunpack.c.l.b16 %v344
        %v397 = vunpack.c.l.b16 %v345
        %v398 = vunpack.c.l.b16 %v346
        %v399 = vpack.c.b16 %v376, %v375
        %v400 = vpack.c.b16 %v378, %v377
        %v401 = vpack.c.b16 %v380, %v379
        %v402 = vpack.c.b16 %v382, %v381
        %v403 = vpack.c.b16 %v384, %v383
        %v404 = vpack.c.b16 %v386, %v385
        %v405 = vpack.c.b16 %v388, %v387
        %v406 = vpack.c.b16 %v390, %v389
        %v407 = vpack.c.b16 %v392, %v391
        %v408 = vpack.c.b16 %v394, %v393
        %v409 = vpack.c.b16 %v396, %v395
        %v410 = vpack.c.b16 %v398, %v397
        %v419 = vunpack.c.l.b16 %v208
        %v420 = vunpack.c.l.b16 %v209
        %v421 = vunpack.c.l.b16 %v210
        %v422 = vunpack.c.l.b16 %v211
        %v423 = vunpack.c.l.b16 %v212
        %v424 = vunpack.c.l.b16 %v213
        %v425 = vunpack.c.l.b16 %v214
        %v426 = vunpack.c.l.b16 %v215
        %v427 = vpack.c.b16 %v420, %v419
        %v428 = vpack.c.b16 %v422, %v421
        %v429 = vpack.c.b16 %v424, %v423
        %v430 = vpack.c.b16 %v426, %v425
        %vm435 = vcmask 523264
        %v437 = vsel %vm435, %v399, 0
        %v440 = vsel %vm435, %v400, 0
        %v443 = vsel %vm435, %v401, 0
        %v446 = vsel %vm435, %v402, 0
        %v449 = vsel %vm435, %v403, 0
        %v452 = vsel %vm435, %v404, 0
        %v455 = vsel %vm435, %v405, 0
        %v458 = vsel %vm435, %v406, 0
        %v461 = vsel %vm435, %v407, 0
        %v464 = vsel %vm435, %v408, 0
        %v467 = vsel %vm435, %v409, 0
        %v470 = vsel %vm435, %v410, 0
        %472 = vmatprep.subr.bf16.mxu0 0
        %473 = vmatpush1.bf16.msra.mxu0 %v427
        %474 = vmatprep.subr.bf16.mxu0 0
        %475 = vmatpush1.bf16.msra.mxu0 %v428
        %476 = vmatprep.subr.bf16.mxu0 0
        %477 = vmatpush1.bf16.msra.mxu0 %v429
        %478 = vmatprep.subr.bf16.mxu0 0
        %479 = vmatpush1.bf16.msra.mxu0 %v430
        %480 = vmatprep.subr.bf16.mxu0 0
        %481 = vmatpush1.bf16.msra.mxu0 0
        %482 = vmatprep.subr.bf16.mxu0 0
        %483 = vmatpush1.bf16.msra.mxu0 0
        %484 = vmatprep.subr.bf16.mxu0 0
        %485 = vmatpush1.bf16.msra.mxu0 0
        %486 = vmatprep.subr.bf16.mxu0 0
        %487 = vmatpush1.bf16.msra.mxu0 0
        %488 = vmatprep.subr.bf16.mxu0 0
        %489 = vmatpush1.bf16.msra.mxu0 0
        %490 = vmatprep.subr.bf16.mxu0 0
        %491 = vmatpush1.bf16.msra.mxu0 0
        %492 = vmatprep.subr.bf16.mxu0 0
        %493 = vmatpush1.bf16.msra.mxu0 0
        %494 = vmatprep.subr.bf16.mxu0 0
        %495 = vmatpush1.bf16.msra.mxu0 0
        %496 = vmatprep.subr.bf16.mxu0 0
        %497 = vmatpush1.bf16.msra.mxu0 0
        %498 = vmatprep.subr.bf16.mxu0 0
        %499 = vmatpush1.bf16.msra.mxu0 0
        %500 = vmatprep.subr.bf16.mxu0 0
        %501 = vmatpush1.bf16.msra.mxu0 0
        %502 = vmatprep.subr.bf16.mxu0 0
        %503 = vmatpush1.bf16.msra.mxu0 0
        %504 = vmatprep.mubr.bf16.mxu0 0
        %505 = vmatmul.mubr.bf16.gmra.mrb[0].mxu0 %v437
        %v506 = vpop.f32.mrb[0].mxu0
        %v507 = vadd.f32 %v350, %v506
        %v508 = vpop.f32.mrb[0].mxu0
        %v509 = vpop.f32.mrb[0].mxu0
        %v510 = vadd.f32 %v350, %v509
        %v511 = vpop.f32.mrb[0].mxu0
        %512 = vmatprep.mubr.bf16.mxu0 0
        %513 = vmatmul.mubr.bf16.gmra.mrb[0].mxu0 %v440
        %v514 = vpop.f32.mrb[0].mxu0
        %v515 = vadd.f32 %v350, %v514
        %v516 = vpop.f32.mrb[0].mxu0
        %v517 = vpop.f32.mrb[0].mxu0
        %v518 = vadd.f32 %v350, %v517
        %v519 = vpop.f32.mrb[0].mxu0
        %520 = vmatprep.mubr.bf16.mxu0 0
        %521 = vmatmul.mubr.bf16.gmra.mrb[0].mxu0 %v443
        %v522 = vpop.f32.mrb[0].mxu0
        %v523 = vadd.f32 %v350, %v522
        %v524 = vpop.f32.mrb[0].mxu0
        %v525 = vpop.f32.mrb[0].mxu0
        %v526 = vadd.f32 %v350, %v525
        %v527 = vpop.f32.mrb[0].mxu0
        %528 = vmatprep.mubr.bf16.mxu0 0
        %529 = vmatmul.mubr.bf16.gmra.mrb[0].mxu0 %v446
        %v530 = vpop.f32.mrb[0].mxu0
        %v531 = vadd.f32 %v350, %v530
        %v532 = vpop.f32.mrb[0].mxu0
        %v533 = vpop.f32.mrb[0].mxu0
        %v534 = vadd.f32 %v350, %v533
        %v535 = vpop.f32.mrb[0].mxu0
        %536 = vmatprep.mubr.bf16.mxu0 0
        %537 = vmatmul.mubr.bf16.gmra.mrb[0].mxu0 %v449
        %v538 = vpop.f32.mrb[0].mxu0
        %v539 = vadd.f32 %v350, %v538
        %v540 = vpop.f32.mrb[0].mxu0
        %v541 = vpop.f32.mrb[0].mxu0
        %v542 = vadd.f32 %v350, %v541
        %v543 = vpop.f32.mrb[0].mxu0
        %544 = vmatprep.mubr.bf16.mxu0 0
        %545 = vmatmul.mubr.bf16.gmra.mrb[0].mxu0 %v452
        %v546 = vpop.f32.mrb[0].mxu0
        %v547 = vadd.f32 %v350, %v546
        %v548 = vpop.f32.mrb[0].mxu0
        %v549 = vpop.f32.mrb[0].mxu0
        %v550 = vadd.f32 %v350, %v549
        %v551 = vpop.f32.mrb[0].mxu0
        %552 = vmatprep.mubr.bf16.mxu0 0
        %553 = vmatmul.mubr.bf16.gmra.mrb[0].mxu0 %v455
        %v554 = vpop.f32.mrb[0].mxu0
        %v555 = vadd.f32 %v350, %v554
        %v556 = vpop.f32.mrb[0].mxu0
        %v557 = vpop.f32.mrb[0].mxu0
        %v558 = vadd.f32 %v350, %v557
        %v559 = vpop.f32.mrb[0].mxu0
        %560 = vmatprep.mubr.bf16.mxu0 0
        %561 = vmatmul.mubr.bf16.gmra.mrb[0].mxu0 %v458
        %v562 = vpop.f32.mrb[0].mxu0
        %v563 = vadd.f32 %v350, %v562
        %v564 = vpop.f32.mrb[0].mxu0
        %v565 = vpop.f32.mrb[0].mxu0
        %v566 = vadd.f32 %v350, %v565
        %v567 = vpop.f32.mrb[0].mxu0
        %568 = vmatprep.mubr.bf16.mxu0 0
        %569 = vmatmul.mubr.bf16.gmra.mrb[0].mxu0 %v461
        %v570 = vpop.f32.mrb[0].mxu0
        %v571 = vadd.f32 %v350, %v570
        %v572 = vpop.f32.mrb[0].mxu0
        %v573 = vpop.f32.mrb[0].mxu0
        %v574 = vadd.f32 %v350, %v573
        %v575 = vpop.f32.mrb[0].mxu0
        %576 = vmatprep.mubr.bf16.mxu0 0
        %577 = vmatmul.mubr.bf16.gmra.mrb[0].mxu0 %v464
        %v578 = vpop.f32.mrb[0].mxu0
        %v579 = vadd.f32 %v350, %v578
        %v580 = vpop.f32.mrb[0].mxu0
        %v581 = vpop.f32.mrb[0].mxu0
        %v582 = vadd.f32 %v350, %v581
        %v583 = vpop.f32.mrb[0].mxu0
        %584 = vmatprep.mubr.bf16.mxu0 0
        %585 = vmatmul.mubr.bf16.gmra.mrb[0].mxu0 %v467
        %v586 = vpop.f32.mrb[0].mxu0
        %v587 = vadd.f32 %v350, %v586
        %v588 = vpop.f32.mrb[0].mxu0
        %v589 = vpop.f32.mrb[0].mxu0
        %v590 = vadd.f32 %v350, %v589
        %v591 = vpop.f32.mrb[0].mxu0
        %592 = vmatprep.mubr.bf16.mxu0 0
        %593 = vmatmul.mubr.bf16.gmra.mrb[0].mxu0 %v470
        %v594 = vpop.f32.mrb[0].mxu0
        %v595 = vadd.f32 %v350, %v594
        %v596 = vpop.f32.mrb[0].mxu0
        %v597 = vpop.f32.mrb[0].mxu0
        %v598 = vadd.f32 %v350, %v597
        %v599 = vpop.f32.mrb[0].mxu0
        %600 = vdwg.mxu0
        %v601 = vmax.f32 %v507, 0.0
        %v602 = vmax.f32 %v510, 0.0
        %v603 = vmax.f32 %v515, 0.0
        %v604 = vmax.f32 %v518, 0.0
        %v605 = vmax.f32 %v523, 0.0
        %v606 = vmax.f32 %v526, 0.0
        %v607 = vmax.f32 %v531, 0.0
        %v608 = vmax.f32 %v534, 0.0
        %v609 = vmax.f32 %v539, 0.0
        %v610 = vmax.f32 %v542, 0.0
        %v611 = vmax.f32 %v547, 0.0
        %v612 = vmax.f32 %v550, 0.0
        %v613 = vmax.f32 %v555, 0.0
        %v614 = vmax.f32 %v558, 0.0
        %v615 = vmax.f32 %v563, 0.0
        %v616 = vmax.f32 %v566, 0.0
        %v617 = vmax.f32 %v571, 0.0
        %v618 = vmax.f32 %v574, 0.0
        %v619 = vmax.f32 %v579, 0.0
        %v620 = vmax.f32 %v582, 0.0
        %v621 = vmax.f32 %v587, 0.0
        %v622 = vmax.f32 %v590, 0.0
        %v623 = vmax.f32 %v595, 0.0
        %v624 = vmax.f32 %v598, 0.0
        %v625 = vpack.c.bf16 %v602, %v601
        %v626 = vpack.c.bf16 %v604, %v603
        %v627 = vpack.c.bf16 %v606, %v605
        %v628 = vpack.c.bf16 %v608, %v607
        %v629 = vpack.c.bf16 %v610, %v609
        %v630 = vpack.c.bf16 %v612, %v611
        %v631 = vpack.c.bf16 %v614, %v613
        %v632 = vpack.c.bf16 %v616, %v615
        %v633 = vpack.c.bf16 %v618, %v617
        %v634 = vpack.c.bf16 %v620, %v619
        %v635 = vpack.c.bf16 %v622, %v621
        %v636 = vpack.c.bf16 %v624, %v623
        %v653 = vunpack.c.l.b16 %v216
        %v654 = vunpack.c.l.b16 %v217
        %v655 = vunpack.c.l.b16 %v218
        %v656 = vunpack.c.l.b16 %v219
        %v657 = vunpack.c.l.b16 %v220
        %v658 = vunpack.c.l.b16 %v221
        %v659 = vunpack.c.l.b16 %v222
        %v660 = vunpack.c.l.b16 %v223
        %v661 = vunpack.c.l.b16 %v224
        %v662 = vunpack.c.l.b16 %v225
        %v663 = vunpack.c.l.b16 %v226
        %v664 = vunpack.c.l.b16 %v227
        %v665 = vunpack.c.l.b16 %v228
        %v666 = vunpack.c.l.b16 %v229
        %v667 = vunpack.c.l.b16 %v230
        %v668 = vunpack.c.l.b16 %v231
        %v669 = vpack.c.b16 %v654, %v653
        %v670 = vpack.c.b16 %v656, %v655
        %v671 = vpack.c.b16 %v658, %v657
        %v672 = vpack.c.b16 %v660, %v659
        %v673 = vpack.c.b16 %v662, %v661
        %v674 = vpack.c.b16 %v664, %v663
        %v675 = vpack.c.b16 %v666, %v665
        %v676 = vpack.c.b16 %v668, %v667
        %685 = vmatprep.subr.bf16.mxu0 0
        %686 = vmatpush1.bf16.msra.mxu0 %v669
        %687 = vmatprep.subr.bf16.mxu0 0
        %688 = vmatpush1.bf16.msra.mxu0 %v670
        %689 = vmatprep.subr.bf16.mxu0 0
        %690 = vmatpush1.bf16.msra.mxu0 %v671
        %691 = vmatprep.subr.bf16.mxu0 0
        %692 = vmatpush1.bf16.msra.mxu0 %v672
        %693 = vmatprep.subr.bf16.mxu0 0
        %694 = vmatpush1.bf16.msra.mxu0 %v673
        %695 = vmatprep.subr.bf16.mxu0 0
        %696 = vmatpush1.bf16.msra.mxu0 %v674
        %697 = vmatprep.subr.bf16.mxu0 0
        %698 = vmatpush1.bf16.msra.mxu0 %v675
        %699 = vmatprep.subr.bf16.mxu0 0
        %700 = vmatpush1.bf16.msra.mxu0 %v676
        %701 = vmatprep.subr.bf16.mxu0 0
        %702 = vmatpush1.bf16.msra.mxu0 0
        %703 = vmatprep.subr.bf16.mxu0 0
        %704 = vmatpush1.bf16.msra.mxu0 0
        %705 = vmatprep.subr.bf16.mxu0 0
        %706 = vmatpush1.bf16.msra.mxu0 0
        %707 = vmatprep.subr.bf16.mxu0 0
        %708 = vmatpush1.bf16.msra.mxu0 0
        %709 = vmatprep.subr.bf16.mxu0 0
        %710 = vmatpush1.bf16.msra.mxu0 0
        %711 = vmatprep.subr.bf16.mxu0 0
        %712 = vmatpush1.bf16.msra.mxu0 0
        %713 = vmatprep.subr.bf16.mxu0 0
        %714 = vmatpush1.bf16.msra.mxu0 0
        %715 = vmatprep.subr.bf16.mxu0 0
        %716 = vmatpush1.bf16.msra.mxu0 0
        %717 = vmatprep.mubr.bf16.mxu0 0
        %718 = vmatmul.mubr.bf16.gmra.mrb[0].mxu0 %v625
        %v719 = vpop.f32.mrb[0].mxu0
        %v720 = vadd.f32 0.0, %v719
        %v721 = vpop.f32.mrb[0].mxu0
        %v722 = vpop.f32.mrb[0].mxu0
        %v723 = vadd.f32 0.0, %v722
        %v724 = vpop.f32.mrb[0].mxu0
        %725 = vmatprep.mubr.bf16.mxu0 0
        %726 = vmatmul.mubr.bf16.gmra.mrb[0].mxu0 %v626
        %v727 = vpop.f32.mrb[0].mxu0
        %v728 = vadd.f32 0.0, %v727
        %v729 = vpop.f32.mrb[0].mxu0
        %v730 = vpop.f32.mrb[0].mxu0
        %v731 = vadd.f32 0.0, %v730
        %v732 = vpop.f32.mrb[0].mxu0
        %733 = vmatprep.mubr.bf16.mxu0 0
        %734 = vmatmul.mubr.bf16.gmra.mrb[0].mxu0 %v627
        %v735 = vpop.f32.mrb[0].mxu0
        %v736 = vadd.f32 0.0, %v735
        %v737 = vpop.f32.mrb[0].mxu0
        %v738 = vpop.f32.mrb[0].mxu0
        %v739 = vadd.f32 0.0, %v738
        %v740 = vpop.f32.mrb[0].mxu0
        %741 = vmatprep.mubr.bf16.mxu0 0
        %742 = vmatmul.mubr.bf16.gmra.mrb[0].mxu0 %v628
        %v743 = vpop.f32.mrb[0].mxu0
        %v744 = vadd.f32 0.0, %v743
        %v745 = vpop.f32.mrb[0].mxu0
        %v746 = vpop.f32.mrb[0].mxu0
        %v747 = vadd.f32 0.0, %v746
        %v748 = vpop.f32.mrb[0].mxu0
        %749 = vmatprep.mubr.bf16.mxu0 0
        %750 = vmatmul.mubr.bf16.gmra.mrb[0].mxu0 %v629
        %v751 = vpop.f32.mrb[0].mxu0
        %v752 = vadd.f32 0.0, %v751
        %v753 = vpop.f32.mrb[0].mxu0
        %v754 = vpop.f32.mrb[0].mxu0
        %v755 = vadd.f32 0.0, %v754
        %v756 = vpop.f32.mrb[0].mxu0
        %757 = vmatprep.mubr.bf16.mxu0 0
        %758 = vmatmul.mubr.bf16.gmra.mrb[0].mxu0 %v630
        %v759 = vpop.f32.mrb[0].mxu0
        %v760 = vadd.f32 0.0, %v759
        %v761 = vpop.f32.mrb[0].mxu0
        %v762 = vpop.f32.mrb[0].mxu0
        %v763 = vadd.f32 0.0, %v762
        %v764 = vpop.f32.mrb[0].mxu0
        %765 = vmatprep.mubr.bf16.mxu0 0
        %766 = vmatmul.mubr.bf16.gmra.mrb[0].mxu0 %v631
        %v767 = vpop.f32.mrb[0].mxu0
        %v768 = vadd.f32 0.0, %v767
        %v769 = vpop.f32.mrb[0].mxu0
        %v770 = vpop.f32.mrb[0].mxu0
        %v771 = vadd.f32 0.0, %v770
        %v772 = vpop.f32.mrb[0].mxu0
        %773 = vmatprep.mubr.bf16.mxu0 0
        %774 = vmatmul.mubr.bf16.gmra.mrb[0].mxu0 %v632
        %v775 = vpop.f32.mrb[0].mxu0
        %v776 = vadd.f32 0.0, %v775
        %v777 = vpop.f32.mrb[0].mxu0
        %v778 = vpop.f32.mrb[0].mxu0
        %v779 = vadd.f32 0.0, %v778
        %v780 = vpop.f32.mrb[0].mxu0
        %781 = vmatprep.mubr.bf16.mxu0 0
        %782 = vmatmul.mubr.bf16.gmra.mrb[0].mxu0 %v633
        %v783 = vpop.f32.mrb[0].mxu0
        %v784 = vadd.f32 0.0, %v783
        %v785 = vpop.f32.mrb[0].mxu0
        %v786 = vpop.f32.mrb[0].mxu0
        %v787 = vadd.f32 0.0, %v786
        %v788 = vpop.f32.mrb[0].mxu0
        %789 = vmatprep.mubr.bf16.mxu0 0
        %790 = vmatmul.mubr.bf16.gmra.mrb[0].mxu0 %v634
        %v791 = vpop.f32.mrb[0].mxu0
        %v792 = vadd.f32 0.0, %v791
        %v793 = vpop.f32.mrb[0].mxu0
        %v794 = vpop.f32.mrb[0].mxu0
        %v795 = vadd.f32 0.0, %v794
        %v796 = vpop.f32.mrb[0].mxu0
        %797 = vmatprep.mubr.bf16.mxu0 0
        %798 = vmatmul.mubr.bf16.gmra.mrb[0].mxu0 %v635
        %v799 = vpop.f32.mrb[0].mxu0
        %v800 = vadd.f32 0.0, %v799
        %v801 = vpop.f32.mrb[0].mxu0
        %v802 = vpop.f32.mrb[0].mxu0
        %v803 = vadd.f32 0.0, %v802
        %v804 = vpop.f32.mrb[0].mxu0
        %805 = vmatprep.mubr.bf16.mxu0 0
        %806 = vmatmul.mubr.bf16.gmra.mrb[0].mxu0 %v636
        %v807 = vpop.f32.mrb[0].mxu0
        %v808 = vadd.f32 0.0, %v807
        %v809 = vpop.f32.mrb[0].mxu0
        %v810 = vpop.f32.mrb[0].mxu0
        %v811 = vadd.f32 0.0, %v810
        %v812 = vpop.f32.mrb[0].mxu0
        %813 = vdwg.mxu0
        %v814 = vpack.c.bf16 %v723, %v720
        %v815 = vpack.c.bf16 %v731, %v728
        %v816 = vpack.c.bf16 %v739, %v736
        %v817 = vpack.c.bf16 %v747, %v744
        %822 = vrot.lane.b32.xlu0 %v814, 96
        %v823 = vpop.permute.xlu0 %822
        %824 = vrot.lane.b32.xlu0 %v815, 96
        %v825 = vpop.permute.xlu0 %824
        %826 = vrot.lane.b32.xlu0 %v816, 96
        %v827 = vpop.permute.xlu0 %826
        %828 = vrot.lane.b32.xlu0 %v817, 96
        %v829 = vpop.permute.xlu0 %828
        %vm830 = vcmask 261120
        %v832 = vsel %vm830, %v814, 0
        %v835 = vsel %vm830, %v815, 0
        %v838 = vsel %vm830, %v816, 0
        %v841 = vsel %vm830, %v817, 0
        %v844 = vsel %vm830, %v823, 0
        %v847 = vsel %vm830, %v825, 0
        %v850 = vsel %vm830, %v827, 0
        %v853 = vsel %vm830, %v829, 0
        %855 = vmatprep.subr.bf16.mxu0 0
        %856 = vmatpush1.bf16.xpose.msra.mxu0 %v844
        %857 = vmatprep.subr.bf16.mxu0 0
        %858 = vmatpush1.bf16.xpose.msra.mxu0 %v847
        %859 = vmatprep.subr.bf16.mxu0 0
        %860 = vmatpush1.bf16.xpose.msra.mxu0 %v850
        %861 = vmatprep.subr.bf16.mxu0 0
        %862 = vmatpush1.bf16.xpose.msra.mxu0 %v853
        %863 = vmatprep.subr.bf16.mxu0 0
        %864 = vmatpush1.bf16.xpose.msra.mxu0 0
        %865 = vmatprep.subr.bf16.mxu0 0
        %866 = vmatpush1.bf16.xpose.msra.mxu0 0
        %867 = vmatprep.subr.bf16.mxu0 0
        %868 = vmatpush1.bf16.xpose.msra.mxu0 0
        %869 = vmatprep.subr.bf16.mxu0 0
        %870 = vmatpush1.bf16.xpose.msra.mxu0 0
        %871 = vmatprep.subr.bf16.mxu0 0
        %872 = vmatpush1.bf16.xpose.msra.mxu0 0
        %873 = vmatprep.subr.bf16.mxu0 0
        %874 = vmatpush1.bf16.xpose.msra.mxu0 0
        %875 = vmatprep.subr.bf16.mxu0 0
        %876 = vmatpush1.bf16.xpose.msra.mxu0 0
        %877 = vmatprep.subr.bf16.mxu0 0
        %878 = vmatpush1.bf16.xpose.msra.mxu0 0
        %879 = vmatprep.subr.bf16.mxu0 0
        %880 = vmatpush1.bf16.xpose.msra.mxu0 0
        %881 = vmatprep.subr.bf16.mxu0 0
        %882 = vmatpush1.bf16.xpose.msra.mxu0 0
        %883 = vmatprep.subr.bf16.mxu0 0
        %884 = vmatpush1.bf16.xpose.msra.mxu0 0
        %885 = vmatprep.subr.bf16.mxu0 0
        %886 = vmatpush1.bf16.xpose.msra.mxu0 0
        %887 = vmatprep.mubr.bf16.mxu0 0
        %888 = vmatmul.mubr.bf16.gmra.mrb[0].mxu0 %v832
        %v889 = vpop.f32.mrb[0].mxu0
        %v890 = vadd.f32 0.0, %v889
        %v891 = vpop.f32.mrb[0].mxu0
        %v892 = vpop.f32.mrb[0].mxu0
        %v893 = vadd.f32 0.0, %v892
        %v894 = vpop.f32.mrb[0].mxu0
        %895 = vmatprep.mubr.bf16.mxu0 0
        %896 = vmatmul.mubr.bf16.gmra.mrb[0].mxu0 %v835
        %v897 = vpop.f32.mrb[0].mxu0
        %v898 = vadd.f32 0.0, %v897
        %v899 = vpop.f32.mrb[0].mxu0
        %v900 = vpop.f32.mrb[0].mxu0
        %v901 = vadd.f32 0.0, %v900
        %v902 = vpop.f32.mrb[0].mxu0
        %903 = vmatprep.mubr.bf16.mxu0 0
        %904 = vmatmul.mubr.bf16.gmra.mrb[0].mxu0 %v838
        %v905 = vpop.f32.mrb[0].mxu0
        %v906 = vadd.f32 0.0, %v905
        %v907 = vpop.f32.mrb[0].mxu0
        %v908 = vpop.f32.mrb[0].mxu0
        %v909 = vadd.f32 0.0, %v908
        %v910 = vpop.f32.mrb[0].mxu0
        %911 = vmatprep.mubr.bf16.mxu0 0
        %912 = vmatmul.mubr.bf16.gmra.mrb[0].mxu0 %v841
        %v913 = vpop.f32.mrb[0].mxu0
        %v914 = vadd.f32 0.0, %v913
        %v915 = vpop.f32.mrb[0].mxu0
        %v916 = vpop.f32.mrb[0].mxu0
        %v917 = vadd.f32 0.0, %v916
        %v918 = vpop.f32.mrb[0].mxu0
        %919 = vdwg.mxu0
        %v920 = vmul.f32 %v890, 0.17677669
        %v921 = vmul.f32 %v893, 0.17677669
        %v922 = vmul.f32 %v898, 0.17677669
        %v923 = vmul.f32 %v901, 0.17677669
        %v924 = vmul.f32 %v906, 0.17677669
        %v925 = vmul.f32 %v909, 0.17677669
        %v926 = vmul.f32 %v914, 0.17677669
        %v927 = vmul.f32 %v917, 0.17677669
        %v928 = vsel %vm435, %v920, -inf
        %929 = vmax.xlane.f32.xlu0 %v928
        %v930 = vpop.xlane.xlu0 %929
        %v931 = vsel %vm435, %v921, -inf
        %932 = vmax.xlane.f32.xlu0 %v931
        %v933 = vpop.xlane.xlu0 %932
        %v934 = vsel %vm435, %v922, -inf
        %935 = vmax.xlane.f32.xlu0 %v934
        %v936 = vpop.xlane.xlu0 %935
        %v937 = vsel %vm435, %v923, -inf
        %938 = vmax.xlane.f32.xlu0 %v937
        %v939 = vpop.xlane.xlu0 %938
        %v940 = vsel %vm435, %v924, -inf
        %941 = vmax.xlane.f32.xlu0 %v940
        %v942 = vpop.xlane.xlu0 %941
        %v943 = vsel %vm435, %v925, -inf
        %944 = vmax.xlane.f32.xlu0 %v943
        %v945 = vpop.xlane.xlu0 %944
        %v946 = vsel %vm435, %v926, -inf
        %947 = vmax.xlane.f32.xlu0 %v946
        %v948 = vpop.xlane.xlu0 %947
        %v949 = vsel %vm435, %v927, -inf
        %950 = vmax.xlane.f32.xlu0 %v949
        %v951 = vpop.xlane.xlu0 %950
        %v952 = vsub.f32 %v920, %v930
        %v953 = vsub.f32 %v921, %v933
        %v954 = vsub.f32 %v922, %v936
        %v955 = vsub.f32 %v923, %v939
        %v956 = vsub.f32 %v924, %v942
        %v957 = vsub.f32 %v925, %v945
        %v958 = vsub.f32 %v926, %v948
        %v959 = vsub.f32 %v927, %v951
        %v960 = vmul.f32 %v952, 1.442695
        %v961 = vpow.pop %v960
        %v962 = vmul.f32 %v953, 1.442695
        %v963 = vpow.pop %v962
        %v964 = vmul.f32 %v954, 1.442695
        %v965 = vpow.pop %v964
        %v966 = vmul.f32 %v955, 1.442695
        %v967 = vpow.pop %v966
        %v968 = vmul.f32 %v956, 1.442695
        %v969 = vpow.pop %v968
        %v970 = vmul.f32 %v957, 1.442695
        %v971 = vpow.pop %v970
        %v972 = vmul.f32 %v958, 1.442695
        %v973 = vpow.pop %v972
        %v974 = vmul.f32 %v959, 1.442695
        %v975 = vpow.pop %v974
        %v976 = vsel %vm435, %v961, 0.0
        %977 = vadd.xlane.f32.xlu0 %v976
        %v978 = vpop.xlane.xlu0 %977
        %v979 = vsel %vm435, %v963, 0.0
        %980 = vadd.xlane.f32.xlu0 %v979
        %v981 = vpop.xlane.xlu0 %980
        %v982 = vsel %vm435, %v965, 0.0
        %983 = vadd.xlane.f32.xlu0 %v982
        %v984 = vpop.xlane.xlu0 %983
        %v985 = vsel %vm435, %v967, 0.0
        %986 = vadd.xlane.f32.xlu0 %v985
        %v987 = vpop.xlane.xlu0 %986
        %v988 = vsel %vm435, %v969, 0.0
        %989 = vadd.xlane.f32.xlu0 %v988
        %v990 = vpop.xlane.xlu0 %989
        %v991 = vsel %vm435, %v971, 0.0
        %992 = vadd.xlane.f32.xlu0 %v991
        %v993 = vpop.xlane.xlu0 %992
        %v994 = vsel %vm435, %v973, 0.0
        %995 = vadd.xlane.f32.xlu0 %v994
        %v996 = vpop.xlane.xlu0 %995
        %v997 = vsel %vm435, %v975, 0.0
        %998 = vadd.xlane.f32.xlu0 %v997
        %v999 = vpop.xlane.xlu0 %998
        %v1000 = vrcp.pop %v978
        %v1001 = vmul.f32 %v961, %v1000
        %v1002 = vrcp.pop %v981
        %v1003 = vmul.f32 %v963, %v1002
        %v1004 = vrcp.pop %v984
        %v1005 = vmul.f32 %v965, %v1004
        %v1006 = vrcp.pop %v987
        %v1007 = vmul.f32 %v967, %v1006
        %v1008 = vrcp.pop %v990
        %v1009 = vmul.f32 %v969, %v1008
        %v1010 = vrcp.pop %v993
        %v1011 = vmul.f32 %v971, %v1010
        %v1012 = vrcp.pop %v996
        %v1013 = vmul.f32 %v973, %v1012
        %v1014 = vrcp.pop %v999
        %v1015 = vmul.f32 %v975, %v1014
        %v1016 = vpack.c.bf16 %v1003, %v1001
        %v1017 = vpack.c.bf16 %v1007, %v1005
        %v1018 = vpack.c.bf16 %v1011, %v1009
        %v1019 = vpack.c.bf16 %v1015, %v1013
        %1020 = vrot.lane.b32.xlu0 %v814, 64
        %v1021 = vpop.permute.xlu0 %1020
        %1022 = vrot.lane.b32.xlu0 %v815, 64
        %v1023 = vpop.permute.xlu0 %1022
        %1024 = vrot.lane.b32.xlu0 %v816, 64
        %v1025 = vpop.permute.xlu0 %1024
        %1026 = vrot.lane.b32.xlu0 %v817, 64
        %v1027 = vpop.permute.xlu0 %1026
        %v1033 = vsel %vm435, %v1016, 0
        %v1036 = vsel %vm435, %v1017, 0
        %v1039 = vsel %vm435, %v1018, 0
        %v1042 = vsel %vm435, %v1019, 0
        %1044 = vmatprep.subr.bf16.mxu0 0
        %1045 = vmatpush1.bf16.msra.mxu0 %v1021
        %1046 = vmatprep.subr.bf16.mxu0 0
        %1047 = vmatpush1.bf16.msra.mxu0 %v1023
        %1048 = vmatprep.subr.bf16.mxu0 0
        %1049 = vmatpush1.bf16.msra.mxu0 %v1025
        %1050 = vmatprep.subr.bf16.mxu0 0
        %1051 = vmatpush1.bf16.msra.mxu0 %v1027
        %1052 = vmatprep.subr.bf16.mxu0 0
        %1053 = vmatpush1.bf16.msra.mxu0 0
        %1054 = vmatprep.subr.bf16.mxu0 0
        %1055 = vmatpush1.bf16.msra.mxu0 0
        %1056 = vmatprep.subr.bf16.mxu0 0
        %1057 = vmatpush1.bf16.msra.mxu0 0
        %1058 = vmatprep.subr.bf16.mxu0 0
        %1059 = vmatpush1.bf16.msra.mxu0 0
        %1060 = vmatprep.subr.bf16.mxu0 0
        %1061 = vmatpush1.bf16.msra.mxu0 0
        %1062 = vmatprep.subr.bf16.mxu0 0
        %1063 = vmatpush1.bf16.msra.mxu0 0
        %1064 = vmatprep.subr.bf16.mxu0 0
        %1065 = vmatpush1.bf16.msra.mxu0 0
        %1066 = vmatprep.subr.bf16.mxu0 0
        %1067 = vmatpush1.bf16.msra.mxu0 0
        %1068 = vmatprep.subr.bf16.mxu0 0
        %1069 = vmatpush1.bf16.msra.mxu0 0
        %1070 = vmatprep.subr.bf16.mxu0 0
        %1071 = vmatpush1.bf16.msra.mxu0 0
        %1072 = vmatprep.subr.bf16.mxu0 0
        %1073 = vmatpush1.bf16.msra.mxu0 0
        %1074 = vmatprep.subr.bf16.mxu0 0
        %1075 = vmatpush1.bf16.msra.mxu0 0
        %1076 = vmatprep.mubr.bf16.mxu0 0
        %1077 = vmatmul.mubr.bf16.gmra.mrb[0].mxu0 %v1033
        %v1078 = vpop.f32.mrb[0].mxu0
        %v1079 = vadd.f32 0.0, %v1078
        %v1080 = vpop.f32.mrb[0].mxu0
        %v1081 = vpop.f32.mrb[0].mxu0
        %v1082 = vadd.f32 0.0, %v1081
        %v1083 = vpop.f32.mrb[0].mxu0
        %1084 = vmatprep.mubr.bf16.mxu0 0
        %1085 = vmatmul.mubr.bf16.gmra.mrb[0].mxu0 %v1036
        %v1086 = vpop.f32.mrb[0].mxu0
        %v1087 = vadd.f32 0.0, %v1086
        %v1088 = vpop.f32.mrb[0].mxu0
        %v1089 = vpop.f32.mrb[0].mxu0
        %v1090 = vadd.f32 0.0, %v1089
        %v1091 = vpop.f32.mrb[0].mxu0
        %1092 = vmatprep.mubr.bf16.mxu0 0
        %1093 = vmatmul.mubr.bf16.gmra.mrb[0].mxu0 %v1039
        %v1094 = vpop.f32.mrb[0].mxu0
        %v1095 = vadd.f32 0.0, %v1094
        %v1096 = vpop.f32.mrb[0].mxu0
        %v1097 = vpop.f32.mrb[0].mxu0
        %v1098 = vadd.f32 0.0, %v1097
        %v1099 = vpop.f32.mrb[0].mxu0
        %1100 = vmatprep.mubr.bf16.mxu0 0
        %1101 = vmatmul.mubr.bf16.gmra.mrb[0].mxu0 %v1042
        %v1102 = vpop.f32.mrb[0].mxu0
        %v1103 = vadd.f32 0.0, %v1102
        %v1104 = vpop.f32.mrb[0].mxu0
        %v1105 = vpop.f32.mrb[0].mxu0
        %v1106 = vadd.f32 0.0, %v1105
        %v1107 = vpop.f32.mrb[0].mxu0
        %1108 = vdwg.mxu0
        %v1109 = vpack.c.bf16 %v755, %v752
        %v1110 = vpack.c.bf16 %v763, %v760
        %v1111 = vpack.c.bf16 %v771, %v768
        %v1112 = vpack.c.bf16 %v779, %v776
        %1117 = vrot.lane.b32.xlu0 %v1109, 96
        %v1118 = vpop.permute.xlu0 %1117
        %1119 = vrot.lane.b32.xlu0 %v1110, 96
        %v1120 = vpop.permute.xlu0 %1119
        %1121 = vrot.lane.b32.xlu0 %v1111, 96
        %v1122 = vpop.permute.xlu0 %1121
        %1123 = vrot.lane.b32.xlu0 %v1112, 96
        %v1124 = vpop.permute.xlu0 %1123
        %v1126 = vsel %vm830, %v1109, 0
        %v1129 = vsel %vm830, %v1110, 0
        %v1132 = vsel %vm830, %v1111, 0
        %v1135 = vsel %vm830, %v1112, 0
        %v1138 = vsel %vm830, %v1118, 0
        %v1141 = vsel %vm830, %v1120, 0
        %v1144 = vsel %vm830, %v1122, 0
        %v1147 = vsel %vm830, %v1124, 0
        %1149 = vmatprep.subr.bf16.mxu0 0
        %1150 = vmatpush1.bf16.xpose.msra.mxu0 %v1138
        %1151 = vmatprep.subr.bf16.mxu0 0
        %1152 = vmatpush1.bf16.xpose.msra.mxu0 %v1141
        %1153 = vmatprep.subr.bf16.mxu0 0
        %1154 = vmatpush1.bf16.xpose.msra.mxu0 %v1144
        %1155 = vmatprep.subr.bf16.mxu0 0
        %1156 = vmatpush1.bf16.xpose.msra.mxu0 %v1147
        %1157 = vmatprep.subr.bf16.mxu0 0
        %1158 = vmatpush1.bf16.xpose.msra.mxu0 0
        %1159 = vmatprep.subr.bf16.mxu0 0
        %1160 = vmatpush1.bf16.xpose.msra.mxu0 0
        %1161 = vmatprep.subr.bf16.mxu0 0
        %1162 = vmatpush1.bf16.xpose.msra.mxu0 0
        %1163 = vmatprep.subr.bf16.mxu0 0
        %1164 = vmatpush1.bf16.xpose.msra.mxu0 0
        %1165 = vmatprep.subr.bf16.mxu0 0
        %1166 = vmatpush1.bf16.xpose.msra.mxu0 0
        %1167 = vmatprep.subr.bf16.mxu0 0
        %1168 = vmatpush1.bf16.xpose.msra.mxu0 0
        %1169 = vmatprep.subr.bf16.mxu0 0
        %1170 = vmatpush1.bf16.xpose.msra.mxu0 0
        %1171 = vmatprep.subr.bf16.mxu0 0
        %1172 = vmatpush1.bf16.xpose.msra.mxu0 0
        %1173 = vmatprep.subr.bf16.mxu0 0
        %1174 = vmatpush1.bf16.xpose.msra.mxu0 0
        %1175 = vmatprep.subr.bf16.mxu0 0
        %1176 = vmatpush1.bf16.xpose.msra.mxu0 0
        %1177 = vmatprep.subr.bf16.mxu0 0
        %1178 = vmatpush1.bf16.xpose.msra.mxu0 0
        %1179 = vmatprep.subr.bf16.mxu0 0
        %1180 = vmatpush1.bf16.xpose.msra.mxu0 0
        %1181 = vmatprep.mubr.bf16.mxu0 0
        %1182 = vmatmul.mubr.bf16.gmra.mrb[0].mxu0 %v1126
        %v1183 = vpop.f32.mrb[0].mxu0
        %v1184 = vadd.f32 0.0, %v1183
        %v1185 = vpop.f32.mrb[0].mxu0
        %v1186 = vpop.f32.mrb[0].mxu0
        %v1187 = vadd.f32 0.0, %v1186
        %v1188 = vpop.f32.mrb[0].mxu0
        %1189 = vmatprep.mubr.bf16.mxu0 0
        %1190 = vmatmul.mubr.bf16.gmra.mrb[0].mxu0 %v1129
        %v1191 = vpop.f32.mrb[0].mxu0
        %v1192 = vadd.f32 0.0, %v1191
        %v1193 = vpop.f32.mrb[0].mxu0
        %v1194 = vpop.f32.mrb[0].mxu0
        %v1195 = vadd.f32 0.0, %v1194
        %v1196 = vpop.f32.mrb[0].mxu0
        %1197 = vmatprep.mubr.bf16.mxu0 0
        %1198 = vmatmul.mubr.bf16.gmra.mrb[0].mxu0 %v1132
        %v1199 = vpop.f32.mrb[0].mxu0
        %v1200 = vadd.f32 0.0, %v1199
        %v1201 = vpop.f32.mrb[0].mxu0
        %v1202 = vpop.f32.mrb[0].mxu0
        %v1203 = vadd.f32 0.0, %v1202
        %v1204 = vpop.f32.mrb[0].mxu0
        %1205 = vmatprep.mubr.bf16.mxu0 0
        %1206 = vmatmul.mubr.bf16.gmra.mrb[0].mxu0 %v1135
        %v1207 = vpop.f32.mrb[0].mxu0
        %v1208 = vadd.f32 0.0, %v1207
        %v1209 = vpop.f32.mrb[0].mxu0
        %v1210 = vpop.f32.mrb[0].mxu0
        %v1211 = vadd.f32 0.0, %v1210
        %v1212 = vpop.f32.mrb[0].mxu0
        %1213 = vdwg.mxu0
        %v1214 = vmul.f32 %v1184, 0.17677669
        %v1215 = vmul.f32 %v1187, 0.17677669
        %v1216 = vmul.f32 %v1192, 0.17677669
        %v1217 = vmul.f32 %v1195, 0.17677669
        %v1218 = vmul.f32 %v1200, 0.17677669
        %v1219 = vmul.f32 %v1203, 0.17677669
        %v1220 = vmul.f32 %v1208, 0.17677669
        %v1221 = vmul.f32 %v1211, 0.17677669
        %v1222 = vsel %vm435, %v1214, -inf
        %1223 = vmax.xlane.f32.xlu0 %v1222
        %v1224 = vpop.xlane.xlu0 %1223
        %v1225 = vsel %vm435, %v1215, -inf
        %1226 = vmax.xlane.f32.xlu0 %v1225
        %v1227 = vpop.xlane.xlu0 %1226
        %v1228 = vsel %vm435, %v1216, -inf
        %1229 = vmax.xlane.f32.xlu0 %v1228
        %v1230 = vpop.xlane.xlu0 %1229
        %v1231 = vsel %vm435, %v1217, -inf
        %1232 = vmax.xlane.f32.xlu0 %v1231
        %v1233 = vpop.xlane.xlu0 %1232
        %v1234 = vsel %vm435, %v1218, -inf
        %1235 = vmax.xlane.f32.xlu0 %v1234
        %v1236 = vpop.xlane.xlu0 %1235
        %v1237 = vsel %vm435, %v1219, -inf
        %1238 = vmax.xlane.f32.xlu0 %v1237
        %v1239 = vpop.xlane.xlu0 %1238
        %v1240 = vsel %vm435, %v1220, -inf
        %1241 = vmax.xlane.f32.xlu0 %v1240
        %v1242 = vpop.xlane.xlu0 %1241
        %v1243 = vsel %vm435, %v1221, -inf
        %1244 = vmax.xlane.f32.xlu0 %v1243
        %v1245 = vpop.xlane.xlu0 %1244
        %v1246 = vsub.f32 %v1214, %v1224
        %v1247 = vsub.f32 %v1215, %v1227
        %v1248 = vsub.f32 %v1216, %v1230
        %v1249 = vsub.f32 %v1217, %v1233
        %v1250 = vsub.f32 %v1218, %v1236
        %v1251 = vsub.f32 %v1219, %v1239
        %v1252 = vsub.f32 %v1220, %v1242
        %v1253 = vsub.f32 %v1221, %v1245
        %v1254 = vmul.f32 %v1246, 1.442695
        %v1255 = vpow.pop %v1254
        %v1256 = vmul.f32 %v1247, 1.442695
        %v1257 = vpow.pop %v1256
        %v1258 = vmul.f32 %v1248, 1.442695
        %v1259 = vpow.pop %v1258
        %v1260 = vmul.f32 %v1249, 1.442695
        %v1261 = vpow.pop %v1260
        %v1262 = vmul.f32 %v1250, 1.442695
        %v1263 = vpow.pop %v1262
        %v1264 = vmul.f32 %v1251, 1.442695
        %v1265 = vpow.pop %v1264
        %v1266 = vmul.f32 %v1252, 1.442695
        %v1267 = vpow.pop %v1266
        %v1268 = vmul.f32 %v1253, 1.442695
        %v1269 = vpow.pop %v1268
        %v1270 = vsel %vm435, %v1255, 0.0
        %1271 = vadd.xlane.f32.xlu0 %v1270
        %v1272 = vpop.xlane.xlu0 %1271
        %v1273 = vsel %vm435, %v1257, 0.0
        %1274 = vadd.xlane.f32.xlu0 %v1273
        %v1275 = vpop.xlane.xlu0 %1274
        %v1276 = vsel %vm435, %v1259, 0.0
        %1277 = vadd.xlane.f32.xlu0 %v1276
        %v1278 = vpop.xlane.xlu0 %1277
        %v1279 = vsel %vm435, %v1261, 0.0
        %1280 = vadd.xlane.f32.xlu0 %v1279
        %v1281 = vpop.xlane.xlu0 %1280
        %v1282 = vsel %vm435, %v1263, 0.0
        %1283 = vadd.xlane.f32.xlu0 %v1282
        %v1284 = vpop.xlane.xlu0 %1283
        %v1285 = vsel %vm435, %v1265, 0.0
        %1286 = vadd.xlane.f32.xlu0 %v1285
        %v1287 = vpop.xlane.xlu0 %1286
        %v1288 = vsel %vm435, %v1267, 0.0
        %1289 = vadd.xlane.f32.xlu0 %v1288
        %v1290 = vpop.xlane.xlu0 %1289
        %v1291 = vsel %vm435, %v1269, 0.0
        %1292 = vadd.xlane.f32.xlu0 %v1291
        %v1293 = vpop.xlane.xlu0 %1292
        %v1294 = vrcp.pop %v1272
        %v1295 = vmul.f32 %v1255, %v1294
        %v1296 = vrcp.pop %v1275
        %v1297 = vmul.f32 %v1257, %v1296
        %v1298 = vrcp.pop %v1278
        %v1299 = vmul.f32 %v1259, %v1298
        %v1300 = vrcp.pop %v1281
        %v1301 = vmul.f32 %v1261, %v1300
        %v1302 = vrcp.pop %v1284
        %v1303 = vmul.f32 %v1263, %v1302
        %v1304 = vrcp.pop %v1287
        %v1305 = vmul.f32 %v1265, %v1304
        %v1306 = vrcp.pop %v1290
        %v1307 = vmul.f32 %v1267, %v1306
        %v1308 = vrcp.pop %v1293
        %v1309 = vmul.f32 %v1269, %v1308
        %v1310 = vpack.c.bf16 %v1297, %v1295
        %v1311 = vpack.c.bf16 %v1301, %v1299
        %v1312 = vpack.c.bf16 %v1305, %v1303
        %v1313 = vpack.c.bf16 %v1309, %v1307
        %1314 = vrot.lane.b32.xlu0 %v1109, 64
        %v1315 = vpop.permute.xlu0 %1314
        %1316 = vrot.lane.b32.xlu0 %v1110, 64
        %v1317 = vpop.permute.xlu0 %1316
        %1318 = vrot.lane.b32.xlu0 %v1111, 64
        %v1319 = vpop.permute.xlu0 %1318
        %1320 = vrot.lane.b32.xlu0 %v1112, 64
        %v1321 = vpop.permute.xlu0 %1320
        %v1327 = vsel %vm435, %v1310, 0
        %v1330 = vsel %vm435, %v1311, 0
        %v1333 = vsel %vm435, %v1312, 0
        %v1336 = vsel %vm435, %v1313, 0
        %1338 = vmatprep.subr.bf16.mxu0 0
        %1339 = vmatpush1.bf16.msra.mxu0 %v1315
        %1340 = vmatprep.subr.bf16.mxu0 0
        %1341 = vmatpush1.bf16.msra.mxu0 %v1317
        %1342 = vmatprep.subr.bf16.mxu0 0
        %1343 = vmatpush1.bf16.msra.mxu0 %v1319
        %1344 = vmatprep.subr.bf16.mxu0 0
        %1345 = vmatpush1.bf16.msra.mxu0 %v1321
        %1346 = vmatprep.subr.bf16.mxu0 0
        %1347 = vmatpush1.bf16.msra.mxu0 0
        %1348 = vmatprep.subr.bf16.mxu0 0
        %1349 = vmatpush1.bf16.msra.mxu0 0
        %1350 = vmatprep.subr.bf16.mxu0 0
        %1351 = vmatpush1.bf16.msra.mxu0 0
        %1352 = vmatprep.subr.bf16.mxu0 0
        %1353 = vmatpush1.bf16.msra.mxu0 0
        %1354 = vmatprep.subr.bf16.mxu0 0
        %1355 = vmatpush1.bf16.msra.mxu0 0
        %1356 = vmatprep.subr.bf16.mxu0 0
        %1357 = vmatpush1.bf16.msra.mxu0 0
        %1358 = vmatprep.subr.bf16.mxu0 0
        %1359 = vmatpush1.bf16.msra.mxu0 0
        %1360 = vmatprep.subr.bf16.mxu0 0
        %1361 = vmatpush1.bf16.msra.mxu0 0
        %1362 = vmatprep.subr.bf16.mxu0 0
        %1363 = vmatpush1.bf16.msra.mxu0 0
        %1364 = vmatprep.subr.bf16.mxu0 0
        %1365 = vmatpush1.bf16.msra.mxu0 0
        %1366 = vmatprep.subr.bf16.mxu0 0
        %1367 = vmatpush1.bf16.msra.mxu0 0
        %1368 = vmatprep.subr.bf16.mxu0 0
        %1369 = vmatpush1.bf16.msra.mxu0 0
        %1370 = vmatprep.mubr.bf16.mxu0 0
        %1371 = vmatmul.mubr.bf16.gmra.mrb[0].mxu0 %v1327
        %v1372 = vpop.f32.mrb[0].mxu0
        %v1373 = vadd.f32 0.0, %v1372
        %v1374 = vpop.f32.mrb[0].mxu0
        %v1375 = vpop.f32.mrb[0].mxu0
        %v1376 = vadd.f32 0.0, %v1375
        %v1377 = vpop.f32.mrb[0].mxu0
        %1378 = vmatprep.mubr.bf16.mxu0 0
        %1379 = vmatmul.mubr.bf16.gmra.mrb[0].mxu0 %v1330
        %v1380 = vpop.f32.mrb[0].mxu0
        %v1381 = vadd.f32 0.0, %v1380
        %v1382 = vpop.f32.mrb[0].mxu0
        %v1383 = vpop.f32.mrb[0].mxu0
        %v1384 = vadd.f32 0.0, %v1383
        %v1385 = vpop.f32.mrb[0].mxu0
        %1386 = vmatprep.mubr.bf16.mxu0 0
        %1387 = vmatmul.mubr.bf16.gmra.mrb[0].mxu0 %v1333
        %v1388 = vpop.f32.mrb[0].mxu0
        %v1389 = vadd.f32 0.0, %v1388
        %v1390 = vpop.f32.mrb[0].mxu0
        %v1391 = vpop.f32.mrb[0].mxu0
        %v1392 = vadd.f32 0.0, %v1391
        %v1393 = vpop.f32.mrb[0].mxu0
        %1394 = vmatprep.mubr.bf16.mxu0 0
        %1395 = vmatmul.mubr.bf16.gmra.mrb[0].mxu0 %v1336
        %v1396 = vpop.f32.mrb[0].mxu0
        %v1397 = vadd.f32 0.0, %v1396
        %v1398 = vpop.f32.mrb[0].mxu0
        %v1399 = vpop.f32.mrb[0].mxu0
        %v1400 = vadd.f32 0.0, %v1399
        %v1401 = vpop.f32.mrb[0].mxu0
        %1402 = vdwg.mxu0
        %v1403 = vpack.c.bf16 %v787, %v784
        %v1404 = vpack.c.bf16 %v795, %v792
        %v1405 = vpack.c.bf16 %v803, %v800
        %v1406 = vpack.c.bf16 %v811, %v808
        %1411 = vrot.lane.b32.xlu0 %v1403, 96
        %v1412 = vpop.permute.xlu0 %1411
        %1413 = vrot.lane.b32.xlu0 %v1404, 96
        %v1414 = vpop.permute.xlu0 %1413
        %1415 = vrot.lane.b32.xlu0 %v1405, 96
        %v1416 = vpop.permute.xlu0 %1415
        %1417 = vrot.lane.b32.xlu0 %v1406, 96
        %v1418 = vpop.permute.xlu0 %1417
        %v1420 = vsel %vm830, %v1403, 0
        %v1423 = vsel %vm830, %v1404, 0
        %v1426 = vsel %vm830, %v1405, 0
        %v1429 = vsel %vm830, %v1406, 0
        %v1432 = vsel %vm830, %v1412, 0
        %v1435 = vsel %vm830, %v1414, 0
        %v1438 = vsel %vm830, %v1416, 0
        %v1441 = vsel %vm830, %v1418, 0
        %1443 = vmatprep.subr.bf16.mxu0 0
        %1444 = vmatpush1.bf16.xpose.msra.mxu0 %v1432
        %1445 = vmatprep.subr.bf16.mxu0 0
        %1446 = vmatpush1.bf16.xpose.msra.mxu0 %v1435
        %1447 = vmatprep.subr.bf16.mxu0 0
        %1448 = vmatpush1.bf16.xpose.msra.mxu0 %v1438
        %1449 = vmatprep.subr.bf16.mxu0 0
        %1450 = vmatpush1.bf16.xpose.msra.mxu0 %v1441
        %1451 = vmatprep.subr.bf16.mxu0 0
        %1452 = vmatpush1.bf16.xpose.msra.mxu0 0
        %1453 = vmatprep.subr.bf16.mxu0 0
        %1454 = vmatpush1.bf16.xpose.msra.mxu0 0
        %1455 = vmatprep.subr.bf16.mxu0 0
        %1456 = vmatpush1.bf16.xpose.msra.mxu0 0
        %1457 = vmatprep.subr.bf16.mxu0 0
        %1458 = vmatpush1.bf16.xpose.msra.mxu0 0
        %1459 = vmatprep.subr.bf16.mxu0 0
        %1460 = vmatpush1.bf16.xpose.msra.mxu0 0
        %1461 = vmatprep.subr.bf16.mxu0 0
        %1462 = vmatpush1.bf16.xpose.msra.mxu0 0
        %1463 = vmatprep.subr.bf16.mxu0 0
        %1464 = vmatpush1.bf16.xpose.msra.mxu0 0
        %1465 = vmatprep.subr.bf16.mxu0 0
        %1466 = vmatpush1.bf16.xpose.msra.mxu0 0
        %1467 = vmatprep.subr.bf16.mxu0 0
        %1468 = vmatpush1.bf16.xpose.msra.mxu0 0
        %1469 = vmatprep.subr.bf16.mxu0 0
        %1470 = vmatpush1.bf16.xpose.msra.mxu0 0
        %1471 = vmatprep.subr.bf16.mxu0 0
        %1472 = vmatpush1.bf16.xpose.msra.mxu0 0
        %1473 = vmatprep.subr.bf16.mxu0 0
        %1474 = vmatpush1.bf16.xpose.msra.mxu0 0
        %1475 = vmatprep.mubr.bf16.mxu0 0
        %1476 = vmatmul.mubr.bf16.gmra.mrb[0].mxu0 %v1420
        %v1477 = vpop.f32.mrb[0].mxu0
        %v1478 = vadd.f32 0.0, %v1477
        %v1479 = vpop.f32.mrb[0].mxu0
        %v1480 = vpop.f32.mrb[0].mxu0
        %v1481 = vadd.f32 0.0, %v1480
        %v1482 = vpop.f32.mrb[0].mxu0
        %1483 = vmatprep.mubr.bf16.mxu0 0
        %1484 = vmatmul.mubr.bf16.gmra.mrb[0].mxu0 %v1423
        %v1485 = vpop.f32.mrb[0].mxu0
        %v1486 = vadd.f32 0.0, %v1485
        %v1487 = vpop.f32.mrb[0].mxu0
        %v1488 = vpop.f32.mrb[0].mxu0
        %v1489 = vadd.f32 0.0, %v1488
        %v1490 = vpop.f32.mrb[0].mxu0
        %1491 = vmatprep.mubr.bf16.mxu0 0
        %1492 = vmatmul.mubr.bf16.gmra.mrb[0].mxu0 %v1426
        %v1493 = vpop.f32.mrb[0].mxu0
        %v1494 = vadd.f32 0.0, %v1493
        %v1495 = vpop.f32.mrb[0].mxu0
        %v1496 = vpop.f32.mrb[0].mxu0
        %v1497 = vadd.f32 0.0, %v1496
        %v1498 = vpop.f32.mrb[0].mxu0
        %1499 = vmatprep.mubr.bf16.mxu0 0
        %1500 = vmatmul.mubr.bf16.gmra.mrb[0].mxu0 %v1429
        %v1501 = vpop.f32.mrb[0].mxu0
        %v1502 = vadd.f32 0.0, %v1501
        %v1503 = vpop.f32.mrb[0].mxu0
        %v1504 = vpop.f32.mrb[0].mxu0
        %v1505 = vadd.f32 0.0, %v1504
        %v1506 = vpop.f32.mrb[0].mxu0
        %1507 = vdwg.mxu0
        %v1508 = vmul.f32 %v1478, 0.17677669
        %v1509 = vmul.f32 %v1481, 0.17677669
        %v1510 = vmul.f32 %v1486, 0.17677669
        %v1511 = vmul.f32 %v1489, 0.17677669
        %v1512 = vmul.f32 %v1494, 0.17677669
        %v1513 = vmul.f32 %v1497, 0.17677669
        %v1514 = vmul.f32 %v1502, 0.17677669
        %v1515 = vmul.f32 %v1505, 0.17677669
        %v1516 = vsel %vm435, %v1508, -inf
        %1517 = vmax.xlane.f32.xlu0 %v1516
        %v1518 = vpop.xlane.xlu0 %1517
        %v1519 = vsel %vm435, %v1509, -inf
        %1520 = vmax.xlane.f32.xlu0 %v1519
        %v1521 = vpop.xlane.xlu0 %1520
        %v1522 = vsel %vm435, %v1510, -inf
        %1523 = vmax.xlane.f32.xlu0 %v1522
        %v1524 = vpop.xlane.xlu0 %1523
        %v1525 = vsel %vm435, %v1511, -inf
        %1526 = vmax.xlane.f32.xlu0 %v1525
        %v1527 = vpop.xlane.xlu0 %1526
        %v1528 = vsel %vm435, %v1512, -inf
        %1529 = vmax.xlane.f32.xlu0 %v1528
        %v1530 = vpop.xlane.xlu0 %1529
        %v1531 = vsel %vm435, %v1513, -inf
        %1532 = vmax.xlane.f32.xlu0 %v1531
        %v1533 = vpop.xlane.xlu0 %1532
        %v1534 = vsel %vm435, %v1514, -inf
        %1535 = vmax.xlane.f32.xlu0 %v1534
        %v1536 = vpop.xlane.xlu0 %1535
        %v1537 = vsel %vm435, %v1515, -inf
        %1538 = vmax.xlane.f32.xlu0 %v1537
        %v1539 = vpop.xlane.xlu0 %1538
        %v1540 = vsub.f32 %v1508, %v1518
        %v1541 = vsub.f32 %v1509, %v1521
        %v1542 = vsub.f32 %v1510, %v1524
        %v1543 = vsub.f32 %v1511, %v1527
        %v1544 = vsub.f32 %v1512, %v1530
        %v1545 = vsub.f32 %v1513, %v1533
        %v1546 = vsub.f32 %v1514, %v1536
        %v1547 = vsub.f32 %v1515, %v1539
        %v1548 = vmul.f32 %v1540, 1.442695
        %v1549 = vpow.pop %v1548
        %v1550 = vmul.f32 %v1541, 1.442695
        %v1551 = vpow.pop %v1550
        %v1552 = vmul.f32 %v1542, 1.442695
        %v1553 = vpow.pop %v1552
        %v1554 = vmul.f32 %v1543, 1.442695
        %v1555 = vpow.pop %v1554
        %v1556 = vmul.f32 %v1544, 1.442695
        %v1557 = vpow.pop %v1556
        %v1558 = vmul.f32 %v1545, 1.442695
        %v1559 = vpow.pop %v1558
        %v1560 = vmul.f32 %v1546, 1.442695
        %v1561 = vpow.pop %v1560
        %v1562 = vmul.f32 %v1547, 1.442695
        %v1563 = vpow.pop %v1562
        %v1564 = vsel %vm435, %v1549, 0.0
        %1565 = vadd.xlane.f32.xlu0 %v1564
        %v1566 = vpop.xlane.xlu0 %1565
        %v1567 = vsel %vm435, %v1551, 0.0
        %1568 = vadd.xlane.f32.xlu0 %v1567
        %v1569 = vpop.xlane.xlu0 %1568
        %v1570 = vsel %vm435, %v1553, 0.0
        %1571 = vadd.xlane.f32.xlu0 %v1570
        %v1572 = vpop.xlane.xlu0 %1571
        %v1573 = vsel %vm435, %v1555, 0.0
        %1574 = vadd.xlane.f32.xlu0 %v1573
        %v1575 = vpop.xlane.xlu0 %1574
        %v1576 = vsel %vm435, %v1557, 0.0
        %1577 = vadd.xlane.f32.xlu0 %v1576
        %v1578 = vpop.xlane.xlu0 %1577
        %v1579 = vsel %vm435, %v1559, 0.0
        %1580 = vadd.xlane.f32.xlu0 %v1579
        %v1581 = vpop.xlane.xlu0 %1580
        %v1582 = vsel %vm435, %v1561, 0.0
        %1583 = vadd.xlane.f32.xlu0 %v1582
        %v1584 = vpop.xlane.xlu0 %1583
        %v1585 = vsel %vm435, %v1563, 0.0
        %1586 = vadd.xlane.f32.xlu0 %v1585
        %v1587 = vpop.xlane.xlu0 %1586
        %v1588 = vrcp.pop %v1566
        %v1589 = vmul.f32 %v1549, %v1588
        %v1590 = vrcp.pop %v1569
        %v1591 = vmul.f32 %v1551, %v1590
        %v1592 = vrcp.pop %v1572
        %v1593 = vmul.f32 %v1553, %v1592
        %v1594 = vrcp.pop %v1575
        %v1595 = vmul.f32 %v1555, %v1594
        %v1596 = vrcp.pop %v1578
        %v1597 = vmul.f32 %v1557, %v1596
        %v1598 = vrcp.pop %v1581
        %v1599 = vmul.f32 %v1559, %v1598
        %v1600 = vrcp.pop %v1584
        %v1601 = vmul.f32 %v1561, %v1600
        %v1602 = vrcp.pop %v1587
        %v1603 = vmul.f32 %v1563, %v1602
        %v1604 = vpack.c.bf16 %v1591, %v1589
        %v1605 = vpack.c.bf16 %v1595, %v1593
        %v1606 = vpack.c.bf16 %v1599, %v1597
        %v1607 = vpack.c.bf16 %v1603, %v1601
        %1608 = vrot.lane.b32.xlu0 %v1403, 64
        %v1609 = vpop.permute.xlu0 %1608
        %1610 = vrot.lane.b32.xlu0 %v1404, 64
        %v1611 = vpop.permute.xlu0 %1610
        %1612 = vrot.lane.b32.xlu0 %v1405, 64
        %v1613 = vpop.permute.xlu0 %1612
        %1614 = vrot.lane.b32.xlu0 %v1406, 64
        %v1615 = vpop.permute.xlu0 %1614
        %v1621 = vsel %vm435, %v1604, 0
        %v1624 = vsel %vm435, %v1605, 0
        %v1627 = vsel %vm435, %v1606, 0
        %v1630 = vsel %vm435, %v1607, 0
        %1632 = vmatprep.subr.bf16.mxu0 0
        %1633 = vmatpush1.bf16.msra.mxu0 %v1609
        %1634 = vmatprep.subr.bf16.mxu0 0
        %1635 = vmatpush1.bf16.msra.mxu0 %v1611
        %1636 = vmatprep.subr.bf16.mxu0 0
        %1637 = vmatpush1.bf16.msra.mxu0 %v1613
        %1638 = vmatprep.subr.bf16.mxu0 0
        %1639 = vmatpush1.bf16.msra.mxu0 %v1615
        %1640 = vmatprep.subr.bf16.mxu0 0
        %1641 = vmatpush1.bf16.msra.mxu0 0
        %1642 = vmatprep.subr.bf16.mxu0 0
        %1643 = vmatpush1.bf16.msra.mxu0 0
        %1644 = vmatprep.subr.bf16.mxu0 0
        %1645 = vmatpush1.bf16.msra.mxu0 0
        %1646 = vmatprep.subr.bf16.mxu0 0
        %1647 = vmatpush1.bf16.msra.mxu0 0
        %1648 = vmatprep.subr.bf16.mxu0 0
        %1649 = vmatpush1.bf16.msra.mxu0 0
        %1650 = vmatprep.subr.bf16.mxu0 0
        %1651 = vmatpush1.bf16.msra.mxu0 0
        %1652 = vmatprep.subr.bf16.mxu0 0
        %1653 = vmatpush1.bf16.msra.mxu0 0
        %1654 = vmatprep.subr.bf16.mxu0 0
        %1655 = vmatpush1.bf16.msra.mxu0 0
        %1656 = vmatprep.subr.bf16.mxu0 0
        %1657 = vmatpush1.bf16.msra.mxu0 0
        %1658 = vmatprep.subr.bf16.mxu0 0
        %1659 = vmatpush1.bf16.msra.mxu0 0
        %1660 = vmatprep.subr.bf16.mxu0 0
        %1661 = vmatpush1.bf16.msra.mxu0 0
        %1662 = vmatprep.subr.bf16.mxu0 0
        %1663 = vmatpush1.bf16.msra.mxu0 0
        %1664 = vmatprep.mubr.bf16.mxu0 0
        %1665 = vmatmul.mubr.bf16.gmra.mrb[0].mxu0 %v1621
        %v1666 = vpop.f32.mrb[0].mxu0
        %v1667 = vadd.f32 0.0, %v1666
        %v1668 = vpop.f32.mrb[0].mxu0
        %v1669 = vpop.f32.mrb[0].mxu0
        %v1670 = vadd.f32 0.0, %v1669
        %v1671 = vpop.f32.mrb[0].mxu0
        %1672 = vmatprep.mubr.bf16.mxu0 0
        %1673 = vmatmul.mubr.bf16.gmra.mrb[0].mxu0 %v1624
        %v1674 = vpop.f32.mrb[0].mxu0
        %v1675 = vadd.f32 0.0, %v1674
        %v1676 = vpop.f32.mrb[0].mxu0
        %v1677 = vpop.f32.mrb[0].mxu0
        %v1678 = vadd.f32 0.0, %v1677
        %v1679 = vpop.f32.mrb[0].mxu0
        %1680 = vmatprep.mubr.bf16.mxu0 0
        %1681 = vmatmul.mubr.bf16.gmra.mrb[0].mxu0 %v1627
        %v1682 = vpop.f32.mrb[0].mxu0
        %v1683 = vadd.f32 0.0, %v1682
        %v1684 = vpop.f32.mrb[0].mxu0
        %v1685 = vpop.f32.mrb[0].mxu0
        %v1686 = vadd.f32 0.0, %v1685
        %v1687 = vpop.f32.mrb[0].mxu0
        %1688 = vmatprep.mubr.bf16.mxu0 0
        %1689 = vmatmul.mubr.bf16.gmra.mrb[0].mxu0 %v1630
        %v1690 = vpop.f32.mrb[0].mxu0
        %v1691 = vadd.f32 0.0, %v1690
        %v1692 = vpop.f32.mrb[0].mxu0
        %v1693 = vpop.f32.mrb[0].mxu0
        %v1694 = vadd.f32 0.0, %v1693
        %v1695 = vpop.f32.mrb[0].mxu0
        %1696 = vdwg.mxu0
        %v1697 = vpack.c.bf16 %v1082, %v1079
        %v1698 = vpack.c.bf16 %v1090, %v1087
        %v1699 = vpack.c.bf16 %v1098, %v1095
        %v1700 = vpack.c.bf16 %v1106, %v1103
        %v1701 = vpack.c.bf16 %v1376, %v1373
        %v1702 = vpack.c.bf16 %v1384, %v1381
        %v1703 = vpack.c.bf16 %v1392, %v1389
        %v1704 = vpack.c.bf16 %v1400, %v1397
        %v1705 = vpack.c.bf16 %v1670, %v1667
        %v1706 = vpack.c.bf16 %v1678, %v1675
        %v1707 = vpack.c.bf16 %v1686, %v1683
        %v1708 = vpack.c.bf16 %v1694, %v1691
        %v1713 = vunpack.c.l.b16 %v232
        %v1714 = vunpack.c.l.b16 %v233
        %v1715 = vunpack.c.l.b16 %v234
        %v1716 = vunpack.c.l.b16 %v235
        %v1717 = vpack.c.b16 %v1714, %v1713
        %v1718 = vpack.c.b16 %v1716, %v1715
        %v1722 = vsel %vm830, %v1697, 0
        %v1725 = vsel %vm830, %v1698, 0
        %v1728 = vsel %vm830, %v1699, 0
        %v1731 = vsel %vm830, %v1700, 0
        %v1734 = vsel %vm830, %v1701, 0
        %v1737 = vsel %vm830, %v1702, 0
        %v1740 = vsel %vm830, %v1703, 0
        %v1743 = vsel %vm830, %v1704, 0
        %v1746 = vsel %vm830, %v1705, 0
        %v1749 = vsel %vm830, %v1706, 0
        %v1752 = vsel %vm830, %v1707, 0
        %v1755 = vsel %vm830, %v1708, 0
        %1757 = vmatprep.subr.bf16.mxu0 0
        %1758 = vmatpush1.bf16.msra.mxu0 %v1717
        %1759 = vmatprep.subr.bf16.mxu0 0
        %1760 = vmatpush1.bf16.msra.mxu0 %v1718
        %1761 = vmatprep.subr.bf16.mxu0 0
        %1762 = vmatpush1.bf16.msra.mxu0 0
        %1763 = vmatprep.subr.bf16.mxu0 0
        %1764 = vmatpush1.bf16.msra.mxu0 0
        %1765 = vmatprep.subr.bf16.mxu0 0
        %1766 = vmatpush1.bf16.msra.mxu0 0
        %1767 = vmatprep.subr.bf16.mxu0 0
        %1768 = vmatpush1.bf16.msra.mxu0 0
        %1769 = vmatprep.subr.bf16.mxu0 0
        %1770 = vmatpush1.bf16.msra.mxu0 0
        %1771 = vmatprep.subr.bf16.mxu0 0
        %1772 = vmatpush1.bf16.msra.mxu0 0
        %1773 = vmatprep.subr.bf16.mxu0 0
        %1774 = vmatpush1.bf16.msra.mxu0 0
        %1775 = vmatprep.subr.bf16.mxu0 0
        %1776 = vmatpush1.bf16.msra.mxu0 0
        %1777 = vmatprep.subr.bf16.mxu0 0
        %1778 = vmatpush1.bf16.msra.mxu0 0
        %1779 = vmatprep.subr.bf16.mxu0 0
        %1780 = vmatpush1.bf16.msra.mxu0 0
        %1781 = vmatprep.subr.bf16.mxu0 0
        %1782 = vmatpush1.bf16.msra.mxu0 0
        %1783 = vmatprep.subr.bf16.mxu0 0
        %1784 = vmatpush1.bf16.msra.mxu0 0
        %1785 = vmatprep.subr.bf16.mxu0 0
        %1786 = vmatpush1.bf16.msra.mxu0 0
        %1787 = vmatprep.subr.bf16.mxu0 0
        %1788 = vmatpush1.bf16.msra.mxu0 0
        %1789 = vmatprep.mubr.bf16.mxu0 0
        %1790 = vmatmul.mubr.bf16.gmra.mrb[0].mxu0 %v1722
        %v1791 = vpop.f32.mrb[0].mxu0
        %v1792 = vadd.f32 0.0, %v1791
        %v1793 = vpop.f32.mrb[0].mxu0
        %v1794 = vpop.f32.mrb[0].mxu0
        %v1795 = vadd.f32 0.0, %v1794
        %v1796 = vpop.f32.mrb[0].mxu0
        %1797 = vmatprep.mubr.bf16.mxu0 0
        %1798 = vmatmul.mubr.bf16.gmra.mrb[0].mxu0 %v1725
        %v1799 = vpop.f32.mrb[0].mxu0
        %v1800 = vadd.f32 0.0, %v1799
        %v1801 = vpop.f32.mrb[0].mxu0
        %v1802 = vpop.f32.mrb[0].mxu0
        %v1803 = vadd.f32 0.0, %v1802
        %v1804 = vpop.f32.mrb[0].mxu0
        %1805 = vmatprep.mubr.bf16.mxu0 0
        %1806 = vmatmul.mubr.bf16.gmra.mrb[0].mxu0 %v1728
        %v1807 = vpop.f32.mrb[0].mxu0
        %v1808 = vadd.f32 0.0, %v1807
        %v1809 = vpop.f32.mrb[0].mxu0
        %v1810 = vpop.f32.mrb[0].mxu0
        %v1811 = vadd.f32 0.0, %v1810
        %v1812 = vpop.f32.mrb[0].mxu0
        %1813 = vmatprep.mubr.bf16.mxu0 0
        %1814 = vmatmul.mubr.bf16.gmra.mrb[0].mxu0 %v1731
        %v1815 = vpop.f32.mrb[0].mxu0
        %v1816 = vadd.f32 0.0, %v1815
        %v1817 = vpop.f32.mrb[0].mxu0
        %v1818 = vpop.f32.mrb[0].mxu0
        %v1819 = vadd.f32 0.0, %v1818
        %v1820 = vpop.f32.mrb[0].mxu0
        %1821 = vmatprep.mubr.bf16.mxu0 0
        %1822 = vmatmul.mubr.bf16.gmra.mrb[0].mxu0 %v1734
        %v1823 = vpop.f32.mrb[0].mxu0
        %v1824 = vadd.f32 0.0, %v1823
        %v1825 = vpop.f32.mrb[0].mxu0
        %v1826 = vpop.f32.mrb[0].mxu0
        %v1827 = vadd.f32 0.0, %v1826
        %v1828 = vpop.f32.mrb[0].mxu0
        %1829 = vmatprep.mubr.bf16.mxu0 0
        %1830 = vmatmul.mubr.bf16.gmra.mrb[0].mxu0 %v1737
        %v1831 = vpop.f32.mrb[0].mxu0
        %v1832 = vadd.f32 0.0, %v1831
        %v1833 = vpop.f32.mrb[0].mxu0
        %v1834 = vpop.f32.mrb[0].mxu0
        %v1835 = vadd.f32 0.0, %v1834
        %v1836 = vpop.f32.mrb[0].mxu0
        %1837 = vmatprep.mubr.bf16.mxu0 0
        %1838 = vmatmul.mubr.bf16.gmra.mrb[0].mxu0 %v1740
        %v1839 = vpop.f32.mrb[0].mxu0
        %v1840 = vadd.f32 0.0, %v1839
        %v1841 = vpop.f32.mrb[0].mxu0
        %v1842 = vpop.f32.mrb[0].mxu0
        %v1843 = vadd.f32 0.0, %v1842
        %v1844 = vpop.f32.mrb[0].mxu0
        %1845 = vmatprep.mubr.bf16.mxu0 0
        %1846 = vmatmul.mubr.bf16.gmra.mrb[0].mxu0 %v1743
        %v1847 = vpop.f32.mrb[0].mxu0
        %v1848 = vadd.f32 0.0, %v1847
        %v1849 = vpop.f32.mrb[0].mxu0
        %v1850 = vpop.f32.mrb[0].mxu0
        %v1851 = vadd.f32 0.0, %v1850
        %v1852 = vpop.f32.mrb[0].mxu0
        %1853 = vmatprep.mubr.bf16.mxu0 0
        %1854 = vmatmul.mubr.bf16.gmra.mrb[0].mxu0 %v1746
        %v1855 = vpop.f32.mrb[0].mxu0
        %v1856 = vadd.f32 0.0, %v1855
        %v1857 = vpop.f32.mrb[0].mxu0
        %v1858 = vpop.f32.mrb[0].mxu0
        %v1859 = vadd.f32 0.0, %v1858
        %v1860 = vpop.f32.mrb[0].mxu0
        %1861 = vmatprep.mubr.bf16.mxu0 0
        %1862 = vmatmul.mubr.bf16.gmra.mrb[0].mxu0 %v1749
        %v1863 = vpop.f32.mrb[0].mxu0
        %v1864 = vadd.f32 0.0, %v1863
        %v1865 = vpop.f32.mrb[0].mxu0
        %v1866 = vpop.f32.mrb[0].mxu0
        %v1867 = vadd.f32 0.0, %v1866
        %v1868 = vpop.f32.mrb[0].mxu0
        %1869 = vmatprep.mubr.bf16.mxu0 0
        %1870 = vmatmul.mubr.bf16.gmra.mrb[0].mxu0 %v1752
        %v1871 = vpop.f32.mrb[0].mxu0
        %v1872 = vadd.f32 0.0, %v1871
        %v1873 = vpop.f32.mrb[0].mxu0
        %v1874 = vpop.f32.mrb[0].mxu0
        %v1875 = vadd.f32 0.0, %v1874
        %v1876 = vpop.f32.mrb[0].mxu0
        %1877 = vmatprep.mubr.bf16.mxu0 0
        %1878 = vmatmul.mubr.bf16.gmra.mrb[0].mxu0 %v1755
        %v1879 = vpop.f32.mrb[0].mxu0
        %v1880 = vadd.f32 0.0, %v1879
        %v1881 = vpop.f32.mrb[0].mxu0
        %v1882 = vpop.f32.mrb[0].mxu0
        %v1883 = vadd.f32 0.0, %v1882
        %v1884 = vpop.f32.mrb[0].mxu0
        %1885 = vdwg.mxu0
        %v1886 = vadd.f32 %v601, %v1792
        %v1887 = vadd.f32 %v602, %v1795
        %v1888 = vadd.f32 %v603, %v1800
        %v1889 = vadd.f32 %v604, %v1803
        %v1890 = vadd.f32 %v605, %v1808
        %v1891 = vadd.f32 %v606, %v1811
        %v1892 = vadd.f32 %v607, %v1816
        %v1893 = vadd.f32 %v608, %v1819
        %v1894 = vadd.f32 %v609, %v1824
        %v1895 = vadd.f32 %v610, %v1827
        %v1896 = vadd.f32 %v611, %v1832
        %v1897 = vadd.f32 %v612, %v1835
        %v1898 = vadd.f32 %v613, %v1840
        %v1899 = vadd.f32 %v614, %v1843
        %v1900 = vadd.f32 %v615, %v1848
        %v1901 = vadd.f32 %v616, %v1851
        %v1902 = vadd.f32 %v617, %v1856
        %v1903 = vadd.f32 %v618, %v1859
        %v1904 = vadd.f32 %v619, %v1864
        %v1905 = vadd.f32 %v620, %v1867
        %v1906 = vadd.f32 %v621, %v1872
        %v1907 = vadd.f32 %v622, %v1875
        %v1908 = vadd.f32 %v623, %v1880
        %v1909 = vadd.f32 %v624, %v1883
        %v1910 = vpack.c.bf16 %v1887, %v1886
        %v1911 = vpack.c.bf16 %v1889, %v1888
        %v1912 = vpack.c.bf16 %v1891, %v1890
        %v1913 = vpack.c.bf16 %v1893, %v1892
        %v1914 = vpack.c.bf16 %v1895, %v1894
        %v1915 = vpack.c.bf16 %v1897, %v1896
        %v1916 = vpack.c.bf16 %v1899, %v1898
        %v1917 = vpack.c.bf16 %v1901, %v1900
        %v1918 = vpack.c.bf16 %v1903, %v1902
        %v1919 = vpack.c.bf16 %v1905, %v1904
        %v1920 = vpack.c.bf16 %v1907, %v1906
        %v1921 = vpack.c.bf16 %v1909, %v1908
        %v1938 = vunpack.c.l.b16 %v236
        %v1939 = vunpack.c.l.b16 %v237
        %v1940 = vunpack.c.l.b16 %v238
        %v1941 = vunpack.c.l.b16 %v239
        %v1942 = vunpack.c.l.b16 %v240
        %v1943 = vunpack.c.l.b16 %v241
        %v1944 = vunpack.c.l.b16 %v242
        %v1945 = vunpack.c.l.b16 %v243
        %v1946 = vunpack.c.l.b16 %v244
        %v1947 = vunpack.c.l.b16 %v245
        %v1948 = vunpack.c.l.b16 %v246
        %v1949 = vunpack.c.l.b16 %v247
        %v1950 = vunpack.c.l.b16 %v248
        %v1951 = vunpack.c.l.b16 %v249
        %v1952 = vunpack.c.l.b16 %v250
        %v1953 = vunpack.c.l.b16 %v251
        %v1954 = vpack.c.b16 %v1939, %v1938
        %v1955 = vpack.c.b16 %v1941, %v1940
        %v1956 = vpack.c.b16 %v1943, %v1942
        %v1957 = vpack.c.b16 %v1945, %v1944
        %v1958 = vpack.c.b16 %v1947, %v1946
        %v1959 = vpack.c.b16 %v1949, %v1948
        %v1960 = vpack.c.b16 %v1951, %v1950
        %v1961 = vpack.c.b16 %v1953, %v1952
        %1970 = vmatprep.subr.bf16.mxu0 0
        %1971 = vmatpush1.bf16.msra.mxu0 %v1954
        %1972 = vmatprep.subr.bf16.mxu0 0
        %1973 = vmatpush1.bf16.msra.mxu0 %v1955
        %1974 = vmatprep.subr.bf16.mxu0 0
        %1975 = vmatpush1.bf16.msra.mxu0 %v1956
        %1976 = vmatprep.subr.bf16.mxu0 0
        %1977 = vmatpush1.bf16.msra.mxu0 %v1957
        %1978 = vmatprep.subr.bf16.mxu0 0
        %1979 = vmatpush1.bf16.msra.mxu0 %v1958
        %1980 = vmatprep.subr.bf16.mxu0 0
        %1981 = vmatpush1.bf16.msra.mxu0 %v1959
        %1982 = vmatprep.subr.bf16.mxu0 0
        %1983 = vmatpush1.bf16.msra.mxu0 %v1960
        %1984 = vmatprep.subr.bf16.mxu0 0
        %1985 = vmatpush1.bf16.msra.mxu0 %v1961
        %1986 = vmatprep.subr.bf16.mxu0 0
        %1987 = vmatpush1.bf16.msra.mxu0 0
        %1988 = vmatprep.subr.bf16.mxu0 0
        %1989 = vmatpush1.bf16.msra.mxu0 0
        %1990 = vmatprep.subr.bf16.mxu0 0
        %1991 = vmatpush1.bf16.msra.mxu0 0
        %1992 = vmatprep.subr.bf16.mxu0 0
        %1993 = vmatpush1.bf16.msra.mxu0 0
        %1994 = vmatprep.subr.bf16.mxu0 0
        %1995 = vmatpush1.bf16.msra.mxu0 0
        %1996 = vmatprep.subr.bf16.mxu0 0
        %1997 = vmatpush1.bf16.msra.mxu0 0
        %1998 = vmatprep.subr.bf16.mxu0 0
        %1999 = vmatpush1.bf16.msra.mxu0 0
        %2000 = vmatprep.subr.bf16.mxu0 0
        %2001 = vmatpush1.bf16.msra.mxu0 0
        %2002 = vmatprep.mubr.bf16.mxu0 0
        %2003 = vmatmul.mubr.bf16.gmra.mrb[0].mxu0 %v1910
        %v2004 = vpop.f32.mrb[0].mxu0
        %v2005 = vadd.f32 0.0, %v2004
        %v2006 = vpop.f32.mrb[0].mxu0
        %v2007 = vpop.f32.mrb[0].mxu0
        %v2008 = vadd.f32 0.0, %v2007
        %v2009 = vpop.f32.mrb[0].mxu0
        %2010 = vmatprep.mubr.bf16.mxu0 0
        %2011 = vmatmul.mubr.bf16.gmra.mrb[0].mxu0 %v1911
        %v2012 = vpop.f32.mrb[0].mxu0
        %v2013 = vadd.f32 0.0, %v2012
        %v2014 = vpop.f32.mrb[0].mxu0
        %v2015 = vpop.f32.mrb[0].mxu0
        %v2016 = vadd.f32 0.0, %v2015
        %v2017 = vpop.f32.mrb[0].mxu0
        %2018 = vmatprep.mubr.bf16.mxu0 0
        %2019 = vmatmul.mubr.bf16.gmra.mrb[0].mxu0 %v1912
        %v2020 = vpop.f32.mrb[0].mxu0
        %v2021 = vadd.f32 0.0, %v2020
        %v2022 = vpop.f32.mrb[0].mxu0
        %v2023 = vpop.f32.mrb[0].mxu0
        %v2024 = vadd.f32 0.0, %v2023
        %v2025 = vpop.f32.mrb[0].mxu0
        %2026 = vmatprep.mubr.bf16.mxu0 0
        %2027 = vmatmul.mubr.bf16.gmra.mrb[0].mxu0 %v1913
        %v2028 = vpop.f32.mrb[0].mxu0
        %v2029 = vadd.f32 0.0, %v2028
        %v2030 = vpop.f32.mrb[0].mxu0
        %v2031 = vpop.f32.mrb[0].mxu0
        %v2032 = vadd.f32 0.0, %v2031
        %v2033 = vpop.f32.mrb[0].mxu0
        %2034 = vmatprep.mubr.bf16.mxu0 0
        %2035 = vmatmul.mubr.bf16.gmra.mrb[0].mxu0 %v1914
        %v2036 = vpop.f32.mrb[0].mxu0
        %v2037 = vadd.f32 0.0, %v2036
        %v2038 = vpop.f32.mrb[0].mxu0
        %v2039 = vpop.f32.mrb[0].mxu0
        %v2040 = vadd.f32 0.0, %v2039
        %v2041 = vpop.f32.mrb[0].mxu0
        %2042 = vmatprep.mubr.bf16.mxu0 0
        %2043 = vmatmul.mubr.bf16.gmra.mrb[0].mxu0 %v1915
        %v2044 = vpop.f32.mrb[0].mxu0
        %v2045 = vadd.f32 0.0, %v2044
        %v2046 = vpop.f32.mrb[0].mxu0
        %v2047 = vpop.f32.mrb[0].mxu0
        %v2048 = vadd.f32 0.0, %v2047
        %v2049 = vpop.f32.mrb[0].mxu0
        %2050 = vmatprep.mubr.bf16.mxu0 0
        %2051 = vmatmul.mubr.bf16.gmra.mrb[0].mxu0 %v1916
        %v2052 = vpop.f32.mrb[0].mxu0
        %v2053 = vadd.f32 0.0, %v2052
        %v2054 = vpop.f32.mrb[0].mxu0
        %v2055 = vpop.f32.mrb[0].mxu0
        %v2056 = vadd.f32 0.0, %v2055
        %v2057 = vpop.f32.mrb[0].mxu0
        %2058 = vmatprep.mubr.bf16.mxu0 0
        %2059 = vmatmul.mubr.bf16.gmra.mrb[0].mxu0 %v1917
        %v2060 = vpop.f32.mrb[0].mxu0
        %v2061 = vadd.f32 0.0, %v2060
        %v2062 = vpop.f32.mrb[0].mxu0
        %v2063 = vpop.f32.mrb[0].mxu0
        %v2064 = vadd.f32 0.0, %v2063
        %v2065 = vpop.f32.mrb[0].mxu0
        %2066 = vmatprep.mubr.bf16.mxu0 0
        %2067 = vmatmul.mubr.bf16.gmra.mrb[0].mxu0 %v1918
        %v2068 = vpop.f32.mrb[0].mxu0
        %v2069 = vadd.f32 0.0, %v2068
        %v2070 = vpop.f32.mrb[0].mxu0
        %v2071 = vpop.f32.mrb[0].mxu0
        %v2072 = vadd.f32 0.0, %v2071
        %v2073 = vpop.f32.mrb[0].mxu0
        %2074 = vmatprep.mubr.bf16.mxu0 0
        %2075 = vmatmul.mubr.bf16.gmra.mrb[0].mxu0 %v1919
        %v2076 = vpop.f32.mrb[0].mxu0
        %v2077 = vadd.f32 0.0, %v2076
        %v2078 = vpop.f32.mrb[0].mxu0
        %v2079 = vpop.f32.mrb[0].mxu0
        %v2080 = vadd.f32 0.0, %v2079
        %v2081 = vpop.f32.mrb[0].mxu0
        %2082 = vmatprep.mubr.bf16.mxu0 0
        %2083 = vmatmul.mubr.bf16.gmra.mrb[0].mxu0 %v1920
        %v2084 = vpop.f32.mrb[0].mxu0
        %v2085 = vadd.f32 0.0, %v2084
        %v2086 = vpop.f32.mrb[0].mxu0
        %v2087 = vpop.f32.mrb[0].mxu0
        %v2088 = vadd.f32 0.0, %v2087
        %v2089 = vpop.f32.mrb[0].mxu0
        %2090 = vmatprep.mubr.bf16.mxu0 0
        %2091 = vmatmul.mubr.bf16.gmra.mrb[0].mxu0 %v1921
        %v2092 = vpop.f32.mrb[0].mxu0
        %v2093 = vadd.f32 0.0, %v2092
        %v2094 = vpop.f32.mrb[0].mxu0
        %v2095 = vpop.f32.mrb[0].mxu0
        %v2096 = vadd.f32 0.0, %v2095
        %v2097 = vpop.f32.mrb[0].mxu0
        %2098 = vdwg.mxu0
        %v2099 = vmax.f32 %v2005, 0.0
        %v2100 = vmax.f32 %v2008, 0.0
        %v2101 = vmax.f32 %v2013, 0.0
        %v2102 = vmax.f32 %v2016, 0.0
        %v2103 = vmax.f32 %v2021, 0.0
        %v2104 = vmax.f32 %v2024, 0.0
        %v2105 = vmax.f32 %v2029, 0.0
        %v2106 = vmax.f32 %v2032, 0.0
        %v2107 = vmax.f32 %v2037, 0.0
        %v2108 = vmax.f32 %v2040, 0.0
        %v2109 = vmax.f32 %v2045, 0.0
        %v2110 = vmax.f32 %v2048, 0.0
        %v2111 = vmax.f32 %v2053, 0.0
        %v2112 = vmax.f32 %v2056, 0.0
        %v2113 = vmax.f32 %v2061, 0.0
        %v2114 = vmax.f32 %v2064, 0.0
        %v2115 = vmax.f32 %v2069, 0.0
        %v2116 = vmax.f32 %v2072, 0.0
        %v2117 = vmax.f32 %v2077, 0.0
        %v2118 = vmax.f32 %v2080, 0.0
        %v2119 = vmax.f32 %v2085, 0.0
        %v2120 = vmax.f32 %v2088, 0.0
        %v2121 = vmax.f32 %v2093, 0.0
        %v2122 = vmax.f32 %v2096, 0.0
        %v2123 = vpack.c.bf16 %v2100, %v2099
        %v2124 = vpack.c.bf16 %v2102, %v2101
        %v2125 = vpack.c.bf16 %v2104, %v2103
        %v2126 = vpack.c.bf16 %v2106, %v2105
        %v2127 = vpack.c.bf16 %v2108, %v2107
        %v2128 = vpack.c.bf16 %v2110, %v2109
        %v2129 = vpack.c.bf16 %v2112, %v2111
        %v2130 = vpack.c.bf16 %v2114, %v2113
        %v2131 = vpack.c.bf16 %v2116, %v2115
        %v2132 = vpack.c.bf16 %v2118, %v2117
        %v2133 = vpack.c.bf16 %v2120, %v2119
        %v2134 = vpack.c.bf16 %v2122, %v2121
        %v2151 = vunpack.c.l.b16 %v252
        %v2152 = vunpack.c.l.b16 %v253
        %v2153 = vunpack.c.l.b16 %v254
        %v2154 = vunpack.c.l.b16 %v255
        %v2155 = vunpack.c.l.b16 %v256
        %v2156 = vunpack.c.l.b16 %v257
        %v2157 = vunpack.c.l.b16 %v258
        %v2158 = vunpack.c.l.b16 %v259
        %v2159 = vunpack.c.l.b16 %v260
        %v2160 = vunpack.c.l.b16 %v261
        %v2161 = vunpack.c.l.b16 %v262
        %v2162 = vunpack.c.l.b16 %v263
        %v2163 = vunpack.c.l.b16 %v264
        %v2164 = vunpack.c.l.b16 %v265
        %v2165 = vunpack.c.l.b16 %v266
        %v2166 = vunpack.c.l.b16 %v267
        %v2167 = vpack.c.b16 %v2152, %v2151
        %v2168 = vpack.c.b16 %v2154, %v2153
        %v2169 = vpack.c.b16 %v2156, %v2155
        %v2170 = vpack.c.b16 %v2158, %v2157
        %v2171 = vpack.c.b16 %v2160, %v2159
        %v2172 = vpack.c.b16 %v2162, %v2161
        %v2173 = vpack.c.b16 %v2164, %v2163
        %v2174 = vpack.c.b16 %v2166, %v2165
        %2183 = vmatprep.subr.bf16.mxu0 0
        %2184 = vmatpush1.bf16.msra.mxu0 %v2167
        %2185 = vmatprep.subr.bf16.mxu0 0
        %2186 = vmatpush1.bf16.msra.mxu0 %v2168
        %2187 = vmatprep.subr.bf16.mxu0 0
        %2188 = vmatpush1.bf16.msra.mxu0 %v2169
        %2189 = vmatprep.subr.bf16.mxu0 0
        %2190 = vmatpush1.bf16.msra.mxu0 %v2170
        %2191 = vmatprep.subr.bf16.mxu0 0
        %2192 = vmatpush1.bf16.msra.mxu0 %v2171
        %2193 = vmatprep.subr.bf16.mxu0 0
        %2194 = vmatpush1.bf16.msra.mxu0 %v2172
        %2195 = vmatprep.subr.bf16.mxu0 0
        %2196 = vmatpush1.bf16.msra.mxu0 %v2173
        %2197 = vmatprep.subr.bf16.mxu0 0
        %2198 = vmatpush1.bf16.msra.mxu0 %v2174
        %2199 = vmatprep.subr.bf16.mxu0 0
        %2200 = vmatpush1.bf16.msra.mxu0 0
        %2201 = vmatprep.subr.bf16.mxu0 0
        %2202 = vmatpush1.bf16.msra.mxu0 0
        %2203 = vmatprep.subr.bf16.mxu0 0
        %2204 = vmatpush1.bf16.msra.mxu0 0
        %2205 = vmatprep.subr.bf16.mxu0 0
        %2206 = vmatpush1.bf16.msra.mxu0 0
        %2207 = vmatprep.subr.bf16.mxu0 0
        %2208 = vmatpush1.bf16.msra.mxu0 0
        %2209 = vmatprep.subr.bf16.mxu0 0
        %2210 = vmatpush1.bf16.msra.mxu0 0
        %2211 = vmatprep.subr.bf16.mxu0 0
        %2212 = vmatpush1.bf16.msra.mxu0 0
        %2213 = vmatprep.subr.bf16.mxu0 0
        %2214 = vmatpush1.bf16.msra.mxu0 0
        %2215 = vmatprep.mubr.bf16.mxu0 0
        %2216 = vmatmul.mubr.bf16.gmra.mrb[0].mxu0 %v2123
        %v2217 = vpop.f32.mrb[0].mxu0
        %v2218 = vadd.f32 0.0, %v2217
        %v2219 = vpop.f32.mrb[0].mxu0
        %v2220 = vpop.f32.mrb[0].mxu0
        %v2221 = vadd.f32 0.0, %v2220
        %v2222 = vpop.f32.mrb[0].mxu0
        %2223 = vmatprep.mubr.bf16.mxu0 0
        %2224 = vmatmul.mubr.bf16.gmra.mrb[0].mxu0 %v2124
        %v2225 = vpop.f32.mrb[0].mxu0
        %v2226 = vadd.f32 0.0, %v2225
        %v2227 = vpop.f32.mrb[0].mxu0
        %v2228 = vpop.f32.mrb[0].mxu0
        %v2229 = vadd.f32 0.0, %v2228
        %v2230 = vpop.f32.mrb[0].mxu0
        %2231 = vmatprep.mubr.bf16.mxu0 0
        %2232 = vmatmul.mubr.bf16.gmra.mrb[0].mxu0 %v2125
        %v2233 = vpop.f32.mrb[0].mxu0
        %v2234 = vadd.f32 0.0, %v2233
        %v2235 = vpop.f32.mrb[0].mxu0
        %v2236 = vpop.f32.mrb[0].mxu0
        %v2237 = vadd.f32 0.0, %v2236
        %v2238 = vpop.f32.mrb[0].mxu0
        %2239 = vmatprep.mubr.bf16.mxu0 0
        %2240 = vmatmul.mubr.bf16.gmra.mrb[0].mxu0 %v2126
        %v2241 = vpop.f32.mrb[0].mxu0
        %v2242 = vadd.f32 0.0, %v2241
        %v2243 = vpop.f32.mrb[0].mxu0
        %v2244 = vpop.f32.mrb[0].mxu0
        %v2245 = vadd.f32 0.0, %v2244
        %v2246 = vpop.f32.mrb[0].mxu0
        %2247 = vmatprep.mubr.bf16.mxu0 0
        %2248 = vmatmul.mubr.bf16.gmra.mrb[0].mxu0 %v2127
        %v2249 = vpop.f32.mrb[0].mxu0
        %v2250 = vadd.f32 0.0, %v2249
        %v2251 = vpop.f32.mrb[0].mxu0
        %v2252 = vpop.f32.mrb[0].mxu0
        %v2253 = vadd.f32 0.0, %v2252
        %v2254 = vpop.f32.mrb[0].mxu0
        %2255 = vmatprep.mubr.bf16.mxu0 0
        %2256 = vmatmul.mubr.bf16.gmra.mrb[0].mxu0 %v2128
        %v2257 = vpop.f32.mrb[0].mxu0
        %v2258 = vadd.f32 0.0, %v2257
        %v2259 = vpop.f32.mrb[0].mxu0
        %v2260 = vpop.f32.mrb[0].mxu0
        %v2261 = vadd.f32 0.0, %v2260
        %v2262 = vpop.f32.mrb[0].mxu0
        %2263 = vmatprep.mubr.bf16.mxu0 0
        %2264 = vmatmul.mubr.bf16.gmra.mrb[0].mxu0 %v2129
        %v2265 = vpop.f32.mrb[0].mxu0
        %v2266 = vadd.f32 0.0, %v2265
        %v2267 = vpop.f32.mrb[0].mxu0
        %v2268 = vpop.f32.mrb[0].mxu0
        %v2269 = vadd.f32 0.0, %v2268
        %v2270 = vpop.f32.mrb[0].mxu0
        %2271 = vmatprep.mubr.bf16.mxu0 0
        %2272 = vmatmul.mubr.bf16.gmra.mrb[0].mxu0 %v2130
        %v2273 = vpop.f32.mrb[0].mxu0
        %v2274 = vadd.f32 0.0, %v2273
        %v2275 = vpop.f32.mrb[0].mxu0
        %v2276 = vpop.f32.mrb[0].mxu0
        %v2277 = vadd.f32 0.0, %v2276
        %v2278 = vpop.f32.mrb[0].mxu0
        %2279 = vmatprep.mubr.bf16.mxu0 0
        %2280 = vmatmul.mubr.bf16.gmra.mrb[0].mxu0 %v2131
        %v2281 = vpop.f32.mrb[0].mxu0
        %v2282 = vadd.f32 0.0, %v2281
        %v2283 = vpop.f32.mrb[0].mxu0
        %v2284 = vpop.f32.mrb[0].mxu0
        %v2285 = vadd.f32 0.0, %v2284
        %v2286 = vpop.f32.mrb[0].mxu0
        %2287 = vmatprep.mubr.bf16.mxu0 0
        %2288 = vmatmul.mubr.bf16.gmra.mrb[0].mxu0 %v2132
        %v2289 = vpop.f32.mrb[0].mxu0
        %v2290 = vadd.f32 0.0, %v2289
        %v2291 = vpop.f32.mrb[0].mxu0
        %v2292 = vpop.f32.mrb[0].mxu0
        %v2293 = vadd.f32 0.0, %v2292
        %v2294 = vpop.f32.mrb[0].mxu0
        %2295 = vmatprep.mubr.bf16.mxu0 0
        %2296 = vmatmul.mubr.bf16.gmra.mrb[0].mxu0 %v2133
        %v2297 = vpop.f32.mrb[0].mxu0
        %v2298 = vadd.f32 0.0, %v2297
        %v2299 = vpop.f32.mrb[0].mxu0
        %v2300 = vpop.f32.mrb[0].mxu0
        %v2301 = vadd.f32 0.0, %v2300
        %v2302 = vpop.f32.mrb[0].mxu0
        %2303 = vmatprep.mubr.bf16.mxu0 0
        %2304 = vmatmul.mubr.bf16.gmra.mrb[0].mxu0 %v2134
        %v2305 = vpop.f32.mrb[0].mxu0
        %v2306 = vadd.f32 0.0, %v2305
        %v2307 = vpop.f32.mrb[0].mxu0
        %v2308 = vpop.f32.mrb[0].mxu0
        %v2309 = vadd.f32 0.0, %v2308
        %v2310 = vpop.f32.mrb[0].mxu0
        %2311 = vdwg.mxu0
        %v2312 = vadd.f32 %v1886, %v2218
        %v2313 = vadd.f32 %v1887, %v2221
        %v2314 = vadd.f32 %v1888, %v2226
        %v2315 = vadd.f32 %v1889, %v2229
        %v2316 = vadd.f32 %v1890, %v2234
        %v2317 = vadd.f32 %v1891, %v2237
        %v2318 = vadd.f32 %v1892, %v2242
        %v2319 = vadd.f32 %v1893, %v2245
        %v2320 = vadd.f32 %v1894, %v2250
        %v2321 = vadd.f32 %v1895, %v2253
        %v2322 = vadd.f32 %v1896, %v2258
        %v2323 = vadd.f32 %v1897, %v2261
        %v2324 = vadd.f32 %v1898, %v2266
        %v2325 = vadd.f32 %v1899, %v2269
        %v2326 = vadd.f32 %v1900, %v2274
        %v2327 = vadd.f32 %v1901, %v2277
        %v2328 = vadd.f32 %v1902, %v2282
        %v2329 = vadd.f32 %v1903, %v2285
        %v2330 = vadd.f32 %v1904, %v2290
        %v2331 = vadd.f32 %v1905, %v2293
        %v2332 = vadd.f32 %v1906, %v2298
        %v2333 = vadd.f32 %v1907, %v2301
        %v2334 = vadd.f32 %v1908, %v2306
        %v2335 = vadd.f32 %v1909, %v2309
        %v2336 = vpack.c.bf16 %v2313, %v2312
        %v2337 = vpack.c.bf16 %v2315, %v2314
        %v2338 = vpack.c.bf16 %v2317, %v2316
        %v2339 = vpack.c.bf16 %v2319, %v2318
        %v2340 = vpack.c.bf16 %v2321, %v2320
        %v2341 = vpack.c.bf16 %v2323, %v2322
        %v2342 = vpack.c.bf16 %v2325, %v2324
        %v2343 = vpack.c.bf16 %v2327, %v2326
        %v2344 = vpack.c.bf16 %v2329, %v2328
        %v2345 = vpack.c.bf16 %v2331, %v2330
        %v2346 = vpack.c.bf16 %v2333, %v2332
        %v2347 = vpack.c.bf16 %v2335, %v2334
        %v2364 = vunpack.c.l.b16 %v284
        %v2365 = vunpack.c.l.b16 %v285
        %v2366 = vunpack.c.l.b16 %v286
        %v2367 = vunpack.c.l.b16 %v287
        %v2368 = vunpack.c.l.b16 %v288
        %v2369 = vunpack.c.l.b16 %v289
        %v2370 = vunpack.c.l.b16 %v290
        %v2371 = vunpack.c.l.b16 %v291
        %v2372 = vunpack.c.l.b16 %v292
        %v2373 = vunpack.c.l.b16 %v293
        %v2374 = vunpack.c.l.b16 %v294
        %v2375 = vunpack.c.l.b16 %v295
        %v2376 = vunpack.c.l.b16 %v296
        %v2377 = vunpack.c.l.b16 %v297
        %v2378 = vunpack.c.l.b16 %v298
        %v2379 = vunpack.c.l.b16 %v299
        %v2380 = vpack.c.b16 %v2365, %v2364
        %v2381 = vpack.c.b16 %v2367, %v2366
        %v2382 = vpack.c.b16 %v2369, %v2368
        %v2383 = vpack.c.b16 %v2371, %v2370
        %v2384 = vpack.c.b16 %v2373, %v2372
        %v2385 = vpack.c.b16 %v2375, %v2374
        %v2386 = vpack.c.b16 %v2377, %v2376
        %v2387 = vpack.c.b16 %v2379, %v2378
        %2396 = vmatprep.subr.bf16.mxu0 0
        %2397 = vmatpush1.bf16.msra.mxu0 %v2380
        %2398 = vmatprep.subr.bf16.mxu0 0
        %2399 = vmatpush1.bf16.msra.mxu0 %v2381
        %2400 = vmatprep.subr.bf16.mxu0 0
        %2401 = vmatpush1.bf16.msra.mxu0 %v2382
        %2402 = vmatprep.subr.bf16.mxu0 0
        %2403 = vmatpush1.bf16.msra.mxu0 %v2383
        %2404 = vmatprep.subr.bf16.mxu0 0
        %2405 = vmatpush1.bf16.msra.mxu0 %v2384
        %2406 = vmatprep.subr.bf16.mxu0 0
        %2407 = vmatpush1.bf16.msra.mxu0 %v2385
        %2408 = vmatprep.subr.bf16.mxu0 0
        %2409 = vmatpush1.bf16.msra.mxu0 %v2386
        %2410 = vmatprep.subr.bf16.mxu0 0
        %2411 = vmatpush1.bf16.msra.mxu0 %v2387
        %2412 = vmatprep.subr.bf16.mxu0 0
        %2413 = vmatpush1.bf16.msra.mxu0 0
        %2414 = vmatprep.subr.bf16.mxu0 0
        %2415 = vmatpush1.bf16.msra.mxu0 0
        %2416 = vmatprep.subr.bf16.mxu0 0
        %2417 = vmatpush1.bf16.msra.mxu0 0
        %2418 = vmatprep.subr.bf16.mxu0 0
        %2419 = vmatpush1.bf16.msra.mxu0 0
        %2420 = vmatprep.subr.bf16.mxu0 0
        %2421 = vmatpush1.bf16.msra.mxu0 0
        %2422 = vmatprep.subr.bf16.mxu0 0
        %2423 = vmatpush1.bf16.msra.mxu0 0
        %2424 = vmatprep.subr.bf16.mxu0 0
        %2425 = vmatpush1.bf16.msra.mxu0 0
        %2426 = vmatprep.subr.bf16.mxu0 0
        %2427 = vmatpush1.bf16.msra.mxu0 0
        %2428 = vmatprep.mubr.bf16.mxu0 0
        %2429 = vmatmul.mubr.bf16.gmra.mrb[0].mxu0 %v2336
        %v2430 = vpop.f32.mrb[0].mxu0
        %v2431 = vadd.f32 0.0, %v2430
        %v2432 = vpop.f32.mrb[0].mxu0
        %v2433 = vpop.f32.mrb[0].mxu0
        %v2434 = vadd.f32 0.0, %v2433
        %v2435 = vpop.f32.mrb[0].mxu0
        %2436 = vmatprep.mubr.bf16.mxu0 0
        %2437 = vmatmul.mubr.bf16.gmra.mrb[0].mxu0 %v2337
        %v2438 = vpop.f32.mrb[0].mxu0
        %v2439 = vadd.f32 0.0, %v2438
        %v2440 = vpop.f32.mrb[0].mxu0
        %v2441 = vpop.f32.mrb[0].mxu0
        %v2442 = vadd.f32 0.0, %v2441
        %v2443 = vpop.f32.mrb[0].mxu0
        %2444 = vmatprep.mubr.bf16.mxu0 0
        %2445 = vmatmul.mubr.bf16.gmra.mrb[0].mxu0 %v2338
        %v2446 = vpop.f32.mrb[0].mxu0
        %v2447 = vadd.f32 0.0, %v2446
        %v2448 = vpop.f32.mrb[0].mxu0
        %v2449 = vpop.f32.mrb[0].mxu0
        %v2450 = vadd.f32 0.0, %v2449
        %v2451 = vpop.f32.mrb[0].mxu0
        %2452 = vmatprep.mubr.bf16.mxu0 0
        %2453 = vmatmul.mubr.bf16.gmra.mrb[0].mxu0 %v2339
        %v2454 = vpop.f32.mrb[0].mxu0
        %v2455 = vadd.f32 0.0, %v2454
        %v2456 = vpop.f32.mrb[0].mxu0
        %v2457 = vpop.f32.mrb[0].mxu0
        %v2458 = vadd.f32 0.0, %v2457
        %v2459 = vpop.f32.mrb[0].mxu0
        %2460 = vmatprep.mubr.bf16.mxu0 0
        %2461 = vmatmul.mubr.bf16.gmra.mrb[0].mxu0 %v2340
        %v2462 = vpop.f32.mrb[0].mxu0
        %v2463 = vadd.f32 0.0, %v2462
        %v2464 = vpop.f32.mrb[0].mxu0
        %v2465 = vpop.f32.mrb[0].mxu0
        %v2466 = vadd.f32 0.0, %v2465
        %v2467 = vpop.f32.mrb[0].mxu0
        %2468 = vmatprep.mubr.bf16.mxu0 0
        %2469 = vmatmul.mubr.bf16.gmra.mrb[0].mxu0 %v2341
        %v2470 = vpop.f32.mrb[0].mxu0
        %v2471 = vadd.f32 0.0, %v2470
        %v2472 = vpop.f32.mrb[0].mxu0
        %v2473 = vpop.f32.mrb[0].mxu0
        %v2474 = vadd.f32 0.0, %v2473
        %v2475 = vpop.f32.mrb[0].mxu0
        %2476 = vmatprep.mubr.bf16.mxu0 0
        %2477 = vmatmul.mubr.bf16.gmra.mrb[0].mxu0 %v2342
        %v2478 = vpop.f32.mrb[0].mxu0
        %v2479 = vadd.f32 0.0, %v2478
        %v2480 = vpop.f32.mrb[0].mxu0
        %v2481 = vpop.f32.mrb[0].mxu0
        %v2482 = vadd.f32 0.0, %v2481
        %v2483 = vpop.f32.mrb[0].mxu0
        %2484 = vmatprep.mubr.bf16.mxu0 0
        %2485 = vmatmul.mubr.bf16.gmra.mrb[0].mxu0 %v2343
        %v2486 = vpop.f32.mrb[0].mxu0
        %v2487 = vadd.f32 0.0, %v2486
        %v2488 = vpop.f32.mrb[0].mxu0
        %v2489 = vpop.f32.mrb[0].mxu0
        %v2490 = vadd.f32 0.0, %v2489
        %v2491 = vpop.f32.mrb[0].mxu0
        %2492 = vmatprep.mubr.bf16.mxu0 0
        %2493 = vmatmul.mubr.bf16.gmra.mrb[0].mxu0 %v2344
        %v2494 = vpop.f32.mrb[0].mxu0
        %v2495 = vadd.f32 0.0, %v2494
        %v2496 = vpop.f32.mrb[0].mxu0
        %v2497 = vpop.f32.mrb[0].mxu0
        %v2498 = vadd.f32 0.0, %v2497
        %v2499 = vpop.f32.mrb[0].mxu0
        %2500 = vmatprep.mubr.bf16.mxu0 0
        %2501 = vmatmul.mubr.bf16.gmra.mrb[0].mxu0 %v2345
        %v2502 = vpop.f32.mrb[0].mxu0
        %v2503 = vadd.f32 0.0, %v2502
        %v2504 = vpop.f32.mrb[0].mxu0
        %v2505 = vpop.f32.mrb[0].mxu0
        %v2506 = vadd.f32 0.0, %v2505
        %v2507 = vpop.f32.mrb[0].mxu0
        %2508 = vmatprep.mubr.bf16.mxu0 0
        %2509 = vmatmul.mubr.bf16.gmra.mrb[0].mxu0 %v2346
        %v2510 = vpop.f32.mrb[0].mxu0
        %v2511 = vadd.f32 0.0, %v2510
        %v2512 = vpop.f32.mrb[0].mxu0
        %v2513 = vpop.f32.mrb[0].mxu0
        %v2514 = vadd.f32 0.0, %v2513
        %v2515 = vpop.f32.mrb[0].mxu0
        %2516 = vmatprep.mubr.bf16.mxu0 0
        %2517 = vmatmul.mubr.bf16.gmra.mrb[0].mxu0 %v2347
        %v2518 = vpop.f32.mrb[0].mxu0
        %v2519 = vadd.f32 0.0, %v2518
        %v2520 = vpop.f32.mrb[0].mxu0
        %v2521 = vpop.f32.mrb[0].mxu0
        %v2522 = vadd.f32 0.0, %v2521
        %v2523 = vpop.f32.mrb[0].mxu0
        %2524 = vdwg.mxu0
        %v2525 = vadd.f32 %v322, 0.0
        %v2526 = vpack.c.bf16 %v2525, %v2525
        %v2543 = vunpack.c.l.b16 %v268
        %v2544 = vunpack.c.l.b16 %v269
        %v2545 = vunpack.c.l.b16 %v270
        %v2546 = vunpack.c.l.b16 %v271
        %v2547 = vunpack.c.l.b16 %v272
        %v2548 = vunpack.c.l.b16 %v273
        %v2549 = vunpack.c.l.b16 %v274
        %v2550 = vunpack.c.l.b16 %v275
        %v2551 = vunpack.c.l.b16 %v276
        %v2552 = vunpack.c.l.b16 %v277
        %v2553 = vunpack.c.l.b16 %v278
        %v2554 = vunpack.c.l.b16 %v279
        %v2555 = vunpack.c.l.b16 %v280
        %v2556 = vunpack.c.l.b16 %v281
        %v2557 = vunpack.c.l.b16 %v282
        %v2558 = vunpack.c.l.b16 %v283
        %v2559 = vpack.c.b16 %v2544, %v2543
        %v2560 = vpack.c.b16 %v2546, %v2545
        %v2561 = vpack.c.b16 %v2548, %v2547
        %v2562 = vpack.c.b16 %v2550, %v2549
        %v2563 = vpack.c.b16 %v2552, %v2551
        %v2564 = vpack.c.b16 %v2554, %v2553
        %v2565 = vpack.c.b16 %v2556, %v2555
        %v2566 = vpack.c.b16 %v2558, %v2557
        %2575 = vmatprep.subr.bf16.mxu0 0
        %2576 = vmatpush1.bf16.msra.mxu0 %v2559
        %2577 = vmatprep.subr.bf16.mxu0 0
        %2578 = vmatpush1.bf16.msra.mxu0 %v2560
        %2579 = vmatprep.subr.bf16.mxu0 0
        %2580 = vmatpush1.bf16.msra.mxu0 %v2561
        %2581 = vmatprep.subr.bf16.mxu0 0
        %2582 = vmatpush1.bf16.msra.mxu0 %v2562
        %2583 = vmatprep.subr.bf16.mxu0 0
        %2584 = vmatpush1.bf16.msra.mxu0 %v2563
        %2585 = vmatprep.subr.bf16.mxu0 0
        %2586 = vmatpush1.bf16.msra.mxu0 %v2564
        %2587 = vmatprep.subr.bf16.mxu0 0
        %2588 = vmatpush1.bf16.msra.mxu0 %v2565
        %2589 = vmatprep.subr.bf16.mxu0 0
        %2590 = vmatpush1.bf16.msra.mxu0 %v2566
        %2591 = vmatprep.subr.bf16.mxu0 0
        %2592 = vmatpush1.bf16.msra.mxu0 0
        %2593 = vmatprep.subr.bf16.mxu0 0
        %2594 = vmatpush1.bf16.msra.mxu0 0
        %2595 = vmatprep.subr.bf16.mxu0 0
        %2596 = vmatpush1.bf16.msra.mxu0 0
        %2597 = vmatprep.subr.bf16.mxu0 0
        %2598 = vmatpush1.bf16.msra.mxu0 0
        %2599 = vmatprep.subr.bf16.mxu0 0
        %2600 = vmatpush1.bf16.msra.mxu0 0
        %2601 = vmatprep.subr.bf16.mxu0 0
        %2602 = vmatpush1.bf16.msra.mxu0 0
        %2603 = vmatprep.subr.bf16.mxu0 0
        %2604 = vmatpush1.bf16.msra.mxu0 0
        %2605 = vmatprep.subr.bf16.mxu0 0
        %2606 = vmatpush1.bf16.msra.mxu0 0
        %2607 = vmatprep.mubr.bf16.mxu0 0
        %2608 = vmatmul.mubr.bf16.gmra.mrb[0].mxu0 %v2526
        %v2609 = vpop.f32.mrb[0].mxu0
        %v2610 = vadd.f32 0.0, %v2609
        %v2611 = vpop.f32.mrb[0].mxu0
        %v2612 = vpop.f32.mrb[0].mxu0
        %v2613 = vpop.f32.mrb[0].mxu0
        %2614 = vdwg.mxu0
        %v2615 = vpack.c.bf16 %v2610, %v2610
        %v2616 = vpack.c.bf16 %v2434, %v2431
        %v2617 = vpack.c.bf16 %v2442, %v2439
        %v2618 = vpack.c.bf16 %v2450, %v2447
        %v2619 = vpack.c.bf16 %v2458, %v2455
        %v2621 = vsel %vm830, %v2615, 0
        %v2624 = vsel %vm830, %v2616, 0
        %v2627 = vsel %vm830, %v2617, 0
        %v2630 = vsel %vm830, %v2618, 0
        %v2633 = vsel %vm830, %v2619, 0
        %2635 = vmatprep.subr.bf16.mxu0 0
        %2636 = vmatpush1.bf16.xpose.msra.mxu0 %v2624
        %2637 = vmatprep.subr.bf16.mxu0 0
        %2638 = vmatpush1.bf16.xpose.msra.mxu0 %v2627
        %2639 = vmatprep.subr.bf16.mxu0 0
        %2640 = vmatpush1.bf16.xpose.msra.mxu0 %v2630
        %2641 = vmatprep.subr.bf16.mxu0 0
        %2642 = vmatpush1.bf16.xpose.msra.mxu0 %v2633
        %2643 = vmatprep.subr.bf16.mxu0 0
        %2644 = vmatpush1.bf16.xpose.msra.mxu0 0
        %2645 = vmatprep.subr.bf16.mxu0 0
        %2646 = vmatpush1.bf16.xpose.msra.mxu0 0
        %2647 = vmatprep.subr.bf16.mxu0 0
        %2648 = vmatpush1.bf16.xpose.msra.mxu0 0
        %2649 = vmatprep.subr.bf16.mxu0 0
        %2650 = vmatpush1.bf16.xpose.msra.mxu0 0
        %2651 = vmatprep.subr.bf16.mxu0 0
        %2652 = vmatpush1.bf16.xpose.msra.mxu0 0
        %2653 = vmatprep.subr.bf16.mxu0 0
        %2654 = vmatpush1.bf16.xpose.msra.mxu0 0
        %2655 = vmatprep.subr.bf16.mxu0 0
        %2656 = vmatpush1.bf16.xpose.msra.mxu0 0
        %2657 = vmatprep.subr.bf16.mxu0 0
        %2658 = vmatpush1.bf16.xpose.msra.mxu0 0
        %2659 = vmatprep.subr.bf16.mxu0 0
        %2660 = vmatpush1.bf16.xpose.msra.mxu0 0
        %2661 = vmatprep.subr.bf16.mxu0 0
        %2662 = vmatpush1.bf16.xpose.msra.mxu0 0
        %2663 = vmatprep.subr.bf16.mxu0 0
        %2664 = vmatpush1.bf16.xpose.msra.mxu0 0
        %2665 = vmatprep.subr.bf16.mxu0 0
        %2666 = vmatpush1.bf16.xpose.msra.mxu0 0
        %2667 = vmatprep.mubr.bf16.mxu0 0
        %2668 = vmatmul.mubr.bf16.gmra.mrb[0].mxu0 %v2621
        %v2669 = vpop.f32.mrb[0].mxu0
        %v2670 = vadd.f32 0.0, %v2669
        %v2671 = vpop.f32.mrb[0].mxu0
        %v2672 = vpop.f32.mrb[0].mxu0
        %v2673 = vpop.f32.mrb[0].mxu0
        %2674 = vdwg.mxu0
        %v2675 = vmul.f32 %v2670, 0.17677669
        %v2676 = vsel %vm435, %v2675, -inf
        %2677 = vmax.xlane.f32.xlu0 %v2676
        %v2678 = vpop.xlane.xlu0 %2677
        %v2679 = vsub.f32 %v2675, %v2678
        %v2680 = vmul.f32 %v2679, 1.442695
        %v2681 = vpow.pop %v2680
        %v2682 = vsel %vm435, %v2681, 0.0
        %2683 = vadd.xlane.f32.xlu0 %v2682
        %v2684 = vpop.xlane.xlu0 %2683
        %v2685 = vrcp.pop %v2684
        %v2686 = vmul.f32 %v2681, %v2685
        %v2687 = vpack.c.bf16 %v2686, %v2686
        %2692 = vrot.lane.b32.xlu0 %v2616, 96
        %v2693 = vpop.permute.xlu0 %2692
        %2694 = vrot.lane.b32.xlu0 %v2617, 96
        %v2695 = vpop.permute.xlu0 %2694
        %2696 = vrot.lane.b32.xlu0 %v2618, 96
        %v2697 = vpop.permute.xlu0 %2696
        %2698 = vrot.lane.b32.xlu0 %v2619, 96
        %v2699 = vpop.permute.xlu0 %2698
        %v2705 = vsel %vm435, %v2687, 0
        %2707 = vmatprep.subr.bf16.mxu0 0
        %2708 = vmatpush1.bf16.msra.mxu0 %v2693
        %2709 = vmatprep.subr.bf16.mxu0 0
        %2710 = vmatpush1.bf16.msra.mxu0 %v2695
        %2711 = vmatprep.subr.bf16.mxu0 0
        %2712 = vmatpush1.bf16.msra.mxu0 %v2697
        %2713 = vmatprep.subr.bf16.mxu0 0
        %2714 = vmatpush1.bf16.msra.mxu0 %v2699
        %2715 = vmatprep.subr.bf16.mxu0 0
        %2716 = vmatpush1.bf16.msra.mxu0 0
        %2717 = vmatprep.subr.bf16.mxu0 0
        %2718 = vmatpush1.bf16.msra.mxu0 0
        %2719 = vmatprep.subr.bf16.mxu0 0
        %2720 = vmatpush1.bf16.msra.mxu0 0
        %2721 = vmatprep.subr.bf16.mxu0 0
        %2722 = vmatpush1.bf16.msra.mxu0 0
        %2723 = vmatprep.subr.bf16.mxu0 0
        %2724 = vmatpush1.bf16.msra.mxu0 0
        %2725 = vmatprep.subr.bf16.mxu0 0
        %2726 = vmatpush1.bf16.msra.mxu0 0
        %2727 = vmatprep.subr.bf16.mxu0 0
        %2728 = vmatpush1.bf16.msra.mxu0 0
        %2729 = vmatprep.subr.bf16.mxu0 0
        %2730 = vmatpush1.bf16.msra.mxu0 0
        %2731 = vmatprep.subr.bf16.mxu0 0
        %2732 = vmatpush1.bf16.msra.mxu0 0
        %2733 = vmatprep.subr.bf16.mxu0 0
        %2734 = vmatpush1.bf16.msra.mxu0 0
        %2735 = vmatprep.subr.bf16.mxu0 0
        %2736 = vmatpush1.bf16.msra.mxu0 0
        %2737 = vmatprep.subr.bf16.mxu0 0
        %2738 = vmatpush1.bf16.msra.mxu0 0
        %2739 = vmatprep.mubr.bf16.mxu0 0
        %2740 = vmatmul.mubr.bf16.gmra.mrb[0].mxu0 %v2705
        %v2741 = vpop.f32.mrb[0].mxu0
        %v2742 = vadd.f32 0.0, %v2741
        %v2743 = vpop.f32.mrb[0].mxu0
        %v2744 = vpop.f32.mrb[0].mxu0
        %v2745 = vpop.f32.mrb[0].mxu0
        %2746 = vdwg.mxu0
        %v2747 = vpack.c.bf16 %v2742, %v2742
        %v2752 = vunpack.c.l.b16 %v300
        %v2753 = vunpack.c.l.b16 %v301
        %v2754 = vunpack.c.l.b16 %v302
        %v2755 = vunpack.c.l.b16 %v303
        %v2756 = vpack.c.b16 %v2753, %v2752
        %v2757 = vpack.c.b16 %v2755, %v2754
        %v2761 = vsel %vm830, %v2747, 0
        %2763 = vmatprep.subr.bf16.mxu0 0
        %2764 = vmatpush1.bf16.msra.mxu0 %v2756
        %2765 = vmatprep.subr.bf16.mxu0 0
        %2766 = vmatpush1.bf16.msra.mxu0 %v2757
        %2767 = vmatprep.subr.bf16.mxu0 0
        %2768 = vmatpush1.bf16.msra.mxu0 0
        %2769 = vmatprep.subr.bf16.mxu0 0
        %2770 = vmatpush1.bf16.msra.mxu0 0
        %2771 = vmatprep.subr.bf16.mxu0 0
        %2772 = vmatpush1.bf16.msra.mxu0 0
        %2773 = vmatprep.subr.bf16.mxu0 0
        %2774 = vmatpush1.bf16.msra.mxu0 0
        %2775 = vmatprep.subr.bf16.mxu0 0
        %2776 = vmatpush1.bf16.msra.mxu0 0
        %2777 = vmatprep.subr.bf16.mxu0 0
        %2778 = vmatpush1.bf16.msra.mxu0 0
        %2779 = vmatprep.subr.bf16.mxu0 0
        %2780 = vmatpush1.bf16.msra.mxu0 0
        %2781 = vmatprep.subr.bf16.mxu0 0
        %2782 = vmatpush1.bf16.msra.mxu0 0
        %2783 = vmatprep.subr.bf16.mxu0 0
        %2784 = vmatpush1.bf16.msra.mxu0 0
        %2785 = vmatprep.subr.bf16.mxu0 0
        %2786 = vmatpush1.bf16.msra.mxu0 0
        %2787 = vmatprep.subr.bf16.mxu0 0
        %2788 = vmatpush1.bf16.msra.mxu0 0
        %2789 = vmatprep.subr.bf16.mxu0 0
        %2790 = vmatpush1.bf16.msra.mxu0 0
        %2791 = vmatprep.subr.bf16.mxu0 0
        %2792 = vmatpush1.bf16.msra.mxu0 0
        %2793 = vmatprep.subr.bf16.mxu0 0
        %2794 = vmatpush1.bf16.msra.mxu0 0
        %2795 = vmatprep.mubr.bf16.mxu0 0
        %2796 = vmatmul.mubr.bf16.gmra.mrb[0].mxu0 %v2761
        %v2797 = vpop.f32.mrb[0].mxu0
        %v2798 = vadd.f32 0.0, %v2797
        %v2799 = vpop.f32.mrb[0].mxu0
        %v2800 = vpop.f32.mrb[0].mxu0
        %v2801 = vpop.f32.mrb[0].mxu0
        %2802 = vdwg.mxu0
        %v2803 = vadd.f32 %v2525, %v2798
        %v2804 = vpack.c.bf16 %v2803, %v2803
        %v2805 = vlaneseq
        %v2806 = vshrl.u32 %v2805, 7
        %v2807 = vsub.s32 0, %v2806
        %v2808 = vrot.slane %v321, %v2807
        %v2825 = vunpack.c.l.b16 %v304
        %v2826 = vunpack.c.l.b16 %v305
        %v2827 = vunpack.c.l.b16 %v306
        %v2828 = vunpack.c.l.b16 %v307
        %v2829 = vunpack.c.l.b16 %v308
        %v2830 = vunpack.c.l.b16 %v309
        %v2831 = vunpack.c.l.b16 %v310
        %v2832 = vunpack.c.l.b16 %v311
        %v2833 = vunpack.c.l.b16 %v312
        %v2834 = vunpack.c.l.b16 %v313
        %v2835 = vunpack.c.l.b16 %v314
        %v2836 = vunpack.c.l.b16 %v315
        %v2837 = vunpack.c.l.b16 %v316
        %v2838 = vunpack.c.l.b16 %v317
        %v2839 = vunpack.c.l.b16 %v318
        %v2840 = vunpack.c.l.b16 %v319
        %v2841 = vpack.c.b16 %v2826, %v2825
        %v2842 = vpack.c.b16 %v2828, %v2827
        %v2843 = vpack.c.b16 %v2830, %v2829
        %v2844 = vpack.c.b16 %v2832, %v2831
        %v2845 = vpack.c.b16 %v2834, %v2833
        %v2846 = vpack.c.b16 %v2836, %v2835
        %v2847 = vpack.c.b16 %v2838, %v2837
        %v2848 = vpack.c.b16 %v2840, %v2839
        %2857 = vmatprep.subr.bf16.mxu0 0
        %2858 = vmatpush1.bf16.msra.mxu0 %v2841
        %2859 = vmatprep.subr.bf16.mxu0 0
        %2860 = vmatpush1.bf16.msra.mxu0 %v2842
        %2861 = vmatprep.subr.bf16.mxu0 0
        %2862 = vmatpush1.bf16.msra.mxu0 %v2843
        %2863 = vmatprep.subr.bf16.mxu0 0
        %2864 = vmatpush1.bf16.msra.mxu0 %v2844
        %2865 = vmatprep.subr.bf16.mxu0 0
        %2866 = vmatpush1.bf16.msra.mxu0 %v2845
        %2867 = vmatprep.subr.bf16.mxu0 0
        %2868 = vmatpush1.bf16.msra.mxu0 %v2846
        %2869 = vmatprep.subr.bf16.mxu0 0
        %2870 = vmatpush1.bf16.msra.mxu0 %v2847
        %2871 = vmatprep.subr.bf16.mxu0 0
        %2872 = vmatpush1.bf16.msra.mxu0 %v2848
        %2873 = vmatprep.subr.bf16.mxu0 0
        %2874 = vmatpush1.bf16.msra.mxu0 0
        %2875 = vmatprep.subr.bf16.mxu0 0
        %2876 = vmatpush1.bf16.msra.mxu0 0
        %2877 = vmatprep.subr.bf16.mxu0 0
        %2878 = vmatpush1.bf16.msra.mxu0 0
        %2879 = vmatprep.subr.bf16.mxu0 0
        %2880 = vmatpush1.bf16.msra.mxu0 0
        %2881 = vmatprep.subr.bf16.mxu0 0
        %2882 = vmatpush1.bf16.msra.mxu0 0
        %2883 = vmatprep.subr.bf16.mxu0 0
        %2884 = vmatpush1.bf16.msra.mxu0 0
        %2885 = vmatprep.subr.bf16.mxu0 0
        %2886 = vmatpush1.bf16.msra.mxu0 0
        %2887 = vmatprep.subr.bf16.mxu0 0
        %2888 = vmatpush1.bf16.msra.mxu0 0
        %2889 = vmatprep.mubr.bf16.mxu0 0
        %2890 = vmatmul.mubr.bf16.gmra.mrb[0].mxu0 %v2804
        %v2891 = vpop.f32.mrb[0].mxu0
        %v2892 = vadd.f32 %v2808, %v2891
        %v2893 = vpop.f32.mrb[0].mxu0
        %v2894 = vpop.f32.mrb[0].mxu0
        %v2895 = vpop.f32.mrb[0].mxu0
        %2896 = vdwg.mxu0
        %v2897 = vlaneseq
        %v2898 = vand.u32 %v2897, 127
        %vm2899 = vcmp.ge.s32.totalorder %v2898, 5
        %vm2900 = vcmp.lt.s32.totalorder %v2898, 9
        %vm2901 = vmand %vm2899, %vm2900
        %v2902 = vsub.f32 0.0, %v2892
        %v2903 = vmul.f32 %v2902, 1.442695
        %v2904 = vpow.pop %v2903
        %v2905 = vadd.f32 %v2904, 1.0
        %v2906 = vrcp.pop %v2905
        %v2907 = vmul.f32 1.0, %v2906
        %v2908 = vsel %vm2901, %v2907, %v2892
        %2909 = vst [vmem:[%s194] sm:$0xff] %v2908
        %2910 = vst [vmem:[%s201] sm:$0xff] %v2803
        %v2911 = vadd.f32 %v322, %v2803
        %v2912 = vpack.c.bf16 %v2911, %v2911
        %2913 = vmatprep.subr.bf16.mxu0 0
        %2914 = vmatpush1.bf16.msra.mxu0 %v2559
        %2915 = vmatprep.subr.bf16.mxu0 0
        %2916 = vmatpush1.bf16.msra.mxu0 %v2560
        %2917 = vmatprep.subr.bf16.mxu0 0
        %2918 = vmatpush1.bf16.msra.mxu0 %v2561
        %2919 = vmatprep.subr.bf16.mxu0 0
        %2920 = vmatpush1.bf16.msra.mxu0 %v2562
        %2921 = vmatprep.subr.bf16.mxu0 0
        %2922 = vmatpush1.bf16.msra.mxu0 %v2563
        %2923 = vmatprep.subr.bf16.mxu0 0
        %2924 = vmatpush1.bf16.msra.mxu0 %v2564
        %2925 = vmatprep.subr.bf16.mxu0 0
        %2926 = vmatpush1.bf16.msra.mxu0 %v2565
        %2927 = vmatprep.subr.bf16.mxu0 0
        %2928 = vmatpush1.bf16.msra.mxu0 %v2566
        %2929 = vmatprep.subr.bf16.mxu0 0
        %2930 = vmatpush1.bf16.msra.mxu0 0
        %2931 = vmatprep.subr.bf16.mxu0 0
        %2932 = vmatpush1.bf16.msra.mxu0 0
        %2933 = vmatprep.subr.bf16.mxu0 0
        %2934 = vmatpush1.bf16.msra.mxu0 0
        %2935 = vmatprep.subr.bf16.mxu0 0
        %2936 = vmatpush1.bf16.msra.mxu0 0
        %2937 = vmatprep.subr.bf16.mxu0 0
        %2938 = vmatpush1.bf16.msra.mxu0 0
        %2939 = vmatprep.subr.bf16.mxu0 0
        %2940 = vmatpush1.bf16.msra.mxu0 0
        %2941 = vmatprep.subr.bf16.mxu0 0
        %2942 = vmatpush1.bf16.msra.mxu0 0
        %2943 = vmatprep.subr.bf16.mxu0 0
        %2944 = vmatpush1.bf16.msra.mxu0 0
        %2945 = vmatprep.mubr.bf16.mxu0 0
        %2946 = vmatmul.mubr.bf16.gmra.mrb[0].mxu0 %v2912
        %v2947 = vpop.f32.mrb[0].mxu0
        %v2948 = vadd.f32 0.0, %v2947
        %v2949 = vpop.f32.mrb[0].mxu0
        %v2950 = vpop.f32.mrb[0].mxu0
        %v2951 = vpop.f32.mrb[0].mxu0
        %2952 = vdwg.mxu0
        %v2953 = vpack.c.bf16 %v2948, %v2948
        %v2954 = vpack.c.bf16 %v2466, %v2463
        %v2955 = vpack.c.bf16 %v2474, %v2471
        %v2956 = vpack.c.bf16 %v2482, %v2479
        %v2957 = vpack.c.bf16 %v2490, %v2487
        %v2959 = vsel %vm830, %v2953, 0
        %v2962 = vsel %vm830, %v2954, 0
        %v2965 = vsel %vm830, %v2955, 0
        %v2968 = vsel %vm830, %v2956, 0
        %v2971 = vsel %vm830, %v2957, 0
        %2973 = vmatprep.subr.bf16.mxu0 0
        %2974 = vmatpush1.bf16.xpose.msra.mxu0 %v2962
        %2975 = vmatprep.subr.bf16.mxu0 0
        %2976 = vmatpush1.bf16.xpose.msra.mxu0 %v2965
        %2977 = vmatprep.subr.bf16.mxu0 0
        %2978 = vmatpush1.bf16.xpose.msra.mxu0 %v2968
        %2979 = vmatprep.subr.bf16.mxu0 0
        %2980 = vmatpush1.bf16.xpose.msra.mxu0 %v2971
        %2981 = vmatprep.subr.bf16.mxu0 0
        %2982 = vmatpush1.bf16.xpose.msra.mxu0 0
        %2983 = vmatprep.subr.bf16.mxu0 0
        %2984 = vmatpush1.bf16.xpose.msra.mxu0 0
        %2985 = vmatprep.subr.bf16.mxu0 0
        %2986 = vmatpush1.bf16.xpose.msra.mxu0 0
        %2987 = vmatprep.subr.bf16.mxu0 0
        %2988 = vmatpush1.bf16.xpose.msra.mxu0 0
        %2989 = vmatprep.subr.bf16.mxu0 0
        %2990 = vmatpush1.bf16.xpose.msra.mxu0 0
        %2991 = vmatprep.subr.bf16.mxu0 0
        %2992 = vmatpush1.bf16.xpose.msra.mxu0 0
        %2993 = vmatprep.subr.bf16.mxu0 0
        %2994 = vmatpush1.bf16.xpose.msra.mxu0 0
        %2995 = vmatprep.subr.bf16.mxu0 0
        %2996 = vmatpush1.bf16.xpose.msra.mxu0 0
        %2997 = vmatprep.subr.bf16.mxu0 0
        %2998 = vmatpush1.bf16.xpose.msra.mxu0 0
        %2999 = vmatprep.subr.bf16.mxu0 0
        %3000 = vmatpush1.bf16.xpose.msra.mxu0 0
        %3001 = vmatprep.subr.bf16.mxu0 0
        %3002 = vmatpush1.bf16.xpose.msra.mxu0 0
        %3003 = vmatprep.subr.bf16.mxu0 0
        %3004 = vmatpush1.bf16.xpose.msra.mxu0 0
        %3005 = vmatprep.mubr.bf16.mxu0 0
        %3006 = vmatmul.mubr.bf16.gmra.mrb[0].mxu0 %v2959
        %v3007 = vpop.f32.mrb[0].mxu0
        %v3008 = vadd.f32 0.0, %v3007
        %v3009 = vpop.f32.mrb[0].mxu0
        %v3010 = vpop.f32.mrb[0].mxu0
        %v3011 = vpop.f32.mrb[0].mxu0
        %3012 = vdwg.mxu0
        %v3013 = vmul.f32 %v3008, 0.17677669
        %v3014 = vsel %vm435, %v3013, -inf
        %3015 = vmax.xlane.f32.xlu0 %v3014
        %v3016 = vpop.xlane.xlu0 %3015
        %v3017 = vsub.f32 %v3013, %v3016
        %v3018 = vmul.f32 %v3017, 1.442695
        %v3019 = vpow.pop %v3018
        %v3020 = vsel %vm435, %v3019, 0.0
        %3021 = vadd.xlane.f32.xlu0 %v3020
        %v3022 = vpop.xlane.xlu0 %3021
        %v3023 = vrcp.pop %v3022
        %v3024 = vmul.f32 %v3019, %v3023
        %v3025 = vpack.c.bf16 %v3024, %v3024
        %3030 = vrot.lane.b32.xlu0 %v2954, 96
        %v3031 = vpop.permute.xlu0 %3030
        %3032 = vrot.lane.b32.xlu0 %v2955, 96
        %v3033 = vpop.permute.xlu0 %3032
        %3034 = vrot.lane.b32.xlu0 %v2956, 96
        %v3035 = vpop.permute.xlu0 %3034
        %3036 = vrot.lane.b32.xlu0 %v2957, 96
        %v3037 = vpop.permute.xlu0 %3036
        %v3043 = vsel %vm435, %v3025, 0
        %3045 = vmatprep.subr.bf16.mxu0 0
        %3046 = vmatpush1.bf16.msra.mxu0 %v3031
        %3047 = vmatprep.subr.bf16.mxu0 0
        %3048 = vmatpush1.bf16.msra.mxu0 %v3033
        %3049 = vmatprep.subr.bf16.mxu0 0
        %3050 = vmatpush1.bf16.msra.mxu0 %v3035
        %3051 = vmatprep.subr.bf16.mxu0 0
        %3052 = vmatpush1.bf16.msra.mxu0 %v3037
        %3053 = vmatprep.subr.bf16.mxu0 0
        %3054 = vmatpush1.bf16.msra.mxu0 0
        %3055 = vmatprep.subr.bf16.mxu0 0
        %3056 = vmatpush1.bf16.msra.mxu0 0
        %3057 = vmatprep.subr.bf16.mxu0 0
        %3058 = vmatpush1.bf16.msra.mxu0 0
        %3059 = vmatprep.subr.bf16.mxu0 0
        %3060 = vmatpush1.bf16.msra.mxu0 0
        %3061 = vmatprep.subr.bf16.mxu0 0
        %3062 = vmatpush1.bf16.msra.mxu0 0
        %3063 = vmatprep.subr.bf16.mxu0 0
        %3064 = vmatpush1.bf16.msra.mxu0 0
        %3065 = vmatprep.subr.bf16.mxu0 0
        %3066 = vmatpush1.bf16.msra.mxu0 0
        %3067 = vmatprep.subr.bf16.mxu0 0
        %3068 = vmatpush1.bf16.msra.mxu0 0
        %3069 = vmatprep.subr.bf16.mxu0 0
        %3070 = vmatpush1.bf16.msra.mxu0 0
        %3071 = vmatprep.subr.bf16.mxu0 0
        %3072 = vmatpush1.bf16.msra.mxu0 0
        %3073 = vmatprep.subr.bf16.mxu0 0
        %3074 = vmatpush1.bf16.msra.mxu0 0
        %3075 = vmatprep.subr.bf16.mxu0 0
        %3076 = vmatpush1.bf16.msra.mxu0 0
        %3077 = vmatprep.mubr.bf16.mxu0 0
        %3078 = vmatmul.mubr.bf16.gmra.mrb[0].mxu0 %v3043
        %v3079 = vpop.f32.mrb[0].mxu0
        %v3080 = vadd.f32 0.0, %v3079
        %v3081 = vpop.f32.mrb[0].mxu0
        %v3082 = vpop.f32.mrb[0].mxu0
        %v3083 = vpop.f32.mrb[0].mxu0
        %3084 = vdwg.mxu0
        %v3085 = vpack.c.bf16 %v3080, %v3080
        %v3087 = vsel %vm830, %v3085, 0
        %3089 = vmatprep.subr.bf16.mxu0 0
        %3090 = vmatpush1.bf16.msra.mxu0 %v2756
        %3091 = vmatprep.subr.bf16.mxu0 0
        %3092 = vmatpush1.bf16.msra.mxu0 %v2757
        %3093 = vmatprep.subr.bf16.mxu0 0
        %3094 = vmatpush1.bf16.msra.mxu0 0
        %3095 = vmatprep.subr.bf16.mxu0 0
        %3096 = vmatpush1.bf16.msra.mxu0 0
        %3097 = vmatprep.subr.bf16.mxu0 0
        %3098 = vmatpush1.bf16.msra.mxu0 0
        %3099 = vmatprep.subr.bf16.mxu0 0
        %3100 = vmatpush1.bf16.msra.mxu0 0
        %3101 = vmatprep.subr.bf16.mxu0 0
        %3102 = vmatpush1.bf16.msra.mxu0 0
        %3103 = vmatprep.subr.bf16.mxu0 0
        %3104 = vmatpush1.bf16.msra.mxu0 0
        %3105 = vmatprep.subr.bf16.mxu0 0
        %3106 = vmatpush1.bf16.msra.mxu0 0
        %3107 = vmatprep.subr.bf16.mxu0 0
        %3108 = vmatpush1.bf16.msra.mxu0 0
        %3109 = vmatprep.subr.bf16.mxu0 0
        %3110 = vmatpush1.bf16.msra.mxu0 0
        %3111 = vmatprep.subr.bf16.mxu0 0
        %3112 = vmatpush1.bf16.msra.mxu0 0
        %3113 = vmatprep.subr.bf16.mxu0 0
        %3114 = vmatpush1.bf16.msra.mxu0 0
        %3115 = vmatprep.subr.bf16.mxu0 0
        %3116 = vmatpush1.bf16.msra.mxu0 0
        %3117 = vmatprep.subr.bf16.mxu0 0
        %3118 = vmatpush1.bf16.msra.mxu0 0
        %3119 = vmatprep.subr.bf16.mxu0 0
        %3120 = vmatpush1.bf16.msra.mxu0 0
        %3121 = vmatprep.mubr.bf16.mxu0 0
        %3122 = vmatmul.mubr.bf16.gmra.mrb[0].mxu0 %v3087
        %v3123 = vpop.f32.mrb[0].mxu0
        %v3124 = vadd.f32 0.0, %v3123
        %v3125 = vpop.f32.mrb[0].mxu0
        %v3126 = vpop.f32.mrb[0].mxu0
        %v3127 = vpop.f32.mrb[0].mxu0
        %3128 = vdwg.mxu0
        %v3129 = vadd.f32 %v2911, %v3124
        %v3130 = vpack.c.bf16 %v3129, %v3129
        %3131 = vmatprep.subr.bf16.mxu0 0
        %3132 = vmatpush1.bf16.msra.mxu0 %v2841
        %3133 = vmatprep.subr.bf16.mxu0 0
        %3134 = vmatpush1.bf16.msra.mxu0 %v2842
        %3135 = vmatprep.subr.bf16.mxu0 0
        %3136 = vmatpush1.bf16.msra.mxu0 %v2843
        %3137 = vmatprep.subr.bf16.mxu0 0
        %3138 = vmatpush1.bf16.msra.mxu0 %v2844
        %3139 = vmatprep.subr.bf16.mxu0 0
        %3140 = vmatpush1.bf16.msra.mxu0 %v2845
        %3141 = vmatprep.subr.bf16.mxu0 0
        %3142 = vmatpush1.bf16.msra.mxu0 %v2846
        %3143 = vmatprep.subr.bf16.mxu0 0
        %3144 = vmatpush1.bf16.msra.mxu0 %v2847
        %3145 = vmatprep.subr.bf16.mxu0 0
        %3146 = vmatpush1.bf16.msra.mxu0 %v2848
        %3147 = vmatprep.subr.bf16.mxu0 0
        %3148 = vmatpush1.bf16.msra.mxu0 0
        %3149 = vmatprep.subr.bf16.mxu0 0
        %3150 = vmatpush1.bf16.msra.mxu0 0
        %3151 = vmatprep.subr.bf16.mxu0 0
        %3152 = vmatpush1.bf16.msra.mxu0 0
        %3153 = vmatprep.subr.bf16.mxu0 0
        %3154 = vmatpush1.bf16.msra.mxu0 0
        %3155 = vmatprep.subr.bf16.mxu0 0
        %3156 = vmatpush1.bf16.msra.mxu0 0
        %3157 = vmatprep.subr.bf16.mxu0 0
        %3158 = vmatpush1.bf16.msra.mxu0 0
        %3159 = vmatprep.subr.bf16.mxu0 0
        %3160 = vmatpush1.bf16.msra.mxu0 0
        %3161 = vmatprep.subr.bf16.mxu0 0
        %3162 = vmatpush1.bf16.msra.mxu0 0
        %3163 = vmatprep.mubr.bf16.mxu0 0
        %3164 = vmatmul.mubr.bf16.gmra.mrb[0].mxu0 %v3130
        %v3165 = vpop.f32.mrb[0].mxu0
        %v3166 = vadd.f32 %v2808, %v3165
        %v3167 = vpop.f32.mrb[0].mxu0
        %v3168 = vpop.f32.mrb[0].mxu0
        %v3169 = vpop.f32.mrb[0].mxu0
        %3170 = vdwg.mxu0
        %v3171 = vsub.f32 0.0, %v3166
        %v3172 = vmul.f32 %v3171, 1.442695
        %v3173 = vpow.pop %v3172
        %v3174 = vadd.f32 %v3173, 1.0
        %v3175 = vrcp.pop %v3174
        %v3176 = vmul.f32 1.0, %v3175
        %v3177 = vsel %vm2901, %v3176, %v3166
        %3178 = vst [vmem:[%s194 + $0x8] sm:$0xff] %v3177
        %3179 = vst [vmem:[%s201 + $0x8] sm:$0xff] %v3129
        %v3180 = vadd.f32 %v322, %v3129
        %v3181 = vpack.c.bf16 %v3180, %v3180
        %3182 = vmatprep.subr.bf16.mxu0 0
        %3183 = vmatpush1.bf16.msra.mxu0 %v2559
        %3184 = vmatprep.subr.bf16.mxu0 0
        %3185 = vmatpush1.bf16.msra.mxu0 %v2560
        %3186 = vmatprep.subr.bf16.mxu0 0
        %3187 = vmatpush1.bf16.msra.mxu0 %v2561
        %3188 = vmatprep.subr.bf16.mxu0 0
        %3189 = vmatpush1.bf16.msra.mxu0 %v2562
        %3190 = vmatprep.subr.bf16.mxu0 0
        %3191 = vmatpush1.bf16.msra.mxu0 %v2563
        %3192 = vmatprep.subr.bf16.mxu0 0
        %3193 = vmatpush1.bf16.msra.mxu0 %v2564
        %3194 = vmatprep.subr.bf16.mxu0 0
        %3195 = vmatpush1.bf16.msra.mxu0 %v2565
        %3196 = vmatprep.subr.bf16.mxu0 0
        %3197 = vmatpush1.bf16.msra.mxu0 %v2566
        %3198 = vmatprep.subr.bf16.mxu0 0
        %3199 = vmatpush1.bf16.msra.mxu0 0
        %3200 = vmatprep.subr.bf16.mxu0 0
        %3201 = vmatpush1.bf16.msra.mxu0 0
        %3202 = vmatprep.subr.bf16.mxu0 0
        %3203 = vmatpush1.bf16.msra.mxu0 0
        %3204 = vmatprep.subr.bf16.mxu0 0
        %3205 = vmatpush1.bf16.msra.mxu0 0
        %3206 = vmatprep.subr.bf16.mxu0 0
        %3207 = vmatpush1.bf16.msra.mxu0 0
        %3208 = vmatprep.subr.bf16.mxu0 0
        %3209 = vmatpush1.bf16.msra.mxu0 0
        %3210 = vmatprep.subr.bf16.mxu0 0
        %3211 = vmatpush1.bf16.msra.mxu0 0
        %3212 = vmatprep.subr.bf16.mxu0 0
        %3213 = vmatpush1.bf16.msra.mxu0 0
        %3214 = vmatprep.mubr.bf16.mxu0 0
        %3215 = vmatmul.mubr.bf16.gmra.mrb[0].mxu0 %v3181
        %v3216 = vpop.f32.mrb[0].mxu0
        %v3217 = vadd.f32 0.0, %v3216
        %v3218 = vpop.f32.mrb[0].mxu0
        %v3219 = vpop.f32.mrb[0].mxu0
        %v3220 = vpop.f32.mrb[0].mxu0
        %3221 = vdwg.mxu0
        %v3222 = vpack.c.bf16 %v3217, %v3217
        %v3223 = vpack.c.bf16 %v2498, %v2495
        %v3224 = vpack.c.bf16 %v2506, %v2503
        %v3225 = vpack.c.bf16 %v2514, %v2511
        %v3226 = vpack.c.bf16 %v2522, %v2519
        %v3228 = vsel %vm830, %v3222, 0
        %v3231 = vsel %vm830, %v3223, 0
        %v3234 = vsel %vm830, %v3224, 0
        %v3237 = vsel %vm830, %v3225, 0
        %v3240 = vsel %vm830, %v3226, 0
        %3242 = vmatprep.subr.bf16.mxu0 0
        %3243 = vmatpush1.bf16.xpose.msra.mxu0 %v3231
        %3244 = vmatprep.subr.bf16.mxu0 0
        %3245 = vmatpush1.bf16.xpose.msra.mxu0 %v3234
        %3246 = vmatprep.subr.bf16.mxu0 0
        %3247 = vmatpush1.bf16.xpose.msra.mxu0 %v3237
        %3248 = vmatprep.subr.bf16.mxu0 0
        %3249 = vmatpush1.bf16.xpose.msra.mxu0 %v3240
        %3250 = vmatprep.subr.bf16.mxu0 0
        %3251 = vmatpush1.bf16.xpose.msra.mxu0 0
        %3252 = vmatprep.subr.bf16.mxu0 0
        %3253 = vmatpush1.bf16.xpose.msra.mxu0 0
        %3254 = vmatprep.subr.bf16.mxu0 0
        %3255 = vmatpush1.bf16.xpose.msra.mxu0 0
        %3256 = vmatprep.subr.bf16.mxu0 0
        %3257 = vmatpush1.bf16.xpose.msra.mxu0 0
        %3258 = vmatprep.subr.bf16.mxu0 0
        %3259 = vmatpush1.bf16.xpose.msra.mxu0 0
        %3260 = vmatprep.subr.bf16.mxu0 0
        %3261 = vmatpush1.bf16.xpose.msra.mxu0 0
        %3262 = vmatprep.subr.bf16.mxu0 0
        %3263 = vmatpush1.bf16.xpose.msra.mxu0 0
        %3264 = vmatprep.subr.bf16.mxu0 0
        %3265 = vmatpush1.bf16.xpose.msra.mxu0 0
        %3266 = vmatprep.subr.bf16.mxu0 0
        %3267 = vmatpush1.bf16.xpose.msra.mxu0 0
        %3268 = vmatprep.subr.bf16.mxu0 0
        %3269 = vmatpush1.bf16.xpose.msra.mxu0 0
        %3270 = vmatprep.subr.bf16.mxu0 0
        %3271 = vmatpush1.bf16.xpose.msra.mxu0 0
        %3272 = vmatprep.subr.bf16.mxu0 0
        %3273 = vmatpush1.bf16.xpose.msra.mxu0 0
        %3274 = vmatprep.mubr.bf16.mxu0 0
        %3275 = vmatmul.mubr.bf16.gmra.mrb[0].mxu0 %v3228
        %v3276 = vpop.f32.mrb[0].mxu0
        %v3277 = vadd.f32 0.0, %v3276
        %v3278 = vpop.f32.mrb[0].mxu0
        %v3279 = vpop.f32.mrb[0].mxu0
        %v3280 = vpop.f32.mrb[0].mxu0
        %3281 = vdwg.mxu0
        %v3282 = vmul.f32 %v3277, 0.17677669
        %v3283 = vsel %vm435, %v3282, -inf
        %3284 = vmax.xlane.f32.xlu0 %v3283
        %v3285 = vpop.xlane.xlu0 %3284
        %v3286 = vsub.f32 %v3282, %v3285
        %v3287 = vmul.f32 %v3286, 1.442695
        %v3288 = vpow.pop %v3287
        %v3289 = vsel %vm435, %v3288, 0.0
        %3290 = vadd.xlane.f32.xlu0 %v3289
        %v3291 = vpop.xlane.xlu0 %3290
        %v3292 = vrcp.pop %v3291
        %v3293 = vmul.f32 %v3288, %v3292
        %v3294 = vpack.c.bf16 %v3293, %v3293
        %3299 = vrot.lane.b32.xlu0 %v3223, 96
        %v3300 = vpop.permute.xlu0 %3299
        %3301 = vrot.lane.b32.xlu0 %v3224, 96
        %v3302 = vpop.permute.xlu0 %3301
        %3303 = vrot.lane.b32.xlu0 %v3225, 96
        %v3304 = vpop.permute.xlu0 %3303
        %3305 = vrot.lane.b32.xlu0 %v3226, 96
        %v3306 = vpop.permute.xlu0 %3305
        %v3312 = vsel %vm435, %v3294, 0
        %3314 = vmatprep.subr.bf16.mxu0 0
        %3315 = vmatpush1.bf16.msra.mxu0 %v3300
        %3316 = vmatprep.subr.bf16.mxu0 0
        %3317 = vmatpush1.bf16.msra.mxu0 %v3302
        %3318 = vmatprep.subr.bf16.mxu0 0
        %3319 = vmatpush1.bf16.msra.mxu0 %v3304
        %3320 = vmatprep.subr.bf16.mxu0 0
        %3321 = vmatpush1.bf16.msra.mxu0 %v3306
        %3322 = vmatprep.subr.bf16.mxu0 0
        %3323 = vmatpush1.bf16.msra.mxu0 0
        %3324 = vmatprep.subr.bf16.mxu0 0
        %3325 = vmatpush1.bf16.msra.mxu0 0
        %3326 = vmatprep.subr.bf16.mxu0 0
        %3327 = vmatpush1.bf16.msra.mxu0 0
        %3328 = vmatprep.subr.bf16.mxu0 0
        %3329 = vmatpush1.bf16.msra.mxu0 0
        %3330 = vmatprep.subr.bf16.mxu0 0
        %3331 = vmatpush1.bf16.msra.mxu0 0
        %3332 = vmatprep.subr.bf16.mxu0 0
        %3333 = vmatpush1.bf16.msra.mxu0 0
        %3334 = vmatprep.subr.bf16.mxu0 0
        %3335 = vmatpush1.bf16.msra.mxu0 0
        %3336 = vmatprep.subr.bf16.mxu0 0
        %3337 = vmatpush1.bf16.msra.mxu0 0
        %3338 = vmatprep.subr.bf16.mxu0 0
        %3339 = vmatpush1.bf16.msra.mxu0 0
        %3340 = vmatprep.subr.bf16.mxu0 0
        %3341 = vmatpush1.bf16.msra.mxu0 0
        %3342 = vmatprep.subr.bf16.mxu0 0
        %3343 = vmatpush1.bf16.msra.mxu0 0
        %3344 = vmatprep.subr.bf16.mxu0 0
        %3345 = vmatpush1.bf16.msra.mxu0 0
        %3346 = vmatprep.mubr.bf16.mxu0 0
        %3347 = vmatmul.mubr.bf16.gmra.mrb[0].mxu0 %v3312
        %v3348 = vpop.f32.mrb[0].mxu0
        %v3349 = vadd.f32 0.0, %v3348
        %v3350 = vpop.f32.mrb[0].mxu0
        %v3351 = vpop.f32.mrb[0].mxu0
        %v3352 = vpop.f32.mrb[0].mxu0
        %3353 = vdwg.mxu0
        %v3354 = vpack.c.bf16 %v3349, %v3349
        %v3356 = vsel %vm830, %v3354, 0
        %3358 = vmatprep.subr.bf16.mxu0 0
        %3359 = vmatpush1.bf16.msra.mxu0 %v2756
        %3360 = vmatprep.subr.bf16.mxu0 0
        %3361 = vmatpush1.bf16.msra.mxu0 %v2757
        %3362 = vmatprep.subr.bf16.mxu0 0
        %3363 = vmatpush1.bf16.msra.mxu0 0
        %3364 = vmatprep.subr.bf16.mxu0 0
        %3365 = vmatpush1.bf16.msra.mxu0 0
        %3366 = vmatprep.subr.bf16.mxu0 0
        %3367 = vmatpush1.bf16.msra.mxu0 0
        %3368 = vmatprep.subr.bf16.mxu0 0
        %3369 = vmatpush1.bf16.msra.mxu0 0
        %3370 = vmatprep.subr.bf16.mxu0 0
        %3371 = vmatpush1.bf16.msra.mxu0 0
        %3372 = vmatprep.subr.bf16.mxu0 0
        %3373 = vmatpush1.bf16.msra.mxu0 0
        %3374 = vmatprep.subr.bf16.mxu0 0
        %3375 = vmatpush1.bf16.msra.mxu0 0
        %3376 = vmatprep.subr.bf16.mxu0 0
        %3377 = vmatpush1.bf16.msra.mxu0 0
        %3378 = vmatprep.subr.bf16.mxu0 0
        %3379 = vmatpush1.bf16.msra.mxu0 0
        %3380 = vmatprep.subr.bf16.mxu0 0
        %3381 = vmatpush1.bf16.msra.mxu0 0
        %3382 = vmatprep.subr.bf16.mxu0 0
        %3383 = vmatpush1.bf16.msra.mxu0 0
        %3384 = vmatprep.subr.bf16.mxu0 0
        %3385 = vmatpush1.bf16.msra.mxu0 0
        %3386 = vmatprep.subr.bf16.mxu0 0
        %3387 = vmatpush1.bf16.msra.mxu0 0
        %3388 = vmatprep.subr.bf16.mxu0 0
        %3389 = vmatpush1.bf16.msra.mxu0 0
        %3390 = vmatprep.mubr.bf16.mxu0 0
        %3391 = vmatmul.mubr.bf16.gmra.mrb[0].mxu0 %v3356
        %v3392 = vpop.f32.mrb[0].mxu0
        %v3393 = vadd.f32 0.0, %v3392
        %v3394 = vpop.f32.mrb[0].mxu0
        %v3395 = vpop.f32.mrb[0].mxu0
        %v3396 = vpop.f32.mrb[0].mxu0
        %3397 = vdwg.mxu0
        %v3398 = vadd.f32 %v3180, %v3393
        %v3399 = vpack.c.bf16 %v3398, %v3398
        %3400 = vmatprep.subr.bf16.mxu0 0
        %3401 = vmatpush1.bf16.msra.mxu0 %v2841
        %3402 = vmatprep.subr.bf16.mxu0 0
        %3403 = vmatpush1.bf16.msra.mxu0 %v2842
        %3404 = vmatprep.subr.bf16.mxu0 0
        %3405 = vmatpush1.bf16.msra.mxu0 %v2843
        %3406 = vmatprep.subr.bf16.mxu0 0
        %3407 = vmatpush1.bf16.msra.mxu0 %v2844
        %3408 = vmatprep.subr.bf16.mxu0 0
        %3409 = vmatpush1.bf16.msra.mxu0 %v2845
        %3410 = vmatprep.subr.bf16.mxu0 0
        %3411 = vmatpush1.bf16.msra.mxu0 %v2846
        %3412 = vmatprep.subr.bf16.mxu0 0
        %3413 = vmatpush1.bf16.msra.mxu0 %v2847
        %3414 = vmatprep.subr.bf16.mxu0 0
        %3415 = vmatpush1.bf16.msra.mxu0 %v2848
        %3416 = vmatprep.subr.bf16.mxu0 0
        %3417 = vmatpush1.bf16.msra.mxu0 0
        %3418 = vmatprep.subr.bf16.mxu0 0
        %3419 = vmatpush1.bf16.msra.mxu0 0
        %3420 = vmatprep.subr.bf16.mxu0 0
        %3421 = vmatpush1.bf16.msra.mxu0 0
        %3422 = vmatprep.subr.bf16.mxu0 0
        %3423 = vmatpush1.bf16.msra.mxu0 0
        %3424 = vmatprep.subr.bf16.mxu0 0
        %3425 = vmatpush1.bf16.msra.mxu0 0
        %3426 = vmatprep.subr.bf16.mxu0 0
        %3427 = vmatpush1.bf16.msra.mxu0 0
        %3428 = vmatprep.subr.bf16.mxu0 0
        %3429 = vmatpush1.bf16.msra.mxu0 0
        %3430 = vmatprep.subr.bf16.mxu0 0
        %3431 = vmatpush1.bf16.msra.mxu0 0
        %3432 = vmatprep.mubr.bf16.mxu0 0
        %3433 = vmatmul.mubr.bf16.gmra.mrb[0].mxu0 %v3399
        %v3434 = vpop.f32.mrb[0].mxu0
        %v3435 = vadd.f32 %v2808, %v3434
        %v3436 = vpop.f32.mrb[0].mxu0
        %v3437 = vpop.f32.mrb[0].mxu0
        %v3438 = vpop.f32.mrb[0].mxu0
        %3439 = vdwg.mxu0
        %v3440 = vsub.f32 0.0, %v3435
        %v3441 = vmul.f32 %v3440, 1.442695
        %v3442 = vpow.pop %v3441
        %v3443 = vadd.f32 %v3442, 1.0
        %v3444 = vrcp.pop %v3443
        %v3445 = vmul.f32 1.0, %v3444
        %v3446 = vsel %vm2901, %v3445, %v3435
        %3447 = vst [vmem:[%s194 + $0x10] sm:$0xff] %v3446
        %3448 = vst [vmem:[%s201 + $0x10] sm:$0xff] %v3398
        %s3449 = sand.u32 %s98, 1
        %s3450 = scalar_lea.sflag [#allocation3], %s3449
        %s3451 = sand.u32 %s98, 1
        %s3452 = smul.addr %s3451, 24
        %s3453 = scalar_lea.vmem [#allocation2], %s3452
        %s3454 = sand.u32 %s124, 1
        %s3455 = scalar_lea.sflag [#allocation5], %s3454
        %s3456 = sand.u32 %s124, 1
        %s3457 = smul.addr %s3456, 24
        %s3458 = scalar_lea.vmem [#allocation4], %s3457
        // Predicated region
        $region33: #{_forward_clip.1} parent=31 // pred_check
          %p3459 = pneg %p108
        $region34: #{_forward_clip.1} parent=31 // pred_check_branch
          %3461 = sbr.rel (%p3459) target = $region36
        $region35: #{_forward_clip.1} parent=31 // pred_region
          %s3463 = ssub.s32 384, 384
          %3464 = vsyncadd %s3450, %s3463
          %s3465 = smul.addr %s22, 3
          %s3466 = smul.addr %s3465, 128
          %s3467 = scalar_lea.hbm %s3, %s3466
          %s3468 = sshll.u32 %s3453, 4
          %s3469 = int_to_ptr.vmem [resolvable:$true] %s3468
          %3474 = dma.vmem_to_hbm [thread:$0]  %s3469, 384, %s3467, %s3450, 128, 128, 8
        $region36: #{_forward_clip.1} parent=31 // pred_fallthru
          _
        // Predicated region
        $region37: #{_forward_clip.1} parent=31 // pred_check
          %p3475 = pneg %p134
        $region38: #{_forward_clip.1} parent=31 // pred_check_branch
          %3477 = sbr.rel (%p3475) target = $region40
        $region39: #{_forward_clip.1} parent=31 // pred_region
          %s3479 = ssub.s32 384, 384
          %3480 = vsyncadd %s3455, %s3479
          %s3481 = smul.addr %s22, 3
          %s3482 = smul.addr %s3481, 128
          %s3483 = scalar_lea.hbm %s4, %s3482
          %s3484 = sshll.u32 %s3458, 4
          %s3485 = int_to_ptr.vmem [resolvable:$true] %s3484
          %3490 = dma.vmem_to_hbm [thread:$0]  %s3485, 384, %s3483, %s3455, 128, 128, 8
        $region40: #{_forward_clip.1} parent=31 // pred_fallthru
          _
      $region32: #{_forward_clip.1} parent=5 // pred_fallthru
        _
      %p3491 = scmp.le.s32.totalorder 2, %s17
      // Predicated region
      $region41: #{_forward_clip.1} parent=5 // pred_check
        %p3492 = pneg %p3491
      $region42: #{_forward_clip.1} parent=5 // pred_check_branch
        %3494 = sbr.rel (%p3492) target = $region44
      $region43: #{_forward_clip.1} parent=5 // pred_region
        %s3495 = ssub.s32 %s17, 2
        // Predicated region
        $region45: #{_forward_clip.1} parent=43 // pred_check
          %p3496 = pneg %p114
        $region46: #{_forward_clip.1} parent=43 // pred_check_branch
          %3498 = sbr.rel (%p3496) target = $region48
        $region47: #{_forward_clip.1} parent=43 // pred_region
          %s3499 = sand.u32 %s99, 1
          %s3500 = scalar_lea.sflag [#allocation3], %s3499
          %s3501 = sand.u32 %s99, 1
          %s3502 = smul.addr %s3501, 24
          %s3503 = scalar_lea.vmem [#allocation2], %s3502
          %3504 = dma.done %s3500, 384
        $region48: #{_forward_clip.1} parent=43 // pred_fallthru
          _
        // Predicated region
        $region49: #{_forward_clip.1} parent=43 // pred_check
          %p3505 = pneg %p140
        $region50: #{_forward_clip.1} parent=43 // pred_check_branch
          %3507 = sbr.rel (%p3505) target = $region52
        $region51: #{_forward_clip.1} parent=43 // pred_region
          %s3508 = sand.u32 %s125, 1
          %s3509 = scalar_lea.sflag [#allocation5], %s3508
          %s3510 = sand.u32 %s125, 1
          %s3511 = smul.addr %s3510, 24
          %s3512 = scalar_lea.vmem [#allocation4], %s3511
          %3513 = dma.done %s3509, 384
        $region52: #{_forward_clip.1} parent=43 // pred_fallthru
          _
      $region44: #{_forward_clip.1} parent=5 // pred_fallthru
        _
    $region6: #{_forward_clip.1} parent=1 // loop_footer
      %s21 = sadd.s32 1, %s17
    $region7: #{_forward_clip.1} parent=1 // loop_footer_branch
      %16 = sbr.rel target = $region3
    $region8: #{_forward_clip.1} parent=1 // loop_exit
      _
    %3514 = vsyncpa [#allocation3], 1
    %s3515 = scalar_lea.sflag [#allocation3], 1
    %3516 = vsyncpa %s3515, 1
    %3517 = vsyncpa [#allocation5], 1
    %s3518 = scalar_lea.sflag [#allocation5], 1
    %3519 = vsyncpa %s3518, 1

</llo_original>
